<compile_context>
chip_gen: v7x
topology: tpu7x:2x2x1
jax: 0.10.0
libtpu: 0.0.40
codegen_flags: <defaults>
</compile_context>

<pallas_src>
import functools

import jax
import jax.numpy as jnp
from jax import lax
from jax.experimental import pallas as pl
from jax.experimental.pallas import tpu as pltpu


# -----------------------------------------------------------------------------
# in-kernel helpers
# -----------------------------------------------------------------------------
def _mm(x_bf16, w_bf16):
    """bf16 x bf16 -> f32 MXU matmul; callers cast activations exactly once."""
    return jnp.dot(x_bf16, w_bf16, preferred_element_type=jnp.float32)


def _gat_then_linear(x, w_flat, a_src, a_dst_rows, adj, w_inv, b_inv, *,
                     num_heads, head_dim):
    """Multi-head GAT (concat heads) + following linear layer, all in-register.

    x:          (M, F)      f32   node features (batch folded into rows)
    w_flat:     (F, H*Fh)   bf16  per-head projections stacked on lanes
    a_src:      (H, Fh)     f32   source attention vectors
    a_dst_rows: (H, H*Fh)   f32   dest attention vectors as block rows
    adj:        (M, M)      f32   block-diagonal adjacency (>0 == edge)
    w_inv:      (H*Fh, D)   bf16  following linear; b_inv (1, D) f32
    Head-concat is folded into per-head row blocks of w_inv.
    """
    m = x.shape[0]
    dout = w_inv.shape[-1]
    z_all = _mm(x.astype(jnp.bfloat16), w_flat)                       # (M, H*Fh)
    # all heads' destination scores in ONE small matmul -> (H, M)
    s_dst = lax.dot_general(a_dst_rows, z_all, (((1,), (1,)), ((), ())),
                            preferred_element_type=jnp.float32)
    acc = jnp.zeros((m, dout), jnp.float32)
    for h in range(num_heads):                                        # static (H==2)
        z_h = z_all[:, h * head_dim:(h + 1) * head_dim]               # (M, Fh)
        # source scores on VPU + lane reduce (no MXU push/pop)
        s_src = jnp.sum(z_h * a_src[h:h + 1, :], axis=-1, keepdims=True)  # (M, 1)
        e = s_src + s_dst[h:h + 1, :]                                 # (M, M)
        e = jnp.where(e > 0, e, 0.2 * e)                              # LeakyReLU(0.2)
        e = jnp.where(adj > 0, e, -1e30)                              # mask non-edges
        e = e - jnp.max(e, axis=-1, keepdims=True)
        p = jnp.exp(e)
        alpha = p / jnp.sum(p, axis=-1, keepdims=True)                # exact softmax
        head_out = _mm(alpha.astype(jnp.bfloat16), z_h.astype(jnp.bfloat16))
        acc = acc + _mm(head_out.astype(jnp.bfloat16),
                        w_inv[h * head_dim:(h + 1) * head_dim, :])
    return acc + b_inv


def _block_transpose_into(dst_ref, x, a, b, c, d):
    """x: (a*b, c*d) with rows (a-major, b-minor) and lanes (c-major, d-minor).

    Writes dst_ref (c*b, a*d) with rows (c, b) and lanes (a, d):
        dst[ci*b + bi, ai*d + di] = x[ai*b + bi, ci*d + di]
    Implemented with static slices + lane concat + thin row stores only (no
    minor-dim reshapes/transposes), so it stays on the VPU/XLU and always lowers.
    """
    for ci in range(c):
        pieces = [x[ai * b:(ai + 1) * b, ci * d:(ci + 1) * d] for ai in range(a)]
        dst_ref[ci * b:(ci + 1) * b, :] = jnp.concatenate(pieces, axis=1)


# -----------------------------------------------------------------------------
# fused kernel
# -----------------------------------------------------------------------------
def _stgsat_kernel(xin_ref, ext_ref, adjs_ref, adjt_ref,
                   stw_ref, stb_ref, tsw_ref, tsb_ref,
                   spw_ref, spb_ref,
                   gsw_ref, gsas_ref, gsad_ref, isw_ref, isb_ref,
                   tpw_ref, tpb_ref,
                   gtw_ref, gtas_ref, gtad_ref, itw_ref, itb_ref,
                   w1_ref, b1_ref, w2_ref, b2_ref, regw_ref, regb_ref,
                   out_ref, tp_ref, tf_ref,
                   *, num_heads, head_dim_spat, head_dim_temp,
                   num_nodes, lag, d_model, batch, num_layers, hidden_pad):
    bf16 = jnp.bfloat16

    # ---- spatial branch, rows = (node, batch) -------------------------------
    res_x = _mm(xin_ref[...].astype(bf16), stw_ref[...]) + stb_ref[...]   # (N*B, L*dm)
    res_x_bf = res_x.astype(bf16)                                         # cast once
    ts_res = _mm(res_x_bf, tsw_ref[...]) + tsb_ref[...]                   # (N*B, hid)
    spa_in = _mm(res_x_bf, spw_ref[...]) + spb_ref[...]                   # (N*B, d_sp)
    spa_gat = _gat_then_linear(spa_in, gsw_ref[...], gsas_ref[...], gsad_ref[...],
                               adjs_ref[...], isw_ref[...], isb_ref[...],
                               num_heads=num_heads, head_dim=head_dim_spat)

    # (N*B, L*dm) -> (L*B, N*dm) : in-kernel permute via VMEM scratch
    _block_transpose_into(tp_ref, spa_gat, num_nodes, batch, lag, d_model)
    temp_pre = tp_ref[...]

    # ---- temporal branch, rows = (lag, batch) -------------------------------
    t_in = _mm(temp_pre.astype(bf16), tpw_ref[...]) + tpb_ref[...]        # (L*B, d_t)
    temp_gat = _gat_then_linear(t_in, gtw_ref[...], gtas_ref[...], gtad_ref[...],
                                adjt_ref[...], itw_ref[...], itb_ref[...],
                                num_heads=num_heads, head_dim=head_dim_temp)

    # (L*B, N*dm) -> (N*B, L*dm)
    _block_transpose_into(tf_ref, temp_gat, lag, batch, num_nodes, d_model)
    temp_flat = tf_ref[...]
    ts_temp = _mm(temp_flat.astype(bf16), tsw_ref[...]) + tsb_ref[...]    # (N*B, hid)

    # ---- head: concat (padded to lane-aligned width) + 3x MLP_res + reg -----
    pieces = [ts_res, ts_temp, ext_ref[...]]
    used = sum(p.shape[1] for p in pieces)
    if hidden_pad > used:
        pieces.append(jnp.zeros((ts_res.shape[0], hidden_pad - used), jnp.float32))
    h = jnp.concatenate(pieces, axis=-1)                                  # (N*B, 256)
    for i in range(num_layers):                                           # static
        z = jnp.maximum(_mm(h.astype(bf16), w1_ref[i]) + b1_ref[i], 0.0)
        h = _mm(z.astype(bf16), w2_ref[i]) + b2_ref[i] + h
    out_ref[...] = (_mm(h.astype(bf16), regw_ref[...]) + regb_ref[...]
                    ).astype(out_ref.dtype)                               # (N*B, 128)


# -----------------------------------------------------------------------------
# forward (single pallas_call; only embedding gathers + tiny reshapes in XLA)
# -----------------------------------------------------------------------------
def stgsat_forward(params, history_data, *, horizon):
    B, L, N, _ = history_data.shape
    d_model = params["inv_spat_w"].shape[1] // L
    H, Fh_s = params["gat_spa_asrc"].shape
    Fh_t = params["gat_temp_asrc"].shape[1]
    hidden = params["ts_w"].shape[1]
    d_spat = params["trans_spat_w"].shape[1]
    d_temp = params["trans_temp_w"].shape[1]
    num_layers = int(params["enc_w1"].shape[0])
    hidden_pad = int(params["enc_w1"].shape[-1])
    out_dim = int(params["reg_w_pad"].shape[1])

    X = history_data[..., :3]
    # rows ordered (node, batch) so the in-kernel permutes use contiguous blocks
    xin = jnp.transpose(X, (2, 0, 1, 3)).reshape(N * B, L * 3)

    tid = jnp.clip(history_data[:, -1, :, 1].astype(jnp.int32), 0,
                   params["T_i_D_emb"].shape[0] - 1)                   # (B, N)
    diw = jnp.clip(history_data[:, -1, :, 2].astype(jnp.int32), 0,
                   params["D_i_W_emb"].shape[0] - 1)
    t_part = params["T_i_D_emb"][jnp.transpose(tid).reshape(N * B)]    # (N*B, hid)
    d_part = params["D_i_W_emb"][jnp.transpose(diw).reshape(N * B)]
    node_part = jnp.repeat(params["node_emb"], B, axis=0)              # (N*B, hid)
    ext_emb = jnp.concatenate([node_part, t_part, d_part], axis=-1)    # (N*B, 3*hid)

    args = (xin, ext_emb, params["adj_spa_big"], params["adj_temp_big"],
            params["start_w_bd"], params["start_b_t"],
            params["ts_w"], params["ts_b"],
            params["trans_spat_w"], params["trans_spat_b"],
            params["gat_spa_w"], params["gat_spa_asrc"], params["gat_spa_adst_rows"],
            params["inv_spat_w"], params["inv_spat_b"],
            params["trans_temp_w"], params["trans_temp_b"],
            params["gat_temp_w"], params["gat_temp_asrc"], params["gat_temp_adst_rows"],
            params["inv_temp_w"], params["inv_temp_b"],
            params["enc_w1"], params["enc_b1"], params["enc_w2"], params["enc_b2"],
            params["reg_w_pad"], params["reg_b_pad"])

    M1, M2 = N * B, L * B
    Ldm, Ndm = L * d_model, N * d_model
    flops = 2 * (
        M1 * (3 * L) * Ldm
        + M1 * Ldm * (hidden + d_spat)
        + M1 * d_spat * d_spat + 2 * H * M1 * M1 * Fh_s + M1 * d_spat * Ldm
        + M2 * Ndm * d_temp
        + M2 * d_temp * d_temp + 2 * H * M2 * M2 * Fh_t + M2 * d_temp * Ndm
        + M1 * Ldm * hidden
        + num_layers * 2 * M1 * hidden_pad * hidden_pad
        + M1 * hidden_pad * out_dim)
    trans = H * (M1 * M1 + M2 * M2)
    bytes_accessed = int(sum(int(a.size) * a.dtype.itemsize for a in args)
                         + 4 * M1 * out_dim)

    kernel = functools.partial(
        _stgsat_kernel, num_heads=H, head_dim_spat=Fh_s, head_dim_temp=Fh_t,
        num_nodes=N, lag=L, d_model=d_model, batch=B,
        num_layers=num_layers, hidden_pad=hidden_pad)

    pred_pad = pl.pallas_call(
        kernel,
        out_shape=jax.ShapeDtypeStruct((N * B, out_dim), jnp.float32),
        scratch_shapes=[pltpu.VMEM((L * B, N * d_model), jnp.float32),
                        pltpu.VMEM((N * B, L * d_model), jnp.float32)],
        cost_estimate=pl.CostEstimate(flops=int(flops), transcendentals=int(trans),
                                      bytes_accessed=bytes_accessed),
    )(*args)

    pred = pred_pad[:, :horizon].reshape(N, B, horizon)                # rows (n, b)
    return jnp.transpose(pred, (1, 2, 0))[..., None]                   # (B, hor, N, 1)


# -----------------------------------------------------------------------------
# deterministic parameter construction (all padding / layout prep done here)
# -----------------------------------------------------------------------------
def make_params(key, *, num_nodes, lag, hidden, d_model, d_spat, d_temp, heads,
                horizon, batch_size):
    ks = iter(jax.random.split(key, 64))
    bf = jnp.bfloat16
    hidden_dim = 5 * hidden                    # 2*ts_emb + node + tid + diw
    hidden_pad = ((hidden_dim + 127) // 128) * 128
    out_dim = max(128, ((horizon + 127) // 128) * 128)

    def xavier(shape):
        fan_in, fan_out = shape[-2], shape[-1]
        bound = (6.0 / (fan_in + fan_out)) ** 0.5
        return jax.random.uniform(next(ks), shape, jnp.float32, -bound, bound)

    node_emb = xavier((num_nodes, hidden))
    tid_emb = xavier((288, hidden))
    diw_emb = xavier((7, hidden))

    # start_fc folded into a block-diagonal weight acting on the (L*3) layout
    start_w = xavier((3, d_model))
    start_w_bd = jnp.kron(jnp.eye(lag, dtype=jnp.float32), start_w)    # (L*3, L*dm)
    start_b_t = jnp.zeros((1, lag * d_model), jnp.float32)

    def gat(dmdl):
        fh = dmdl // heads
        w = xavier((heads, dmdl, fh))
        w_flat = jnp.transpose(w, (1, 0, 2)).reshape(dmdl, heads * fh).astype(bf)
        a_src = xavier((heads, fh))
        a_dst = xavier((heads, fh))
        a_dst_rows = jnp.zeros((heads, heads * fh), jnp.float32)
        for h in range(heads):                 # block rows -> one matmul per branch
            a_dst_rows = a_dst_rows.at[h, h * fh:(h + 1) * fh].set(a_dst[h])
        return w_flat, a_src, a_dst_rows

    gspa_w, gspa_as, gspa_adr = gat(d_spat)
    gtmp_w, gtmp_as, gtmp_adr = gat(d_temp)

    def padded_mlp_weight():
        w = jnp.zeros((hidden_pad, hidden_pad), jnp.float32)
        return w.at[:hidden_dim, :hidden_dim].set(xavier((hidden_dim, hidden_dim)))

    enc_w1 = jnp.stack([padded_mlp_weight() for _ in range(3)]).astype(bf)
    enc_w2 = jnp.stack([padded_mlp_weight() for _ in range(3)]).astype(bf)
    enc_b1 = jnp.zeros((3, 1, hidden_pad), jnp.float32)
    enc_b2 = jnp.zeros((3, 1, hidden_pad), jnp.float32)

    reg_w = jnp.zeros((hidden_pad, out_dim), jnp.float32)
    reg_w = reg_w.at[:hidden_dim, :horizon].set(xavier((hidden_dim, horizon)))
    reg_b_pad = jnp.zeros((1, out_dim), jnp.float32)

    # spatial graph: ring + self loops; block-diagonal masks over the batch
    idx = jnp.arange(num_nodes)
    adj = jnp.zeros((num_nodes, num_nodes), jnp.float32)
    adj = adj.at[idx, idx].set(1.0)
    adj = adj.at[idx, (idx + 1) % num_nodes].set(1.0)
    adj = adj.at[idx, (idx - 1) % num_nodes].set(1.0)
    eye_b = jnp.eye(batch_size, dtype=jnp.float32)
    adj_spa_big = jnp.kron(adj, eye_b)                                  # rows (n, b)
    adj_temp_big = jnp.kron(jnp.ones((lag, lag), jnp.float32), eye_b)   # rows (l, b)

    return dict(
        node_emb=node_emb, T_i_D_emb=tid_emb, D_i_W_emb=diw_emb,
        start_w_bd=start_w_bd.astype(bf), start_b_t=start_b_t,
        ts_w=xavier((lag * d_model, hidden)).astype(bf),
        ts_b=jnp.zeros((1, hidden), jnp.float32),
        trans_spat_w=xavier((lag * d_model, d_spat)).astype(bf),
        trans_spat_b=jnp.zeros((1, d_spat), jnp.float32),
        inv_spat_w=xavier((d_spat, lag * d_model)).astype(bf),
        inv_spat_b=jnp.zeros((1, lag * d_model), jnp.float32),
        trans_temp_w=xavier((num_nodes * d_model, d_temp)).astype(bf),
        trans_temp_b=jnp.zeros((1, d_temp), jnp.float32),
        inv_temp_w=xavier((d_temp, num_nodes * d_model)).astype(bf),
        inv_temp_b=jnp.zeros((1, num_nodes * d_model), jnp.float32),
        gat_spa_w=gspa_w, gat_spa_asrc=gspa_as, gat_spa_adst_rows=gspa_adr,
        gat_temp_w=gtmp_w, gat_temp_asrc=gtmp_as, gat_temp_adst_rows=gtmp_adr,
        enc_w1=enc_w1, enc_b1=enc_b1, enc_w2=enc_w2, enc_b2=enc_b2,
        reg_w_pad=reg_w.astype(bf), reg_b_pad=reg_b_pad,
        adj_spa_big=adj_spa_big, adj_temp_big=adj_temp_big,
    )


# -----------------------------------------------------------------------------
if __name__ == "__main__":
    B, L, N = 2, 8, 16           # batch, lag, num_nodes
    HIDDEN = 32                  # hidden_size == node / temporal embedding dim
    D_MODEL = 16                 # d_model
    D_SPAT = 32                  # d_model_spat
    D_TEMP = 32                  # d_model_temp
    HEADS = 2
    HORIZON = 4

    key = jax.random.PRNGKey(0)
    kp, k1, k2, k3 = jax.random.split(key, 4)
    params = make_params(
        kp, num_nodes=N, lag=L, hidden=HIDDEN, d_model=D_MODEL,
        d_spat=D_SPAT, d_temp=D_TEMP, heads=HEADS, horizon=HORIZON,
        batch_size=B,
    )

    # history_data: ch 0 = signal, 1 = time-in-day index [0,288), 2 = day-in-week [0,7)
    sig = jax.random.normal(k1, (B, L, N, 1), jnp.float32)
    tod = jax.random.randint(k2, (B, L, N, 1), 0, 288).astype(jnp.float32)
    dow = jax.random.randint(k3, (B, L, N, 1), 0, 7).astype(jnp.float32)
    history = jnp.concatenate([sig, tod, dow], axis=-1)   # (B, L, N, 3)

    fwd = jax.jit(functools.partial(stgsat_forward, horizon=HORIZON))
    out = jax.block_until_ready(fwd(params, history))
    assert out.shape == (B, HORIZON, N, 1), out.shape
    assert bool(jnp.all(jnp.isfinite(out)))
    print("KERNEL_OK")
</pallas_src>

<mosaic_0001>
module attributes {stable_mosaic.version = 11 : i64} {
  func.func @_stgsat_kernel(%arg0: memref<32x24xf32, #tpu.memory_space<vmem>>, %arg1: memref<32x96xf32, #tpu.memory_space<vmem>>, %arg2: memref<32x32xf32, #tpu.memory_space<vmem>>, %arg3: memref<16x16xf32, #tpu.memory_space<vmem>>, %arg4: memref<24x128xbf16, #tpu.memory_space<vmem>>, %arg5: memref<1x128xf32, #tpu.memory_space<vmem>>, %arg6: memref<128x32xbf16, #tpu.memory_space<vmem>>, %arg7: memref<1x32xf32, #tpu.memory_space<vmem>>, %arg8: memref<128x32xbf16, #tpu.memory_space<vmem>>, %arg9: memref<1x32xf32, #tpu.memory_space<vmem>>, %arg10: memref<32x32xbf16, #tpu.memory_space<vmem>>, %arg11: memref<2x16xf32, #tpu.memory_space<vmem>>, %arg12: memref<2x32xf32, #tpu.memory_space<vmem>>, %arg13: memref<32x128xbf16, #tpu.memory_space<vmem>>, %arg14: memref<1x128xf32, #tpu.memory_space<vmem>>, %arg15: memref<256x32xbf16, #tpu.memory_space<vmem>>, %arg16: memref<1x32xf32, #tpu.memory_space<vmem>>, %arg17: memref<32x32xbf16, #tpu.memory_space<vmem>>, %arg18: memref<2x16xf32, #tpu.memory_space<vmem>>, %arg19: memref<2x32xf32, #tpu.memory_space<vmem>>, %arg20: memref<32x256xbf16, #tpu.memory_space<vmem>>, %arg21: memref<1x256xf32, #tpu.memory_space<vmem>>, %arg22: memref<3x256x256xbf16, #tpu.memory_space<vmem>>, %arg23: memref<3x1x256xf32, #tpu.memory_space<vmem>>, %arg24: memref<3x256x256xbf16, #tpu.memory_space<vmem>>, %arg25: memref<3x1x256xf32, #tpu.memory_space<vmem>>, %arg26: memref<256x128xbf16, #tpu.memory_space<vmem>>, %arg27: memref<1x128xf32, #tpu.memory_space<vmem>>, %arg28: memref<32x128xf32, #tpu.memory_space<vmem>>, %arg29: memref<16x256xf32, #tpu.memory_space<vmem>>, %arg30: memref<32x128xf32, #tpu.memory_space<vmem>>) attributes {dimension_semantics = [], scalar_prefetch = 0 : i64, scratch_operands = 2 : i64, tpu.core_type = #tpu.core_type<tc>} {
    %c0 = arith.constant 0 : index
    %c0_0 = arith.constant 0 : index
    %0 = vector.load %arg0[%c0, %c0_0] : memref<32x24xf32, #tpu.memory_space<vmem>>, vector<32x24xf32>
    %1 = arith.truncf %0 : vector<32x24xf32> to vector<32x24xbf16>
    %c0_1 = arith.constant 0 : index
    %c0_2 = arith.constant 0 : index
    %2 = vector.load %arg4[%c0_1, %c0_2] : memref<24x128xbf16, #tpu.memory_space<vmem>>, vector<24x128xbf16>
    %cst = arith.constant dense<0.000000e+00> : vector<32x128xf32>
    %3 = tpu.matmul %1, %2, %cst {dimension_numbers = #tpu.dot_dimension_numbers<[1], [0], [0], [1], [0, 0, 1, 1], [], []>} : vector<32x24xbf16>, vector<24x128xbf16>, vector<32x128xf32> -> vector<32x128xf32>
    %c0_3 = arith.constant 0 : index
    %c0_4 = arith.constant 0 : index
    %4 = vector.load %arg5[%c0_3, %c0_4] : memref<1x128xf32, #tpu.memory_space<vmem>>, vector<1x128xf32>
    %5 = vector.broadcast %4 : vector<1x128xf32> to vector<32x128xf32>
    %6 = arith.addf %3, %5 : vector<32x128xf32>
    %7 = arith.truncf %6 : vector<32x128xf32> to vector<32x128xbf16>
    %c0_5 = arith.constant 0 : index
    %c0_6 = arith.constant 0 : index
    %8 = vector.load %arg6[%c0_5, %c0_6] : memref<128x32xbf16, #tpu.memory_space<vmem>>, vector<128x32xbf16>
    %cst_7 = arith.constant dense<0.000000e+00> : vector<32x32xf32>
    %9 = tpu.matmul %7, %8, %cst_7 {dimension_numbers = #tpu.dot_dimension_numbers<[1], [0], [0], [1], [0, 0, 1, 1], [], []>} : vector<32x128xbf16>, vector<128x32xbf16>, vector<32x32xf32> -> vector<32x32xf32>
    %c0_8 = arith.constant 0 : index
    %c0_9 = arith.constant 0 : index
    %10 = vector.load %arg7[%c0_8, %c0_9] : memref<1x32xf32, #tpu.memory_space<vmem>>, vector<1x32xf32>
    %11 = vector.broadcast %10 : vector<1x32xf32> to vector<32x32xf32>
    %12 = arith.addf %9, %11 : vector<32x32xf32>
    %c0_10 = arith.constant 0 : index
    %c0_11 = arith.constant 0 : index
    %13 = vector.load %arg8[%c0_10, %c0_11] : memref<128x32xbf16, #tpu.memory_space<vmem>>, vector<128x32xbf16>
    %cst_12 = arith.constant dense<0.000000e+00> : vector<32x32xf32>
    %14 = tpu.matmul %7, %13, %cst_12 {dimension_numbers = #tpu.dot_dimension_numbers<[1], [0], [0], [1], [0, 0, 1, 1], [], []>} : vector<32x128xbf16>, vector<128x32xbf16>, vector<32x32xf32> -> vector<32x32xf32>
    %c0_13 = arith.constant 0 : index
    %c0_14 = arith.constant 0 : index
    %15 = vector.load %arg9[%c0_13, %c0_14] : memref<1x32xf32, #tpu.memory_space<vmem>>, vector<1x32xf32>
    %16 = vector.broadcast %15 : vector<1x32xf32> to vector<32x32xf32>
    %17 = arith.addf %14, %16 : vector<32x32xf32>
    %c0_15 = arith.constant 0 : index
    %c0_16 = arith.constant 0 : index
    %18 = vector.load %arg10[%c0_15, %c0_16] : memref<32x32xbf16, #tpu.memory_space<vmem>>, vector<32x32xbf16>
    %c0_17 = arith.constant 0 : index
    %c0_18 = arith.constant 0 : index
    %19 = vector.load %arg11[%c0_17, %c0_18] : memref<2x16xf32, #tpu.memory_space<vmem>>, vector<2x16xf32>
    %c0_19 = arith.constant 0 : index
    %c0_20 = arith.constant 0 : index
    %20 = vector.load %arg12[%c0_19, %c0_20] : memref<2x32xf32, #tpu.memory_space<vmem>>, vector<2x32xf32>
    %c0_21 = arith.constant 0 : index
    %c0_22 = arith.constant 0 : index
    %21 = vector.load %arg2[%c0_21, %c0_22] : memref<32x32xf32, #tpu.memory_space<vmem>>, vector<32x32xf32>
    %c0_23 = arith.constant 0 : index
    %c0_24 = arith.constant 0 : index
    %22 = vector.load %arg13[%c0_23, %c0_24] : memref<32x128xbf16, #tpu.memory_space<vmem>>, vector<32x128xbf16>
    %c0_25 = arith.constant 0 : index
    %c0_26 = arith.constant 0 : index
    %23 = vector.load %arg14[%c0_25, %c0_26] : memref<1x128xf32, #tpu.memory_space<vmem>>, vector<1x128xf32>
    %24 = arith.truncf %17 : vector<32x32xf32> to vector<32x32xbf16>
    %cst_27 = arith.constant dense<0.000000e+00> : vector<32x32xf32>
    %25 = tpu.matmul %24, %18, %cst_27 {dimension_numbers = #tpu.dot_dimension_numbers<[1], [0], [0], [1], [0, 0, 1, 1], [], []>} : vector<32x32xbf16>, vector<32x32xbf16>, vector<32x32xf32> -> vector<32x32xf32>
    %cst_28 = arith.constant dense<0.000000e+00> : vector<2x32xf32>
    %26 = tpu.matmul %20, %25, %cst_28 {dimension_numbers = #tpu.dot_dimension_numbers<[1], [1], [0], [0], [0, 0, 1, 0], [], []>} : vector<2x32xf32>, vector<32x32xf32>, vector<2x32xf32> -> vector<2x32xf32>
    %cst_29 = arith.constant 0.000000e+00 : f32
    %27 = vector.broadcast %cst_29 : f32 to vector<32x128xf32>
    %28 = vector.extract_strided_slice %25 {offsets = [0, 0], sizes = [32, 16], strides = [1, 1]} : vector<32x32xf32> to vector<32x16xf32>
    %29 = vector.extract_strided_slice %19 {offsets = [0, 0], sizes = [1, 16], strides = [1, 1]} : vector<2x16xf32> to vector<1x16xf32>
    %30 = vector.broadcast %29 : vector<1x16xf32> to vector<32x16xf32>
    %31 = arith.mulf %28, %30 : vector<32x16xf32>
    %cst_30 = arith.constant dense<0.000000e+00> : vector<32xf32>
    %32 = vector.multi_reduction <add>, %31, %cst_30 [1] : vector<32x16xf32> to vector<32xf32>
    %33 = vector.shape_cast %32 : vector<32xf32> to vector<32x1xf32>
    %34 = vector.extract_strided_slice %26 {offsets = [0, 0], sizes = [1, 32], strides = [1, 1]} : vector<2x32xf32> to vector<1x32xf32>
    %35 = vector.broadcast %33 : vector<32x1xf32> to vector<32x32xf32>
    %36 = vector.broadcast %34 : vector<1x32xf32> to vector<32x32xf32>
    %37 = arith.addf %35, %36 : vector<32x32xf32>
    %cst_31 = arith.constant 0.000000e+00 : f32
    %38 = vector.broadcast %cst_31 : f32 to vector<32x32xf32>
    %39 = arith.cmpf ogt, %37, %38 : vector<32x32xf32>
    %cst_32 = arith.constant 2.000000e-01 : f32
    %40 = vector.broadcast %cst_32 : f32 to vector<32x32xf32>
    %41 = arith.mulf %40, %37 : vector<32x32xf32>
    %42 = arith.select %39, %37, %41 : vector<32x32xi1>, vector<32x32xf32>
    %cst_33 = arith.constant 0.000000e+00 : f32
    %43 = vector.broadcast %cst_33 : f32 to vector<32x32xf32>
    %44 = arith.cmpf ogt, %21, %43 : vector<32x32xf32>
    %cst_34 = arith.constant -1.000000e+30 : f32
    %45 = vector.broadcast %cst_34 : f32 to vector<32x32xf32>
    %46 = arith.select %44, %42, %45 : vector<32x32xi1>, vector<32x32xf32>
    %cst_35 = arith.constant dense<0xFF800000> : vector<32xf32>
    %47 = vector.multi_reduction <maximumf>, %46, %cst_35 [1] : vector<32x32xf32> to vector<32xf32>
    %48 = vector.shape_cast %47 : vector<32xf32> to vector<32x1xf32>
    %49 = vector.broadcast %48 : vector<32x1xf32> to vector<32x32xf32>
    %50 = arith.subf %46, %49 : vector<32x32xf32>
    %51 = math.exp %50 : vector<32x32xf32>
    %cst_36 = arith.constant dense<0.000000e+00> : vector<32xf32>
    %52 = vector.multi_reduction <add>, %51, %cst_36 [1] : vector<32x32xf32> to vector<32xf32>
    %53 = vector.shape_cast %52 : vector<32xf32> to vector<32x1xf32>
    %54 = vector.broadcast %53 : vector<32x1xf32> to vector<32x32xf32>
    %55 = arith.divf %51, %54 : vector<32x32xf32>
    %56 = arith.truncf %55 : vector<32x32xf32> to vector<32x32xbf16>
    %57 = arith.truncf %28 : vector<32x16xf32> to vector<32x16xbf16>
    %cst_37 = arith.constant dense<0.000000e+00> : vector<32x16xf32>
    %58 = tpu.matmul %56, %57, %cst_37 {dimension_numbers = #tpu.dot_dimension_numbers<[1], [0], [0], [1], [0, 0, 1, 1], [], []>} : vector<32x32xbf16>, vector<32x16xbf16>, vector<32x16xf32> -> vector<32x16xf32>
    %59 = arith.truncf %58 : vector<32x16xf32> to vector<32x16xbf16>
    %60 = vector.extract_strided_slice %22 {offsets = [0, 0], sizes = [16, 128], strides = [1, 1]} : vector<32x128xbf16> to vector<16x128xbf16>
    %cst_38 = arith.constant dense<0.000000e+00> : vector<32x128xf32>
    %61 = tpu.matmul %59, %60, %cst_38 {dimension_numbers = #tpu.dot_dimension_numbers<[1], [0], [0], [1], [0, 0, 1, 1], [], []>} : vector<32x16xbf16>, vector<16x128xbf16>, vector<32x128xf32> -> vector<32x128xf32>
    %62 = arith.addf %27, %61 : vector<32x128xf32>
    %63 = vector.extract_strided_slice %25 {offsets = [0, 16], sizes = [32, 16], strides = [1, 1]} : vector<32x32xf32> to vector<32x16xf32>
    %64 = vector.extract_strided_slice %19 {offsets = [1, 0], sizes = [1, 16], strides = [1, 1]} : vector<2x16xf32> to vector<1x16xf32>
    %65 = vector.broadcast %64 : vector<1x16xf32> to vector<32x16xf32>
    %66 = arith.mulf %63, %65 : vector<32x16xf32>
    %cst_39 = arith.constant dense<0.000000e+00> : vector<32xf32>
    %67 = vector.multi_reduction <add>, %66, %cst_39 [1] : vector<32x16xf32> to vector<32xf32>
    %68 = vector.shape_cast %67 : vector<32xf32> to vector<32x1xf32>
    %69 = vector.extract_strided_slice %26 {offsets = [1, 0], sizes = [1, 32], strides = [1, 1]} : vector<2x32xf32> to vector<1x32xf32>
    %70 = vector.broadcast %68 : vector<32x1xf32> to vector<32x32xf32>
    %71 = vector.broadcast %69 : vector<1x32xf32> to vector<32x32xf32>
    %72 = arith.addf %70, %71 : vector<32x32xf32>
    %cst_40 = arith.constant 0.000000e+00 : f32
    %73 = vector.broadcast %cst_40 : f32 to vector<32x32xf32>
    %74 = arith.cmpf ogt, %72, %73 : vector<32x32xf32>
    %cst_41 = arith.constant 2.000000e-01 : f32
    %75 = vector.broadcast %cst_41 : f32 to vector<32x32xf32>
    %76 = arith.mulf %75, %72 : vector<32x32xf32>
    %77 = arith.select %74, %72, %76 : vector<32x32xi1>, vector<32x32xf32>
    %cst_42 = arith.constant 0.000000e+00 : f32
    %78 = vector.broadcast %cst_42 : f32 to vector<32x32xf32>
    %79 = arith.cmpf ogt, %21, %78 : vector<32x32xf32>
    %cst_43 = arith.constant -1.000000e+30 : f32
    %80 = vector.broadcast %cst_43 : f32 to vector<32x32xf32>
    %81 = arith.select %79, %77, %80 : vector<32x32xi1>, vector<32x32xf32>
    %cst_44 = arith.constant dense<0xFF800000> : vector<32xf32>
    %82 = vector.multi_reduction <maximumf>, %81, %cst_44 [1] : vector<32x32xf32> to vector<32xf32>
    %83 = vector.shape_cast %82 : vector<32xf32> to vector<32x1xf32>
    %84 = vector.broadcast %83 : vector<32x1xf32> to vector<32x32xf32>
    %85 = arith.subf %81, %84 : vector<32x32xf32>
    %86 = math.exp %85 : vector<32x32xf32>
    %cst_45 = arith.constant dense<0.000000e+00> : vector<32xf32>
    %87 = vector.multi_reduction <add>, %86, %cst_45 [1] : vector<32x32xf32> to vector<32xf32>
    %88 = vector.shape_cast %87 : vector<32xf32> to vector<32x1xf32>
    %89 = vector.broadcast %88 : vector<32x1xf32> to vector<32x32xf32>
    %90 = arith.divf %86, %89 : vector<32x32xf32>
    %91 = arith.truncf %90 : vector<32x32xf32> to vector<32x32xbf16>
    %92 = arith.truncf %63 : vector<32x16xf32> to vector<32x16xbf16>
    %cst_46 = arith.constant dense<0.000000e+00> : vector<32x16xf32>
    %93 = tpu.matmul %91, %92, %cst_46 {dimension_numbers = #tpu.dot_dimension_numbers<[1], [0], [0], [1], [0, 0, 1, 1], [], []>} : vector<32x32xbf16>, vector<32x16xbf16>, vector<32x16xf32> -> vector<32x16xf32>
    %94 = arith.truncf %93 : vector<32x16xf32> to vector<32x16xbf16>
    %95 = vector.extract_strided_slice %22 {offsets = [16, 0], sizes = [16, 128], strides = [1, 1]} : vector<32x128xbf16> to vector<16x128xbf16>
    %cst_47 = arith.constant dense<0.000000e+00> : vector<32x128xf32>
    %96 = tpu.matmul %94, %95, %cst_47 {dimension_numbers = #tpu.dot_dimension_numbers<[1], [0], [0], [1], [0, 0, 1, 1], [], []>} : vector<32x16xbf16>, vector<16x128xbf16>, vector<32x128xf32> -> vector<32x128xf32>
    %97 = arith.addf %62, %96 : vector<32x128xf32>
    %98 = vector.broadcast %23 : vector<1x128xf32> to vector<32x128xf32>
    %99 = arith.addf %97, %98 : vector<32x128xf32>
    %100 = vector.extract_strided_slice %99 {offsets = [0, 0], sizes = [2, 16], strides = [1, 1]} : vector<32x128xf32> to vector<2x16xf32>
    %101 = vector.extract_strided_slice %99 {offsets = [2, 0], sizes = [2, 16], strides = [1, 1]} : vector<32x128xf32> to vector<2x16xf32>
    %102 = vector.extract_strided_slice %99 {offsets = [4, 0], sizes = [2, 16], strides = [1, 1]} : vector<32x128xf32> to vector<2x16xf32>
    %103 = vector.extract_strided_slice %99 {offsets = [6, 0], sizes = [2, 16], strides = [1, 1]} : vector<32x128xf32> to vector<2x16xf32>
    %104 = vector.extract_strided_slice %99 {offsets = [8, 0], sizes = [2, 16], strides = [1, 1]} : vector<32x128xf32> to vector<2x16xf32>
    %105 = vector.extract_strided_slice %99 {offsets = [10, 0], sizes = [2, 16], strides = [1, 1]} : vector<32x128xf32> to vector<2x16xf32>
    %106 = vector.extract_strided_slice %99 {offsets = [12, 0], sizes = [2, 16], strides = [1, 1]} : vector<32x128xf32> to vector<2x16xf32>
    %107 = vector.extract_strided_slice %99 {offsets = [14, 0], sizes = [2, 16], strides = [1, 1]} : vector<32x128xf32> to vector<2x16xf32>
    %108 = vector.extract_strided_slice %99 {offsets = [16, 0], sizes = [2, 16], strides = [1, 1]} : vector<32x128xf32> to vector<2x16xf32>
    %109 = vector.extract_strided_slice %99 {offsets = [18, 0], sizes = [2, 16], strides = [1, 1]} : vector<32x128xf32> to vector<2x16xf32>
    %110 = vector.extract_strided_slice %99 {offsets = [20, 0], sizes = [2, 16], strides = [1, 1]} : vector<32x128xf32> to vector<2x16xf32>
    %111 = vector.extract_strided_slice %99 {offsets = [22, 0], sizes = [2, 16], strides = [1, 1]} : vector<32x128xf32> to vector<2x16xf32>
    %112 = vector.extract_strided_slice %99 {offsets = [24, 0], sizes = [2, 16], strides = [1, 1]} : vector<32x128xf32> to vector<2x16xf32>
    %113 = vector.extract_strided_slice %99 {offsets = [26, 0], sizes = [2, 16], strides = [1, 1]} : vector<32x128xf32> to vector<2x16xf32>
    %114 = vector.extract_strided_slice %99 {offsets = [28, 0], sizes = [2, 16], strides = [1, 1]} : vector<32x128xf32> to vector<2x16xf32>
    %115 = vector.extract_strided_slice %99 {offsets = [30, 0], sizes = [2, 16], strides = [1, 1]} : vector<32x128xf32> to vector<2x16xf32>
    %116 = tpu.concatenate %100, %101, %102, %103, %104, %105, %106, %107, %108, %109, %110, %111, %112, %113, %114, %115 in 1 : vector<2x16xf32>, vector<2x16xf32>, vector<2x16xf32>, vector<2x16xf32>, vector<2x16xf32>, vector<2x16xf32>, vector<2x16xf32>, vector<2x16xf32>, vector<2x16xf32>, vector<2x16xf32>, vector<2x16xf32>, vector<2x16xf32>, vector<2x16xf32>, vector<2x16xf32>, vector<2x16xf32>, vector<2x16xf32> -> vector<2x256xf32>
    %c0_48 = arith.constant 0 : index
    %c0_49 = arith.constant 0 : index
    %117 = vector.load %arg29[%c0_48, %c0_49] : memref<16x256xf32, #tpu.memory_space<vmem>>, vector<2x256xf32>
    tpu.vector_store %arg29[%c0_48, %c0_49], %116 {strides = array<i32>} : memref<16x256xf32, #tpu.memory_space<vmem>>, vector<2x256xf32>,
    %118 = vector.extract_strided_slice %99 {offsets = [0, 16], sizes = [2, 16], strides = [1, 1]} : vector<32x128xf32> to vector<2x16xf32>
    %119 = vector.extract_strided_slice %99 {offsets = [2, 16], sizes = [2, 16], strides = [1, 1]} : vector<32x128xf32> to vector<2x16xf32>
    %120 = vector.extract_strided_slice %99 {offsets = [4, 16], sizes = [2, 16], strides = [1, 1]} : vector<32x128xf32> to vector<2x16xf32>
    %121 = vector.extract_strided_slice %99 {offsets = [6, 16], sizes = [2, 16], strides = [1, 1]} : vector<32x128xf32> to vector<2x16xf32>
    %122 = vector.extract_strided_slice %99 {offsets = [8, 16], sizes = [2, 16], strides = [1, 1]} : vector<32x128xf32> to vector<2x16xf32>
    %123 = vector.extract_strided_slice %99 {offsets = [10, 16], sizes = [2, 16], strides = [1, 1]} : vector<32x128xf32> to vector<2x16xf32>
    %124 = vector.extract_strided_slice %99 {offsets = [12, 16], sizes = [2, 16], strides = [1, 1]} : vector<32x128xf32> to vector<2x16xf32>
    %125 = vector.extract_strided_slice %99 {offsets = [14, 16], sizes = [2, 16], strides = [1, 1]} : vector<32x128xf32> to vector<2x16xf32>
    %126 = vector.extract_strided_slice %99 {offsets = [16, 16], sizes = [2, 16], strides = [1, 1]} : vector<32x128xf32> to vector<2x16xf32>
    %127 = vector.extract_strided_slice %99 {offsets = [18, 16], sizes = [2, 16], strides = [1, 1]} : vector<32x128xf32> to vector<2x16xf32>
    %128 = vector.extract_strided_slice %99 {offsets = [20, 16], sizes = [2, 16], strides = [1, 1]} : vector<32x128xf32> to vector<2x16xf32>
    %129 = vector.extract_strided_slice %99 {offsets = [22, 16], sizes = [2, 16], strides = [1, 1]} : vector<32x128xf32> to vector<2x16xf32>
    %130 = vector.extract_strided_slice %99 {offsets = [24, 16], sizes = [2, 16], strides = [1, 1]} : vector<32x128xf32> to vector<2x16xf32>
    %131 = vector.extract_strided_slice %99 {offsets = [26, 16], sizes = [2, 16], strides = [1, 1]} : vector<32x128xf32> to vector<2x16xf32>
    %132 = vector.extract_strided_slice %99 {offsets = [28, 16], sizes = [2, 16], strides = [1, 1]} : vector<32x128xf32> to vector<2x16xf32>
    %133 = vector.extract_strided_slice %99 {offsets = [30, 16], sizes = [2, 16], strides = [1, 1]} : vector<32x128xf32> to vector<2x16xf32>
    %134 = tpu.concatenate %118, %119, %120, %121, %122, %123, %124, %125, %126, %127, %128, %129, %130, %131, %132, %133 in 1 : vector<2x16xf32>, vector<2x16xf32>, vector<2x16xf32>, vector<2x16xf32>, vector<2x16xf32>, vector<2x16xf32>, vector<2x16xf32>, vector<2x16xf32>, vector<2x16xf32>, vector<2x16xf32>, vector<2x16xf32>, vector<2x16xf32>, vector<2x16xf32>, vector<2x16xf32>, vector<2x16xf32>, vector<2x16xf32> -> vector<2x256xf32>
    %c2 = arith.constant 2 : index
    %c0_50 = arith.constant 0 : index
    %135 = vector.load %arg29[%c2, %c0_50] : memref<16x256xf32, #tpu.memory_space<vmem>>, vector<2x256xf32>
    tpu.vector_store %arg29[%c2, %c0_50], %134 {strides = array<i32>} : memref<16x256xf32, #tpu.memory_space<vmem>>, vector<2x256xf32>,
    %136 = vector.extract_strided_slice %99 {offsets = [0, 32], sizes = [2, 16], strides = [1, 1]} : vector<32x128xf32> to vector<2x16xf32>
    %137 = vector.extract_strided_slice %99 {offsets = [2, 32], sizes = [2, 16], strides = [1, 1]} : vector<32x128xf32> to vector<2x16xf32>
    %138 = vector.extract_strided_slice %99 {offsets = [4, 32], sizes = [2, 16], strides = [1, 1]} : vector<32x128xf32> to vector<2x16xf32>
    %139 = vector.extract_strided_slice %99 {offsets = [6, 32], sizes = [2, 16], strides = [1, 1]} : vector<32x128xf32> to vector<2x16xf32>
    %140 = vector.extract_strided_slice %99 {offsets = [8, 32], sizes = [2, 16], strides = [1, 1]} : vector<32x128xf32> to vector<2x16xf32>
    %141 = vector.extract_strided_slice %99 {offsets = [10, 32], sizes = [2, 16], strides = [1, 1]} : vector<32x128xf32> to vector<2x16xf32>
    %142 = vector.extract_strided_slice %99 {offsets = [12, 32], sizes = [2, 16], strides = [1, 1]} : vector<32x128xf32> to vector<2x16xf32>
    %143 = vector.extract_strided_slice %99 {offsets = [14, 32], sizes = [2, 16], strides = [1, 1]} : vector<32x128xf32> to vector<2x16xf32>
    %144 = vector.extract_strided_slice %99 {offsets = [16, 32], sizes = [2, 16], strides = [1, 1]} : vector<32x128xf32> to vector<2x16xf32>
    %145 = vector.extract_strided_slice %99 {offsets = [18, 32], sizes = [2, 16], strides = [1, 1]} : vector<32x128xf32> to vector<2x16xf32>
    %146 = vector.extract_strided_slice %99 {offsets = [20, 32], sizes = [2, 16], strides = [1, 1]} : vector<32x128xf32> to vector<2x16xf32>
    %147 = vector.extract_strided_slice %99 {offsets = [22, 32], sizes = [2, 16], strides = [1, 1]} : vector<32x128xf32> to vector<2x16xf32>
    %148 = vector.extract_strided_slice %99 {offsets = [24, 32], sizes = [2, 16], strides = [1, 1]} : vector<32x128xf32> to vector<2x16xf32>
    %149 = vector.extract_strided_slice %99 {offsets = [26, 32], sizes = [2, 16], strides = [1, 1]} : vector<32x128xf32> to vector<2x16xf32>
    %150 = vector.extract_strided_slice %99 {offsets = [28, 32], sizes = [2, 16], strides = [1, 1]} : vector<32x128xf32> to vector<2x16xf32>
    %151 = vector.extract_strided_slice %99 {offsets = [30, 32], sizes = [2, 16], strides = [1, 1]} : vector<32x128xf32> to vector<2x16xf32>
    %152 = tpu.concatenate %136, %137, %138, %139, %140, %141, %142, %143, %144, %145, %146, %147, %148, %149, %150, %151 in 1 : vector<2x16xf32>, vector<2x16xf32>, vector<2x16xf32>, vector<2x16xf32>, vector<2x16xf32>, vector<2x16xf32>, vector<2x16xf32>, vector<2x16xf32>, vector<2x16xf32>, vector<2x16xf32>, vector<2x16xf32>, vector<2x16xf32>, vector<2x16xf32>, vector<2x16xf32>, vector<2x16xf32>, vector<2x16xf32> -> vector<2x256xf32>
    %c4 = arith.constant 4 : index
    %c0_51 = arith.constant 0 : index
    %153 = vector.load %arg29[%c4, %c0_51] : memref<16x256xf32, #tpu.memory_space<vmem>>, vector<2x256xf32>
    tpu.vector_store %arg29[%c4, %c0_51], %152 {strides = array<i32>} : memref<16x256xf32, #tpu.memory_space<vmem>>, vector<2x256xf32>,
    %154 = vector.extract_strided_slice %99 {offsets = [0, 48], sizes = [2, 16], strides = [1, 1]} : vector<32x128xf32> to vector<2x16xf32>
    %155 = vector.extract_strided_slice %99 {offsets = [2, 48], sizes = [2, 16], strides = [1, 1]} : vector<32x128xf32> to vector<2x16xf32>
    %156 = vector.extract_strided_slice %99 {offsets = [4, 48], sizes = [2, 16], strides = [1, 1]} : vector<32x128xf32> to vector<2x16xf32>
    %157 = vector.extract_strided_slice %99 {offsets = [6, 48], sizes = [2, 16], strides = [1, 1]} : vector<32x128xf32> to vector<2x16xf32>
    %158 = vector.extract_strided_slice %99 {offsets = [8, 48], sizes = [2, 16], strides = [1, 1]} : vector<32x128xf32> to vector<2x16xf32>
    %159 = vector.extract_strided_slice %99 {offsets = [10, 48], sizes = [2, 16], strides = [1, 1]} : vector<32x128xf32> to vector<2x16xf32>
    %160 = vector.extract_strided_slice %99 {offsets = [12, 48], sizes = [2, 16], strides = [1, 1]} : vector<32x128xf32> to vector<2x16xf32>
    %161 = vector.extract_strided_slice %99 {offsets = [14, 48], sizes = [2, 16], strides = [1, 1]} : vector<32x128xf32> to vector<2x16xf32>
    %162 = vector.extract_strided_slice %99 {offsets = [16, 48], sizes = [2, 16], strides = [1, 1]} : vector<32x128xf32> to vector<2x16xf32>
    %163 = vector.extract_strided_slice %99 {offsets = [18, 48], sizes = [2, 16], strides = [1, 1]} : vector<32x128xf32> to vector<2x16xf32>
    %164 = vector.extract_strided_slice %99 {offsets = [20, 48], sizes = [2, 16], strides = [1, 1]} : vector<32x128xf32> to vector<2x16xf32>
    %165 = vector.extract_strided_slice %99 {offsets = [22, 48], sizes = [2, 16], strides = [1, 1]} : vector<32x128xf32> to vector<2x16xf32>
    %166 = vector.extract_strided_slice %99 {offsets = [24, 48], sizes = [2, 16], strides = [1, 1]} : vector<32x128xf32> to vector<2x16xf32>
    %167 = vector.extract_strided_slice %99 {offsets = [26, 48], sizes = [2, 16], strides = [1, 1]} : vector<32x128xf32> to vector<2x16xf32>
    %168 = vector.extract_strided_slice %99 {offsets = [28, 48], sizes = [2, 16], strides = [1, 1]} : vector<32x128xf32> to vector<2x16xf32>
    %169 = vector.extract_strided_slice %99 {offsets = [30, 48], sizes = [2, 16], strides = [1, 1]} : vector<32x128xf32> to vector<2x16xf32>
    %170 = tpu.concatenate %154, %155, %156, %157, %158, %159, %160, %161, %162, %163, %164, %165, %166, %167, %168, %169 in 1 : vector<2x16xf32>, vector<2x16xf32>, vector<2x16xf32>, vector<2x16xf32>, vector<2x16xf32>, vector<2x16xf32>, vector<2x16xf32>, vector<2x16xf32>, vector<2x16xf32>, vector<2x16xf32>, vector<2x16xf32>, vector<2x16xf32>, vector<2x16xf32>, vector<2x16xf32>, vector<2x16xf32>, vector<2x16xf32> -> vector<2x256xf32>
    %c6 = arith.constant 6 : index
    %c0_52 = arith.constant 0 : index
    %171 = vector.load %arg29[%c6, %c0_52] : memref<16x256xf32, #tpu.memory_space<vmem>>, vector<2x256xf32>
    tpu.vector_store %arg29[%c6, %c0_52], %170 {strides = array<i32>} : memref<16x256xf32, #tpu.memory_space<vmem>>, vector<2x256xf32>,
    %172 = vector.extract_strided_slice %99 {offsets = [0, 64], sizes = [2, 16], strides = [1, 1]} : vector<32x128xf32> to vector<2x16xf32>
    %173 = vector.extract_strided_slice %99 {offsets = [2, 64], sizes = [2, 16], strides = [1, 1]} : vector<32x128xf32> to vector<2x16xf32>
    %174 = vector.extract_strided_slice %99 {offsets = [4, 64], sizes = [2, 16], strides = [1, 1]} : vector<32x128xf32> to vector<2x16xf32>
    %175 = vector.extract_strided_slice %99 {offsets = [6, 64], sizes = [2, 16], strides = [1, 1]} : vector<32x128xf32> to vector<2x16xf32>
    %176 = vector.extract_strided_slice %99 {offsets = [8, 64], sizes = [2, 16], strides = [1, 1]} : vector<32x128xf32> to vector<2x16xf32>
    %177 = vector.extract_strided_slice %99 {offsets = [10, 64], sizes = [2, 16], strides = [1, 1]} : vector<32x128xf32> to vector<2x16xf32>
    %178 = vector.extract_strided_slice %99 {offsets = [12, 64], sizes = [2, 16], strides = [1, 1]} : vector<32x128xf32> to vector<2x16xf32>
    %179 = vector.extract_strided_slice %99 {offsets = [14, 64], sizes = [2, 16], strides = [1, 1]} : vector<32x128xf32> to vector<2x16xf32>
    %180 = vector.extract_strided_slice %99 {offsets = [16, 64], sizes = [2, 16], strides = [1, 1]} : vector<32x128xf32> to vector<2x16xf32>
    %181 = vector.extract_strided_slice %99 {offsets = [18, 64], sizes = [2, 16], strides = [1, 1]} : vector<32x128xf32> to vector<2x16xf32>
    %182 = vector.extract_strided_slice %99 {offsets = [20, 64], sizes = [2, 16], strides = [1, 1]} : vector<32x128xf32> to vector<2x16xf32>
    %183 = vector.extract_strided_slice %99 {offsets = [22, 64], sizes = [2, 16], strides = [1, 1]} : vector<32x128xf32> to vector<2x16xf32>
    %184 = vector.extract_strided_slice %99 {offsets = [24, 64], sizes = [2, 16], strides = [1, 1]} : vector<32x128xf32> to vector<2x16xf32>
    %185 = vector.extract_strided_slice %99 {offsets = [26, 64], sizes = [2, 16], strides = [1, 1]} : vector<32x128xf32> to vector<2x16xf32>
    %186 = vector.extract_strided_slice %99 {offsets = [28, 64], sizes = [2, 16], strides = [1, 1]} : vector<32x128xf32> to vector<2x16xf32>
    %187 = vector.extract_strided_slice %99 {offsets = [30, 64], sizes = [2, 16], strides = [1, 1]} : vector<32x128xf32> to vector<2x16xf32>
    %188 = tpu.concatenate %172, %173, %174, %175, %176, %177, %178, %179, %180, %181, %182, %183, %184, %185, %186, %187 in 1 : vector<2x16xf32>, vector<2x16xf32>, vector<2x16xf32>, vector<2x16xf32>, vector<2x16xf32>, vector<2x16xf32>, vector<2x16xf32>, vector<2x16xf32>, vector<2x16xf32>, vector<2x16xf32>, vector<2x16xf32>, vector<2x16xf32>, vector<2x16xf32>, vector<2x16xf32>, vector<2x16xf32>, vector<2x16xf32> -> vector<2x256xf32>
    %c8 = arith.constant 8 : index
    %c0_53 = arith.constant 0 : index
    %189 = vector.load %arg29[%c8, %c0_53] : memref<16x256xf32, #tpu.memory_space<vmem>>, vector<2x256xf32>
    tpu.vector_store %arg29[%c8, %c0_53], %188 {strides = array<i32>} : memref<16x256xf32, #tpu.memory_space<vmem>>, vector<2x256xf32>,
    %190 = vector.extract_strided_slice %99 {offsets = [0, 80], sizes = [2, 16], strides = [1, 1]} : vector<32x128xf32> to vector<2x16xf32>
    %191 = vector.extract_strided_slice %99 {offsets = [2, 80], sizes = [2, 16], strides = [1, 1]} : vector<32x128xf32> to vector<2x16xf32>
    %192 = vector.extract_strided_slice %99 {offsets = [4, 80], sizes = [2, 16], strides = [1, 1]} : vector<32x128xf32> to vector<2x16xf32>
    %193 = vector.extract_strided_slice %99 {offsets = [6, 80], sizes = [2, 16], strides = [1, 1]} : vector<32x128xf32> to vector<2x16xf32>
    %194 = vector.extract_strided_slice %99 {offsets = [8, 80], sizes = [2, 16], strides = [1, 1]} : vector<32x128xf32> to vector<2x16xf32>
    %195 = vector.extract_strided_slice %99 {offsets = [10, 80], sizes = [2, 16], strides = [1, 1]} : vector<32x128xf32> to vector<2x16xf32>
    %196 = vector.extract_strided_slice %99 {offsets = [12, 80], sizes = [2, 16], strides = [1, 1]} : vector<32x128xf32> to vector<2x16xf32>
    %197 = vector.extract_strided_slice %99 {offsets = [14, 80], sizes = [2, 16], strides = [1, 1]} : vector<32x128xf32> to vector<2x16xf32>
    %198 = vector.extract_strided_slice %99 {offsets = [16, 80], sizes = [2, 16], strides = [1, 1]} : vector<32x128xf32> to vector<2x16xf32>
    %199 = vector.extract_strided_slice %99 {offsets = [18, 80], sizes = [2, 16], strides = [1, 1]} : vector<32x128xf32> to vector<2x16xf32>
    %200 = vector.extract_strided_slice %99 {offsets = [20, 80], sizes = [2, 16], strides = [1, 1]} : vector<32x128xf32> to vector<2x16xf32>
    %201 = vector.extract_strided_slice %99 {offsets = [22, 80], sizes = [2, 16], strides = [1, 1]} : vector<32x128xf32> to vector<2x16xf32>
    %202 = vector.extract_strided_slice %99 {offsets = [24, 80], sizes = [2, 16], strides = [1, 1]} : vector<32x128xf32> to vector<2x16xf32>
    %203 = vector.extract_strided_slice %99 {offsets = [26, 80], sizes = [2, 16], strides = [1, 1]} : vector<32x128xf32> to vector<2x16xf32>
    %204 = vector.extract_strided_slice %99 {offsets = [28, 80], sizes = [2, 16], strides = [1, 1]} : vector<32x128xf32> to vector<2x16xf32>
    %205 = vector.extract_strided_slice %99 {offsets = [30, 80], sizes = [2, 16], strides = [1, 1]} : vector<32x128xf32> to vector<2x16xf32>
    %206 = tpu.concatenate %190, %191, %192, %193, %194, %195, %196, %197, %198, %199, %200, %201, %202, %203, %204, %205 in 1 : vector<2x16xf32>, vector<2x16xf32>, vector<2x16xf32>, vector<2x16xf32>, vector<2x16xf32>, vector<2x16xf32>, vector<2x16xf32>, vector<2x16xf32>, vector<2x16xf32>, vector<2x16xf32>, vector<2x16xf32>, vector<2x16xf32>, vector<2x16xf32>, vector<2x16xf32>, vector<2x16xf32>, vector<2x16xf32> -> vector<2x256xf32>
    %c10 = arith.constant 10 : index
    %c0_54 = arith.constant 0 : index
    %207 = vector.load %arg29[%c10, %c0_54] : memref<16x256xf32, #tpu.memory_space<vmem>>, vector<2x256xf32>
    tpu.vector_store %arg29[%c10, %c0_54], %206 {strides = array<i32>} : memref<16x256xf32, #tpu.memory_space<vmem>>, vector<2x256xf32>,
    %208 = vector.extract_strided_slice %99 {offsets = [0, 96], sizes = [2, 16], strides = [1, 1]} : vector<32x128xf32> to vector<2x16xf32>
    %209 = vector.extract_strided_slice %99 {offsets = [2, 96], sizes = [2, 16], strides = [1, 1]} : vector<32x128xf32> to vector<2x16xf32>
    %210 = vector.extract_strided_slice %99 {offsets = [4, 96], sizes = [2, 16], strides = [1, 1]} : vector<32x128xf32> to vector<2x16xf32>
    %211 = vector.extract_strided_slice %99 {offsets = [6, 96], sizes = [2, 16], strides = [1, 1]} : vector<32x128xf32> to vector<2x16xf32>
    %212 = vector.extract_strided_slice %99 {offsets = [8, 96], sizes = [2, 16], strides = [1, 1]} : vector<32x128xf32> to vector<2x16xf32>
    %213 = vector.extract_strided_slice %99 {offsets = [10, 96], sizes = [2, 16], strides = [1, 1]} : vector<32x128xf32> to vector<2x16xf32>
    %214 = vector.extract_strided_slice %99 {offsets = [12, 96], sizes = [2, 16], strides = [1, 1]} : vector<32x128xf32> to vector<2x16xf32>
    %215 = vector.extract_strided_slice %99 {offsets = [14, 96], sizes = [2, 16], strides = [1, 1]} : vector<32x128xf32> to vector<2x16xf32>
    %216 = vector.extract_strided_slice %99 {offsets = [16, 96], sizes = [2, 16], strides = [1, 1]} : vector<32x128xf32> to vector<2x16xf32>
    %217 = vector.extract_strided_slice %99 {offsets = [18, 96], sizes = [2, 16], strides = [1, 1]} : vector<32x128xf32> to vector<2x16xf32>
    %218 = vector.extract_strided_slice %99 {offsets = [20, 96], sizes = [2, 16], strides = [1, 1]} : vector<32x128xf32> to vector<2x16xf32>
    %219 = vector.extract_strided_slice %99 {offsets = [22, 96], sizes = [2, 16], strides = [1, 1]} : vector<32x128xf32> to vector<2x16xf32>
    %220 = vector.extract_strided_slice %99 {offsets = [24, 96], sizes = [2, 16], strides = [1, 1]} : vector<32x128xf32> to vector<2x16xf32>
    %221 = vector.extract_strided_slice %99 {offsets = [26, 96], sizes = [2, 16], strides = [1, 1]} : vector<32x128xf32> to vector<2x16xf32>
    %222 = vector.extract_strided_slice %99 {offsets = [28, 96], sizes = [2, 16], strides = [1, 1]} : vector<32x128xf32> to vector<2x16xf32>
    %223 = vector.extract_strided_slice %99 {offsets = [30, 96], sizes = [2, 16], strides = [1, 1]} : vector<32x128xf32> to vector<2x16xf32>
    %224 = tpu.concatenate %208, %209, %210, %211, %212, %213, %214, %215, %216, %217, %218, %219, %220, %221, %222, %223 in 1 : vector<2x16xf32>, vector<2x16xf32>, vector<2x16xf32>, vector<2x16xf32>, vector<2x16xf32>, vector<2x16xf32>, vector<2x16xf32>, vector<2x16xf32>, vector<2x16xf32>, vector<2x16xf32>, vector<2x16xf32>, vector<2x16xf32>, vector<2x16xf32>, vector<2x16xf32>, vector<2x16xf32>, vector<2x16xf32> -> vector<2x256xf32>
    %c12 = arith.constant 12 : index
    %c0_55 = arith.constant 0 : index
    %225 = vector.load %arg29[%c12, %c0_55] : memref<16x256xf32, #tpu.memory_space<vmem>>, vector<2x256xf32>
    tpu.vector_store %arg29[%c12, %c0_55], %224 {strides = array<i32>} : memref<16x256xf32, #tpu.memory_space<vmem>>, vector<2x256xf32>,
    %226 = vector.extract_strided_slice %99 {offsets = [0, 112], sizes = [2, 16], strides = [1, 1]} : vector<32x128xf32> to vector<2x16xf32>
    %227 = vector.extract_strided_slice %99 {offsets = [2, 112], sizes = [2, 16], strides = [1, 1]} : vector<32x128xf32> to vector<2x16xf32>
    %228 = vector.extract_strided_slice %99 {offsets = [4, 112], sizes = [2, 16], strides = [1, 1]} : vector<32x128xf32> to vector<2x16xf32>
    %229 = vector.extract_strided_slice %99 {offsets = [6, 112], sizes = [2, 16], strides = [1, 1]} : vector<32x128xf32> to vector<2x16xf32>
    %230 = vector.extract_strided_slice %99 {offsets = [8, 112], sizes = [2, 16], strides = [1, 1]} : vector<32x128xf32> to vector<2x16xf32>
    %231 = vector.extract_strided_slice %99 {offsets = [10, 112], sizes = [2, 16], strides = [1, 1]} : vector<32x128xf32> to vector<2x16xf32>
    %232 = vector.extract_strided_slice %99 {offsets = [12, 112], sizes = [2, 16], strides = [1, 1]} : vector<32x128xf32> to vector<2x16xf32>
    %233 = vector.extract_strided_slice %99 {offsets = [14, 112], sizes = [2, 16], strides = [1, 1]} : vector<32x128xf32> to vector<2x16xf32>
    %234 = vector.extract_strided_slice %99 {offsets = [16, 112], sizes = [2, 16], strides = [1, 1]} : vector<32x128xf32> to vector<2x16xf32>
    %235 = vector.extract_strided_slice %99 {offsets = [18, 112], sizes = [2, 16], strides = [1, 1]} : vector<32x128xf32> to vector<2x16xf32>
    %236 = vector.extract_strided_slice %99 {offsets = [20, 112], sizes = [2, 16], strides = [1, 1]} : vector<32x128xf32> to vector<2x16xf32>
    %237 = vector.extract_strided_slice %99 {offsets = [22, 112], sizes = [2, 16], strides = [1, 1]} : vector<32x128xf32> to vector<2x16xf32>
    %238 = vector.extract_strided_slice %99 {offsets = [24, 112], sizes = [2, 16], strides = [1, 1]} : vector<32x128xf32> to vector<2x16xf32>
    %239 = vector.extract_strided_slice %99 {offsets = [26, 112], sizes = [2, 16], strides = [1, 1]} : vector<32x128xf32> to vector<2x16xf32>
    %240 = vector.extract_strided_slice %99 {offsets = [28, 112], sizes = [2, 16], strides = [1, 1]} : vector<32x128xf32> to vector<2x16xf32>
    %241 = vector.extract_strided_slice %99 {offsets = [30, 112], sizes = [2, 16], strides = [1, 1]} : vector<32x128xf32> to vector<2x16xf32>
    %242 = tpu.concatenate %226, %227, %228, %229, %230, %231, %232, %233, %234, %235, %236, %237, %238, %239, %240, %241 in 1 : vector<2x16xf32>, vector<2x16xf32>, vector<2x16xf32>, vector<2x16xf32>, vector<2x16xf32>, vector<2x16xf32>, vector<2x16xf32>, vector<2x16xf32>, vector<2x16xf32>, vector<2x16xf32>, vector<2x16xf32>, vector<2x16xf32>, vector<2x16xf32>, vector<2x16xf32>, vector<2x16xf32>, vector<2x16xf32> -> vector<2x256xf32>
    %c14 = arith.constant 14 : index
    %c0_56 = arith.constant 0 : index
    %243 = vector.load %arg29[%c14, %c0_56] : memref<16x256xf32, #tpu.memory_space<vmem>>, vector<2x256xf32>
    tpu.vector_store %arg29[%c14, %c0_56], %242 {strides = array<i32>} : memref<16x256xf32, #tpu.memory_space<vmem>>, vector<2x256xf32>,
    %c0_57 = arith.constant 0 : index
    %c0_58 = arith.constant 0 : index
    %244 = vector.load %arg29[%c0_57, %c0_58] : memref<16x256xf32, #tpu.memory_space<vmem>>, vector<16x256xf32>
    %245 = arith.truncf %244 : vector<16x256xf32> to vector<16x256xbf16>
    %c0_59 = arith.constant 0 : index
    %c0_60 = arith.constant 0 : index
    %246 = vector.load %arg15[%c0_59, %c0_60] : memref<256x32xbf16, #tpu.memory_space<vmem>>, vector<256x32xbf16>
    %cst_61 = arith.constant dense<0.000000e+00> : vector<16x32xf32>
    %247 = tpu.matmul %245, %246, %cst_61 {dimension_numbers = #tpu.dot_dimension_numbers<[1], [0], [0], [1], [0, 0, 1, 1], [], []>} : vector<16x256xbf16>, vector<256x32xbf16>, vector<16x32xf32> -> vector<16x32xf32>
    %c0_62 = arith.constant 0 : index
    %c0_63 = arith.constant 0 : index
    %248 = vector.load %arg16[%c0_62, %c0_63] : memref<1x32xf32, #tpu.memory_space<vmem>>, vector<1x32xf32>
    %249 = vector.broadcast %248 : vector<1x32xf32> to vector<16x32xf32>
    %250 = arith.addf %247, %249 : vector<16x32xf32>
    %c0_64 = arith.constant 0 : index
    %c0_65 = arith.constant 0 : index
    %251 = vector.load %arg17[%c0_64, %c0_65] : memref<32x32xbf16, #tpu.memory_space<vmem>>, vector<32x32xbf16>
    %c0_66 = arith.constant 0 : index
    %c0_67 = arith.constant 0 : index
    %252 = vector.load %arg18[%c0_66, %c0_67] : memref<2x16xf32, #tpu.memory_space<vmem>>, vector<2x16xf32>
    %c0_68 = arith.constant 0 : index
    %c0_69 = arith.constant 0 : index
    %253 = vector.load %arg19[%c0_68, %c0_69] : memref<2x32xf32, #tpu.memory_space<vmem>>, vector<2x32xf32>
    %c0_70 = arith.constant 0 : index
    %c0_71 = arith.constant 0 : index
    %254 = vector.load %arg3[%c0_70, %c0_71] : memref<16x16xf32, #tpu.memory_space<vmem>>, vector<16x16xf32>
    %c0_72 = arith.constant 0 : index
    %c0_73 = arith.constant 0 : index
    %255 = vector.load %arg20[%c0_72, %c0_73] : memref<32x256xbf16, #tpu.memory_space<vmem>>, vector<32x256xbf16>
    %c0_74 = arith.constant 0 : index
    %c0_75 = arith.constant 0 : index
    %256 = vector.load %arg21[%c0_74, %c0_75] : memref<1x256xf32, #tpu.memory_space<vmem>>, vector<1x256xf32>
    %257 = arith.truncf %250 : vector<16x32xf32> to vector<16x32xbf16>
    %cst_76 = arith.constant dense<0.000000e+00> : vector<16x32xf32>
    %258 = tpu.matmul %257, %251, %cst_76 {dimension_numbers = #tpu.dot_dimension_numbers<[1], [0], [0], [1], [0, 0, 1, 1], [], []>} : vector<16x32xbf16>, vector<32x32xbf16>, vector<16x32xf32> -> vector<16x32xf32>
    %cst_77 = arith.constant dense<0.000000e+00> : vector<2x16xf32>
    %259 = tpu.matmul %253, %258, %cst_77 {dimension_numbers = #tpu.dot_dimension_numbers<[1], [1], [0], [0], [0, 0, 1, 0], [], []>} : vector<2x32xf32>, vector<16x32xf32>, vector<2x16xf32> -> vector<2x16xf32>
    %cst_78 = arith.constant 0.000000e+00 : f32
    %260 = vector.broadcast %cst_78 : f32 to vector<16x256xf32>
    %261 = vector.extract_strided_slice %258 {offsets = [0, 0], sizes = [16, 16], strides = [1, 1]} : vector<16x32xf32> to vector<16x16xf32>
    %262 = vector.extract_strided_slice %252 {offsets = [0, 0], sizes = [1, 16], strides = [1, 1]} : vector<2x16xf32> to vector<1x16xf32>
    %263 = vector.broadcast %262 : vector<1x16xf32> to vector<16x16xf32>
    %264 = arith.mulf %261, %263 : vector<16x16xf32>
    %cst_79 = arith.constant dense<0.000000e+00> : vector<16xf32>
    %265 = vector.multi_reduction <add>, %264, %cst_79 [1] : vector<16x16xf32> to vector<16xf32>
    %266 = vector.shape_cast %265 : vector<16xf32> to vector<16x1xf32>
    %267 = vector.extract_strided_slice %259 {offsets = [0, 0], sizes = [1, 16], strides = [1, 1]} : vector<2x16xf32> to vector<1x16xf32>
    %268 = vector.broadcast %266 : vector<16x1xf32> to vector<16x16xf32>
    %269 = vector.broadcast %267 : vector<1x16xf32> to vector<16x16xf32>
    %270 = arith.addf %268, %269 : vector<16x16xf32>
    %cst_80 = arith.constant 0.000000e+00 : f32
    %271 = vector.broadcast %cst_80 : f32 to vector<16x16xf32>
    %272 = arith.cmpf ogt, %270, %271 : vector<16x16xf32>
    %cst_81 = arith.constant 2.000000e-01 : f32
    %273 = vector.broadcast %cst_81 : f32 to vector<16x16xf32>
    %274 = arith.mulf %273, %270 : vector<16x16xf32>
    %275 = arith.select %272, %270, %274 : vector<16x16xi1>, vector<16x16xf32>
    %cst_82 = arith.constant 0.000000e+00 : f32
    %276 = vector.broadcast %cst_82 : f32 to vector<16x16xf32>
    %277 = arith.cmpf ogt, %254, %276 : vector<16x16xf32>
    %cst_83 = arith.constant -1.000000e+30 : f32
    %278 = vector.broadcast %cst_83 : f32 to vector<16x16xf32>
    %279 = arith.select %277, %275, %278 : vector<16x16xi1>, vector<16x16xf32>
    %cst_84 = arith.constant dense<0xFF800000> : vector<16xf32>
    %280 = vector.multi_reduction <maximumf>, %279, %cst_84 [1] : vector<16x16xf32> to vector<16xf32>
    %281 = vector.shape_cast %280 : vector<16xf32> to vector<16x1xf32>
    %282 = vector.broadcast %281 : vector<16x1xf32> to vector<16x16xf32>
    %283 = arith.subf %279, %282 : vector<16x16xf32>
    %284 = math.exp %283 : vector<16x16xf32>
    %cst_85 = arith.constant dense<0.000000e+00> : vector<16xf32>
    %285 = vector.multi_reduction <add>, %284, %cst_85 [1] : vector<16x16xf32> to vector<16xf32>
    %286 = vector.shape_cast %285 : vector<16xf32> to vector<16x1xf32>
    %287 = vector.broadcast %286 : vector<16x1xf32> to vector<16x16xf32>
    %288 = arith.divf %284, %287 : vector<16x16xf32>
    %289 = arith.truncf %288 : vector<16x16xf32> to vector<16x16xbf16>
    %290 = arith.truncf %261 : vector<16x16xf32> to vector<16x16xbf16>
    %cst_86 = arith.constant dense<0.000000e+00> : vector<16x16xf32>
    %291 = tpu.matmul %289, %290, %cst_86 {dimension_numbers = #tpu.dot_dimension_numbers<[1], [0], [0], [1], [0, 0, 1, 1], [], []>} : vector<16x16xbf16>, vector<16x16xbf16>, vector<16x16xf32> -> vector<16x16xf32>
    %292 = arith.truncf %291 : vector<16x16xf32> to vector<16x16xbf16>
    %293 = vector.extract_strided_slice %255 {offsets = [0, 0], sizes = [16, 256], strides = [1, 1]} : vector<32x256xbf16> to vector<16x256xbf16>
    %cst_87 = arith.constant dense<0.000000e+00> : vector<16x256xf32>
    %294 = tpu.matmul %292, %293, %cst_87 {dimension_numbers = #tpu.dot_dimension_numbers<[1], [0], [0], [1], [0, 0, 1, 1], [], []>} : vector<16x16xbf16>, vector<16x256xbf16>, vector<16x256xf32> -> vector<16x256xf32>
    %295 = arith.addf %260, %294 : vector<16x256xf32>
    %296 = vector.extract_strided_slice %258 {offsets = [0, 16], sizes = [16, 16], strides = [1, 1]} : vector<16x32xf32> to vector<16x16xf32>
    %297 = vector.extract_strided_slice %252 {offsets = [1, 0], sizes = [1, 16], strides = [1, 1]} : vector<2x16xf32> to vector<1x16xf32>
    %298 = vector.broadcast %297 : vector<1x16xf32> to vector<16x16xf32>
    %299 = arith.mulf %296, %298 : vector<16x16xf32>
    %cst_88 = arith.constant dense<0.000000e+00> : vector<16xf32>
    %300 = vector.multi_reduction <add>, %299, %cst_88 [1] : vector<16x16xf32> to vector<16xf32>
    %301 = vector.shape_cast %300 : vector<16xf32> to vector<16x1xf32>
    %302 = vector.extract_strided_slice %259 {offsets = [1, 0], sizes = [1, 16], strides = [1, 1]} : vector<2x16xf32> to vector<1x16xf32>
    %303 = vector.broadcast %301 : vector<16x1xf32> to vector<16x16xf32>
    %304 = vector.broadcast %302 : vector<1x16xf32> to vector<16x16xf32>
    %305 = arith.addf %303, %304 : vector<16x16xf32>
    %cst_89 = arith.constant 0.000000e+00 : f32
    %306 = vector.broadcast %cst_89 : f32 to vector<16x16xf32>
    %307 = arith.cmpf ogt, %305, %306 : vector<16x16xf32>
    %cst_90 = arith.constant 2.000000e-01 : f32
    %308 = vector.broadcast %cst_90 : f32 to vector<16x16xf32>
    %309 = arith.mulf %308, %305 : vector<16x16xf32>
    %310 = arith.select %307, %305, %309 : vector<16x16xi1>, vector<16x16xf32>
    %cst_91 = arith.constant 0.000000e+00 : f32
    %311 = vector.broadcast %cst_91 : f32 to vector<16x16xf32>
    %312 = arith.cmpf ogt, %254, %311 : vector<16x16xf32>
    %cst_92 = arith.constant -1.000000e+30 : f32
    %313 = vector.broadcast %cst_92 : f32 to vector<16x16xf32>
    %314 = arith.select %312, %310, %313 : vector<16x16xi1>, vector<16x16xf32>
    %cst_93 = arith.constant dense<0xFF800000> : vector<16xf32>
    %315 = vector.multi_reduction <maximumf>, %314, %cst_93 [1] : vector<16x16xf32> to vector<16xf32>
    %316 = vector.shape_cast %315 : vector<16xf32> to vector<16x1xf32>
    %317 = vector.broadcast %316 : vector<16x1xf32> to vector<16x16xf32>
    %318 = arith.subf %314, %317 : vector<16x16xf32>
    %319 = math.exp %318 : vector<16x16xf32>
    %cst_94 = arith.constant dense<0.000000e+00> : vector<16xf32>
    %320 = vector.multi_reduction <add>, %319, %cst_94 [1] : vector<16x16xf32> to vector<16xf32>
    %321 = vector.shape_cast %320 : vector<16xf32> to vector<16x1xf32>
    %322 = vector.broadcast %321 : vector<16x1xf32> to vector<16x16xf32>
    %323 = arith.divf %319, %322 : vector<16x16xf32>
    %324 = arith.truncf %323 : vector<16x16xf32> to vector<16x16xbf16>
    %325 = arith.truncf %296 : vector<16x16xf32> to vector<16x16xbf16>
    %cst_95 = arith.constant dense<0.000000e+00> : vector<16x16xf32>
    %326 = tpu.matmul %324, %325, %cst_95 {dimension_numbers = #tpu.dot_dimension_numbers<[1], [0], [0], [1], [0, 0, 1, 1], [], []>} : vector<16x16xbf16>, vector<16x16xbf16>, vector<16x16xf32> -> vector<16x16xf32>
    %327 = arith.truncf %326 : vector<16x16xf32> to vector<16x16xbf16>
    %328 = vector.extract_strided_slice %255 {offsets = [16, 0], sizes = [16, 256], strides = [1, 1]} : vector<32x256xbf16> to vector<16x256xbf16>
    %cst_96 = arith.constant dense<0.000000e+00> : vector<16x256xf32>
    %329 = tpu.matmul %327, %328, %cst_96 {dimension_numbers = #tpu.dot_dimension_numbers<[1], [0], [0], [1], [0, 0, 1, 1], [], []>} : vector<16x16xbf16>, vector<16x256xbf16>, vector<16x256xf32> -> vector<16x256xf32>
    %330 = arith.addf %295, %329 : vector<16x256xf32>
    %331 = vector.broadcast %256 : vector<1x256xf32> to vector<16x256xf32>
    %332 = arith.addf %330, %331 : vector<16x256xf32>
    %333 = vector.extract_strided_slice %332 {offsets = [0, 0], sizes = [2, 16], strides = [1, 1]} : vector<16x256xf32> to vector<2x16xf32>
    %334 = vector.extract_strided_slice %332 {offsets = [2, 0], sizes = [2, 16], strides = [1, 1]} : vector<16x256xf32> to vector<2x16xf32>
    %335 = vector.extract_strided_slice %332 {offsets = [4, 0], sizes = [2, 16], strides = [1, 1]} : vector<16x256xf32> to vector<2x16xf32>
    %336 = vector.extract_strided_slice %332 {offsets = [6, 0], sizes = [2, 16], strides = [1, 1]} : vector<16x256xf32> to vector<2x16xf32>
    %337 = vector.extract_strided_slice %332 {offsets = [8, 0], sizes = [2, 16], strides = [1, 1]} : vector<16x256xf32> to vector<2x16xf32>
    %338 = vector.extract_strided_slice %332 {offsets = [10, 0], sizes = [2, 16], strides = [1, 1]} : vector<16x256xf32> to vector<2x16xf32>
    %339 = vector.extract_strided_slice %332 {offsets = [12, 0], sizes = [2, 16], strides = [1, 1]} : vector<16x256xf32> to vector<2x16xf32>
    %340 = vector.extract_strided_slice %332 {offsets = [14, 0], sizes = [2, 16], strides = [1, 1]} : vector<16x256xf32> to vector<2x16xf32>
    %341 = tpu.concatenate %333, %334, %335, %336, %337, %338, %339, %340 in 1 : vector<2x16xf32>, vector<2x16xf32>, vector<2x16xf32>, vector<2x16xf32>, vector<2x16xf32>, vector<2x16xf32>, vector<2x16xf32>, vector<2x16xf32> -> vector<2x128xf32>
    %c0_97 = arith.constant 0 : index
    %c0_98 = arith.constant 0 : index
    %342 = vector.load %arg30[%c0_97, %c0_98] : memref<32x128xf32, #tpu.memory_space<vmem>>, vector<2x128xf32>
    tpu.vector_store %arg30[%c0_97, %c0_98], %341 {strides = array<i32>} : memref<32x128xf32, #tpu.memory_space<vmem>>, vector<2x128xf32>,
    %343 = vector.extract_strided_slice %332 {offsets = [0, 16], sizes = [2, 16], strides = [1, 1]} : vector<16x256xf32> to vector<2x16xf32>
    %344 = vector.extract_strided_slice %332 {offsets = [2, 16], sizes = [2, 16], strides = [1, 1]} : vector<16x256xf32> to vector<2x16xf32>
    %345 = vector.extract_strided_slice %332 {offsets = [4, 16], sizes = [2, 16], strides = [1, 1]} : vector<16x256xf32> to vector<2x16xf32>
    %346 = vector.extract_strided_slice %332 {offsets = [6, 16], sizes = [2, 16], strides = [1, 1]} : vector<16x256xf32> to vector<2x16xf32>
    %347 = vector.extract_strided_slice %332 {offsets = [8, 16], sizes = [2, 16], strides = [1, 1]} : vector<16x256xf32> to vector<2x16xf32>
    %348 = vector.extract_strided_slice %332 {offsets = [10, 16], sizes = [2, 16], strides = [1, 1]} : vector<16x256xf32> to vector<2x16xf32>
    %349 = vector.extract_strided_slice %332 {offsets = [12, 16], sizes = [2, 16], strides = [1, 1]} : vector<16x256xf32> to vector<2x16xf32>
    %350 = vector.extract_strided_slice %332 {offsets = [14, 16], sizes = [2, 16], strides = [1, 1]} : vector<16x256xf32> to vector<2x16xf32>
    %351 = tpu.concatenate %343, %344, %345, %346, %347, %348, %349, %350 in 1 : vector<2x16xf32>, vector<2x16xf32>, vector<2x16xf32>, vector<2x16xf32>, vector<2x16xf32>, vector<2x16xf32>, vector<2x16xf32>, vector<2x16xf32> -> vector<2x128xf32>
    %c2_99 = arith.constant 2 : index
    %c0_100 = arith.constant 0 : index
    %352 = vector.load %arg30[%c2_99, %c0_100] : memref<32x128xf32, #tpu.memory_space<vmem>>, vector<2x128xf32>
    tpu.vector_store %arg30[%c2_99, %c0_100], %351 {strides = array<i32>} : memref<32x128xf32, #tpu.memory_space<vmem>>, vector<2x128xf32>,
    %353 = vector.extract_strided_slice %332 {offsets = [0, 32], sizes = [2, 16], strides = [1, 1]} : vector<16x256xf32> to vector<2x16xf32>
    %354 = vector.extract_strided_slice %332 {offsets = [2, 32], sizes = [2, 16], strides = [1, 1]} : vector<16x256xf32> to vector<2x16xf32>
    %355 = vector.extract_strided_slice %332 {offsets = [4, 32], sizes = [2, 16], strides = [1, 1]} : vector<16x256xf32> to vector<2x16xf32>
    %356 = vector.extract_strided_slice %332 {offsets = [6, 32], sizes = [2, 16], strides = [1, 1]} : vector<16x256xf32> to vector<2x16xf32>
    %357 = vector.extract_strided_slice %332 {offsets = [8, 32], sizes = [2, 16], strides = [1, 1]} : vector<16x256xf32> to vector<2x16xf32>
    %358 = vector.extract_strided_slice %332 {offsets = [10, 32], sizes = [2, 16], strides = [1, 1]} : vector<16x256xf32> to vector<2x16xf32>
    %359 = vector.extract_strided_slice %332 {offsets = [12, 32], sizes = [2, 16], strides = [1, 1]} : vector<16x256xf32> to vector<2x16xf32>
    %360 = vector.extract_strided_slice %332 {offsets = [14, 32], sizes = [2, 16], strides = [1, 1]} : vector<16x256xf32> to vector<2x16xf32>
    %361 = tpu.concatenate %353, %354, %355, %356, %357, %358, %359, %360 in 1 : vector<2x16xf32>, vector<2x16xf32>, vector<2x16xf32>, vector<2x16xf32>, vector<2x16xf32>, vector<2x16xf32>, vector<2x16xf32>, vector<2x16xf32> -> vector<2x128xf32>
    %c4_101 = arith.constant 4 : index
    %c0_102 = arith.constant 0 : index
    %362 = vector.load %arg30[%c4_101, %c0_102] : memref<32x128xf32, #tpu.memory_space<vmem>>, vector<2x128xf32>
    tpu.vector_store %arg30[%c4_101, %c0_102], %361 {strides = array<i32>} : memref<32x128xf32, #tpu.memory_space<vmem>>, vector<2x128xf32>,
    %363 = vector.extract_strided_slice %332 {offsets = [0, 48], sizes = [2, 16], strides = [1, 1]} : vector<16x256xf32> to vector<2x16xf32>
    %364 = vector.extract_strided_slice %332 {offsets = [2, 48], sizes = [2, 16], strides = [1, 1]} : vector<16x256xf32> to vector<2x16xf32>
    %365 = vector.extract_strided_slice %332 {offsets = [4, 48], sizes = [2, 16], strides = [1, 1]} : vector<16x256xf32> to vector<2x16xf32>
    %366 = vector.extract_strided_slice %332 {offsets = [6, 48], sizes = [2, 16], strides = [1, 1]} : vector<16x256xf32> to vector<2x16xf32>
    %367 = vector.extract_strided_slice %332 {offsets = [8, 48], sizes = [2, 16], strides = [1, 1]} : vector<16x256xf32> to vector<2x16xf32>
    %368 = vector.extract_strided_slice %332 {offsets = [10, 48], sizes = [2, 16], strides = [1, 1]} : vector<16x256xf32> to vector<2x16xf32>
    %369 = vector.extract_strided_slice %332 {offsets = [12, 48], sizes = [2, 16], strides = [1, 1]} : vector<16x256xf32> to vector<2x16xf32>
    %370 = vector.extract_strided_slice %332 {offsets = [14, 48], sizes = [2, 16], strides = [1, 1]} : vector<16x256xf32> to vector<2x16xf32>
    %371 = tpu.concatenate %363, %364, %365, %366, %367, %368, %369, %370 in 1 : vector<2x16xf32>, vector<2x16xf32>, vector<2x16xf32>, vector<2x16xf32>, vector<2x16xf32>, vector<2x16xf32>, vector<2x16xf32>, vector<2x16xf32> -> vector<2x128xf32>
    %c6_103 = arith.constant 6 : index
    %c0_104 = arith.constant 0 : index
    %372 = vector.load %arg30[%c6_103, %c0_104] : memref<32x128xf32, #tpu.memory_space<vmem>>, vector<2x128xf32>
    tpu.vector_store %arg30[%c6_103, %c0_104], %371 {strides = array<i32>} : memref<32x128xf32, #tpu.memory_space<vmem>>, vector<2x128xf32>,
    %373 = vector.extract_strided_slice %332 {offsets = [0, 64], sizes = [2, 16], strides = [1, 1]} : vector<16x256xf32> to vector<2x16xf32>
    %374 = vector.extract_strided_slice %332 {offsets = [2, 64], sizes = [2, 16], strides = [1, 1]} : vector<16x256xf32> to vector<2x16xf32>
    %375 = vector.extract_strided_slice %332 {offsets = [4, 64], sizes = [2, 16], strides = [1, 1]} : vector<16x256xf32> to vector<2x16xf32>
    %376 = vector.extract_strided_slice %332 {offsets = [6, 64], sizes = [2, 16], strides = [1, 1]} : vector<16x256xf32> to vector<2x16xf32>
    %377 = vector.extract_strided_slice %332 {offsets = [8, 64], sizes = [2, 16], strides = [1, 1]} : vector<16x256xf32> to vector<2x16xf32>
    %378 = vector.extract_strided_slice %332 {offsets = [10, 64], sizes = [2, 16], strides = [1, 1]} : vector<16x256xf32> to vector<2x16xf32>
    %379 = vector.extract_strided_slice %332 {offsets = [12, 64], sizes = [2, 16], strides = [1, 1]} : vector<16x256xf32> to vector<2x16xf32>
    %380 = vector.extract_strided_slice %332 {offsets = [14, 64], sizes = [2, 16], strides = [1, 1]} : vector<16x256xf32> to vector<2x16xf32>
    %381 = tpu.concatenate %373, %374, %375, %376, %377, %378, %379, %380 in 1 : vector<2x16xf32>, vector<2x16xf32>, vector<2x16xf32>, vector<2x16xf32>, vector<2x16xf32>, vector<2x16xf32>, vector<2x16xf32>, vector<2x16xf32> -> vector<2x128xf32>
    %c8_105 = arith.constant 8 : index
    %c0_106 = arith.constant 0 : index
    %382 = vector.load %arg30[%c8_105, %c0_106] : memref<32x128xf32, #tpu.memory_space<vmem>>, vector<2x128xf32>
    tpu.vector_store %arg30[%c8_105, %c0_106], %381 {strides = array<i32>} : memref<32x128xf32, #tpu.memory_space<vmem>>, vector<2x128xf32>,
    %383 = vector.extract_strided_slice %332 {offsets = [0, 80], sizes = [2, 16], strides = [1, 1]} : vector<16x256xf32> to vector<2x16xf32>
    %384 = vector.extract_strided_slice %332 {offsets = [2, 80], sizes = [2, 16], strides = [1, 1]} : vector<16x256xf32> to vector<2x16xf32>
    %385 = vector.extract_strided_slice %332 {offsets = [4, 80], sizes = [2, 16], strides = [1, 1]} : vector<16x256xf32> to vector<2x16xf32>
    %386 = vector.extract_strided_slice %332 {offsets = [6, 80], sizes = [2, 16], strides = [1, 1]} : vector<16x256xf32> to vector<2x16xf32>
    %387 = vector.extract_strided_slice %332 {offsets = [8, 80], sizes = [2, 16], strides = [1, 1]} : vector<16x256xf32> to vector<2x16xf32>
    %388 = vector.extract_strided_slice %332 {offsets = [10, 80], sizes = [2, 16], strides = [1, 1]} : vector<16x256xf32> to vector<2x16xf32>
    %389 = vector.extract_strided_slice %332 {offsets = [12, 80], sizes = [2, 16], strides = [1, 1]} : vector<16x256xf32> to vector<2x16xf32>
    %390 = vector.extract_strided_slice %332 {offsets = [14, 80], sizes = [2, 16], strides = [1, 1]} : vector<16x256xf32> to vector<2x16xf32>
    %391 = tpu.concatenate %383, %384, %385, %386, %387, %388, %389, %390 in 1 : vector<2x16xf32>, vector<2x16xf32>, vector<2x16xf32>, vector<2x16xf32>, vector<2x16xf32>, vector<2x16xf32>, vector<2x16xf32>, vector<2x16xf32> -> vector<2x128xf32>
    %c10_107 = arith.constant 10 : index
    %c0_108 = arith.constant 0 : index
    %392 = vector.load %arg30[%c10_107, %c0_108] : memref<32x128xf32, #tpu.memory_space<vmem>>, vector<2x128xf32>
    tpu.vector_store %arg30[%c10_107, %c0_108], %391 {strides = array<i32>} : memref<32x128xf32, #tpu.memory_space<vmem>>, vector<2x128xf32>,
    %393 = vector.extract_strided_slice %332 {offsets = [0, 96], sizes = [2, 16], strides = [1, 1]} : vector<16x256xf32> to vector<2x16xf32>
    %394 = vector.extract_strided_slice %332 {offsets = [2, 96], sizes = [2, 16], strides = [1, 1]} : vector<16x256xf32> to vector<2x16xf32>
    %395 = vector.extract_strided_slice %332 {offsets = [4, 96], sizes = [2, 16], strides = [1, 1]} : vector<16x256xf32> to vector<2x16xf32>
    %396 = vector.extract_strided_slice %332 {offsets = [6, 96], sizes = [2, 16], strides = [1, 1]} : vector<16x256xf32> to vector<2x16xf32>
    %397 = vector.extract_strided_slice %332 {offsets = [8, 96], sizes = [2, 16], strides = [1, 1]} : vector<16x256xf32> to vector<2x16xf32>
    %398 = vector.extract_strided_slice %332 {offsets = [10, 96], sizes = [2, 16], strides = [1, 1]} : vector<16x256xf32> to vector<2x16xf32>
    %399 = vector.extract_strided_slice %332 {offsets = [12, 96], sizes = [2, 16], strides = [1, 1]} : vector<16x256xf32> to vector<2x16xf32>
    %400 = vector.extract_strided_slice %332 {offsets = [14, 96], sizes = [2, 16], strides = [1, 1]} : vector<16x256xf32> to vector<2x16xf32>
    %401 = tpu.concatenate %393, %394, %395, %396, %397, %398, %399, %400 in 1 : vector<2x16xf32>, vector<2x16xf32>, vector<2x16xf32>, vector<2x16xf32>, vector<2x16xf32>, vector<2x16xf32>, vector<2x16xf32>, vector<2x16xf32> -> vector<2x128xf32>
    %c12_109 = arith.constant 12 : index
    %c0_110 = arith.constant 0 : index
    %402 = vector.load %arg30[%c12_109, %c0_110] : memref<32x128xf32, #tpu.memory_space<vmem>>, vector<2x128xf32>
    tpu.vector_store %arg30[%c12_109, %c0_110], %401 {strides = array<i32>} : memref<32x128xf32, #tpu.memory_space<vmem>>, vector<2x128xf32>,
    %403 = vector.extract_strided_slice %332 {offsets = [0, 112], sizes = [2, 16], strides = [1, 1]} : vector<16x256xf32> to vector<2x16xf32>
    %404 = vector.extract_strided_slice %332 {offsets = [2, 112], sizes = [2, 16], strides = [1, 1]} : vector<16x256xf32> to vector<2x16xf32>
    %405 = vector.extract_strided_slice %332 {offsets = [4, 112], sizes = [2, 16], strides = [1, 1]} : vector<16x256xf32> to vector<2x16xf32>
    %406 = vector.extract_strided_slice %332 {offsets = [6, 112], sizes = [2, 16], strides = [1, 1]} : vector<16x256xf32> to vector<2x16xf32>
    %407 = vector.extract_strided_slice %332 {offsets = [8, 112], sizes = [2, 16], strides = [1, 1]} : vector<16x256xf32> to vector<2x16xf32>
    %408 = vector.extract_strided_slice %332 {offsets = [10, 112], sizes = [2, 16], strides = [1, 1]} : vector<16x256xf32> to vector<2x16xf32>
    %409 = vector.extract_strided_slice %332 {offsets = [12, 112], sizes = [2, 16], strides = [1, 1]} : vector<16x256xf32> to vector<2x16xf32>
    %410 = vector.extract_strided_slice %332 {offsets = [14, 112], sizes = [2, 16], strides = [1, 1]} : vector<16x256xf32> to vector<2x16xf32>
    %411 = tpu.concatenate %403, %404, %405, %406, %407, %408, %409, %410 in 1 : vector<2x16xf32>, vector<2x16xf32>, vector<2x16xf32>, vector<2x16xf32>, vector<2x16xf32>, vector<2x16xf32>, vector<2x16xf32>, vector<2x16xf32> -> vector<2x128xf32>
    %c14_111 = arith.constant 14 : index
    %c0_112 = arith.constant 0 : index
    %412 = vector.load %arg30[%c14_111, %c0_112] : memref<32x128xf32, #tpu.memory_space<vmem>>, vector<2x128xf32>
    tpu.vector_store %arg30[%c14_111, %c0_112], %411 {strides = array<i32>} : memref<32x128xf32, #tpu.memory_space<vmem>>, vector<2x128xf32>,
    %413 = vector.extract_strided_slice %332 {offsets = [0, 128], sizes = [2, 16], strides = [1, 1]} : vector<16x256xf32> to vector<2x16xf32>
    %414 = vector.extract_strided_slice %332 {offsets = [2, 128], sizes = [2, 16], strides = [1, 1]} : vector<16x256xf32> to vector<2x16xf32>
    %415 = vector.extract_strided_slice %332 {offsets = [4, 128], sizes = [2, 16], strides = [1, 1]} : vector<16x256xf32> to vector<2x16xf32>
    %416 = vector.extract_strided_slice %332 {offsets = [6, 128], sizes = [2, 16], strides = [1, 1]} : vector<16x256xf32> to vector<2x16xf32>
    %417 = vector.extract_strided_slice %332 {offsets = [8, 128], sizes = [2, 16], strides = [1, 1]} : vector<16x256xf32> to vector<2x16xf32>
    %418 = vector.extract_strided_slice %332 {offsets = [10, 128], sizes = [2, 16], strides = [1, 1]} : vector<16x256xf32> to vector<2x16xf32>
    %419 = vector.extract_strided_slice %332 {offsets = [12, 128], sizes = [2, 16], strides = [1, 1]} : vector<16x256xf32> to vector<2x16xf32>
    %420 = vector.extract_strided_slice %332 {offsets = [14, 128], sizes = [2, 16], strides = [1, 1]} : vector<16x256xf32> to vector<2x16xf32>
    %421 = tpu.concatenate %413, %414, %415, %416, %417, %418, %419, %420 in 1 : vector<2x16xf32>, vector<2x16xf32>, vector<2x16xf32>, vector<2x16xf32>, vector<2x16xf32>, vector<2x16xf32>, vector<2x16xf32>, vector<2x16xf32> -> vector<2x128xf32>
    %c16 = arith.constant 16 : index
    %c0_113 = arith.constant 0 : index
    %422 = vector.load %arg30[%c16, %c0_113] : memref<32x128xf32, #tpu.memory_space<vmem>>, vector<2x128xf32>
    tpu.vector_store %arg30[%c16, %c0_113], %421 {strides = array<i32>} : memref<32x128xf32, #tpu.memory_space<vmem>>, vector<2x128xf32>,
    %423 = vector.extract_strided_slice %332 {offsets = [0, 144], sizes = [2, 16], strides = [1, 1]} : vector<16x256xf32> to vector<2x16xf32>
    %424 = vector.extract_strided_slice %332 {offsets = [2, 144], sizes = [2, 16], strides = [1, 1]} : vector<16x256xf32> to vector<2x16xf32>
    %425 = vector.extract_strided_slice %332 {offsets = [4, 144], sizes = [2, 16], strides = [1, 1]} : vector<16x256xf32> to vector<2x16xf32>
    %426 = vector.extract_strided_slice %332 {offsets = [6, 144], sizes = [2, 16], strides = [1, 1]} : vector<16x256xf32> to vector<2x16xf32>
    %427 = vector.extract_strided_slice %332 {offsets = [8, 144], sizes = [2, 16], strides = [1, 1]} : vector<16x256xf32> to vector<2x16xf32>
    %428 = vector.extract_strided_slice %332 {offsets = [10, 144], sizes = [2, 16], strides = [1, 1]} : vector<16x256xf32> to vector<2x16xf32>
    %429 = vector.extract_strided_slice %332 {offsets = [12, 144], sizes = [2, 16], strides = [1, 1]} : vector<16x256xf32> to vector<2x16xf32>
    %430 = vector.extract_strided_slice %332 {offsets = [14, 144], sizes = [2, 16], strides = [1, 1]} : vector<16x256xf32> to vector<2x16xf32>
    %431 = tpu.concatenate %423, %424, %425, %426, %427, %428, %429, %430 in 1 : vector<2x16xf32>, vector<2x16xf32>, vector<2x16xf32>, vector<2x16xf32>, vector<2x16xf32>, vector<2x16xf32>, vector<2x16xf32>, vector<2x16xf32> -> vector<2x128xf32>
    %c18 = arith.constant 18 : index
    %c0_114 = arith.constant 0 : index
    %432 = vector.load %arg30[%c18, %c0_114] : memref<32x128xf32, #tpu.memory_space<vmem>>, vector<2x128xf32>
    tpu.vector_store %arg30[%c18, %c0_114], %431 {strides = array<i32>} : memref<32x128xf32, #tpu.memory_space<vmem>>, vector<2x128xf32>,
    %433 = vector.extract_strided_slice %332 {offsets = [0, 160], sizes = [2, 16], strides = [1, 1]} : vector<16x256xf32> to vector<2x16xf32>
    %434 = vector.extract_strided_slice %332 {offsets = [2, 160], sizes = [2, 16], strides = [1, 1]} : vector<16x256xf32> to vector<2x16xf32>
    %435 = vector.extract_strided_slice %332 {offsets = [4, 160], sizes = [2, 16], strides = [1, 1]} : vector<16x256xf32> to vector<2x16xf32>
    %436 = vector.extract_strided_slice %332 {offsets = [6, 160], sizes = [2, 16], strides = [1, 1]} : vector<16x256xf32> to vector<2x16xf32>
    %437 = vector.extract_strided_slice %332 {offsets = [8, 160], sizes = [2, 16], strides = [1, 1]} : vector<16x256xf32> to vector<2x16xf32>
    %438 = vector.extract_strided_slice %332 {offsets = [10, 160], sizes = [2, 16], strides = [1, 1]} : vector<16x256xf32> to vector<2x16xf32>
    %439 = vector.extract_strided_slice %332 {offsets = [12, 160], sizes = [2, 16], strides = [1, 1]} : vector<16x256xf32> to vector<2x16xf32>
    %440 = vector.extract_strided_slice %332 {offsets = [14, 160], sizes = [2, 16], strides = [1, 1]} : vector<16x256xf32> to vector<2x16xf32>
    %441 = tpu.concatenate %433, %434, %435, %436, %437, %438, %439, %440 in 1 : vector<2x16xf32>, vector<2x16xf32>, vector<2x16xf32>, vector<2x16xf32>, vector<2x16xf32>, vector<2x16xf32>, vector<2x16xf32>, vector<2x16xf32> -> vector<2x128xf32>
    %c20 = arith.constant 20 : index
    %c0_115 = arith.constant 0 : index
    %442 = vector.load %arg30[%c20, %c0_115] : memref<32x128xf32, #tpu.memory_space<vmem>>, vector<2x128xf32>
    tpu.vector_store %arg30[%c20, %c0_115], %441 {strides = array<i32>} : memref<32x128xf32, #tpu.memory_space<vmem>>, vector<2x128xf32>,
    %443 = vector.extract_strided_slice %332 {offsets = [0, 176], sizes = [2, 16], strides = [1, 1]} : vector<16x256xf32> to vector<2x16xf32>
    %444 = vector.extract_strided_slice %332 {offsets = [2, 176], sizes = [2, 16], strides = [1, 1]} : vector<16x256xf32> to vector<2x16xf32>
    %445 = vector.extract_strided_slice %332 {offsets = [4, 176], sizes = [2, 16], strides = [1, 1]} : vector<16x256xf32> to vector<2x16xf32>
    %446 = vector.extract_strided_slice %332 {offsets = [6, 176], sizes = [2, 16], strides = [1, 1]} : vector<16x256xf32> to vector<2x16xf32>
    %447 = vector.extract_strided_slice %332 {offsets = [8, 176], sizes = [2, 16], strides = [1, 1]} : vector<16x256xf32> to vector<2x16xf32>
    %448 = vector.extract_strided_slice %332 {offsets = [10, 176], sizes = [2, 16], strides = [1, 1]} : vector<16x256xf32> to vector<2x16xf32>
    %449 = vector.extract_strided_slice %332 {offsets = [12, 176], sizes = [2, 16], strides = [1, 1]} : vector<16x256xf32> to vector<2x16xf32>
    %450 = vector.extract_strided_slice %332 {offsets = [14, 176], sizes = [2, 16], strides = [1, 1]} : vector<16x256xf32> to vector<2x16xf32>
    %451 = tpu.concatenate %443, %444, %445, %446, %447, %448, %449, %450 in 1 : vector<2x16xf32>, vector<2x16xf32>, vector<2x16xf32>, vector<2x16xf32>, vector<2x16xf32>, vector<2x16xf32>, vector<2x16xf32>, vector<2x16xf32> -> vector<2x128xf32>
    %c22 = arith.constant 22 : index
    %c0_116 = arith.constant 0 : index
    %452 = vector.load %arg30[%c22, %c0_116] : memref<32x128xf32, #tpu.memory_space<vmem>>, vector<2x128xf32>
    tpu.vector_store %arg30[%c22, %c0_116], %451 {strides = array<i32>} : memref<32x128xf32, #tpu.memory_space<vmem>>, vector<2x128xf32>,
    %453 = vector.extract_strided_slice %332 {offsets = [0, 192], sizes = [2, 16], strides = [1, 1]} : vector<16x256xf32> to vector<2x16xf32>
    %454 = vector.extract_strided_slice %332 {offsets = [2, 192], sizes = [2, 16], strides = [1, 1]} : vector<16x256xf32> to vector<2x16xf32>
    %455 = vector.extract_strided_slice %332 {offsets = [4, 192], sizes = [2, 16], strides = [1, 1]} : vector<16x256xf32> to vector<2x16xf32>
    %456 = vector.extract_strided_slice %332 {offsets = [6, 192], sizes = [2, 16], strides = [1, 1]} : vector<16x256xf32> to vector<2x16xf32>
    %457 = vector.extract_strided_slice %332 {offsets = [8, 192], sizes = [2, 16], strides = [1, 1]} : vector<16x256xf32> to vector<2x16xf32>
    %458 = vector.extract_strided_slice %332 {offsets = [10, 192], sizes = [2, 16], strides = [1, 1]} : vector<16x256xf32> to vector<2x16xf32>
    %459 = vector.extract_strided_slice %332 {offsets = [12, 192], sizes = [2, 16], strides = [1, 1]} : vector<16x256xf32> to vector<2x16xf32>
    %460 = vector.extract_strided_slice %332 {offsets = [14, 192], sizes = [2, 16], strides = [1, 1]} : vector<16x256xf32> to vector<2x16xf32>
    %461 = tpu.concatenate %453, %454, %455, %456, %457, %458, %459, %460 in 1 : vector<2x16xf32>, vector<2x16xf32>, vector<2x16xf32>, vector<2x16xf32>, vector<2x16xf32>, vector<2x16xf32>, vector<2x16xf32>, vector<2x16xf32> -> vector<2x128xf32>
    %c24 = arith.constant 24 : index
    %c0_117 = arith.constant 0 : index
    %462 = vector.load %arg30[%c24, %c0_117] : memref<32x128xf32, #tpu.memory_space<vmem>>, vector<2x128xf32>
    tpu.vector_store %arg30[%c24, %c0_117], %461 {strides = array<i32>} : memref<32x128xf32, #tpu.memory_space<vmem>>, vector<2x128xf32>,
    %463 = vector.extract_strided_slice %332 {offsets = [0, 208], sizes = [2, 16], strides = [1, 1]} : vector<16x256xf32> to vector<2x16xf32>
    %464 = vector.extract_strided_slice %332 {offsets = [2, 208], sizes = [2, 16], strides = [1, 1]} : vector<16x256xf32> to vector<2x16xf32>
    %465 = vector.extract_strided_slice %332 {offsets = [4, 208], sizes = [2, 16], strides = [1, 1]} : vector<16x256xf32> to vector<2x16xf32>
    %466 = vector.extract_strided_slice %332 {offsets = [6, 208], sizes = [2, 16], strides = [1, 1]} : vector<16x256xf32> to vector<2x16xf32>
    %467 = vector.extract_strided_slice %332 {offsets = [8, 208], sizes = [2, 16], strides = [1, 1]} : vector<16x256xf32> to vector<2x16xf32>
    %468 = vector.extract_strided_slice %332 {offsets = [10, 208], sizes = [2, 16], strides = [1, 1]} : vector<16x256xf32> to vector<2x16xf32>
    %469 = vector.extract_strided_slice %332 {offsets = [12, 208], sizes = [2, 16], strides = [1, 1]} : vector<16x256xf32> to vector<2x16xf32>
    %470 = vector.extract_strided_slice %332 {offsets = [14, 208], sizes = [2, 16], strides = [1, 1]} : vector<16x256xf32> to vector<2x16xf32>
    %471 = tpu.concatenate %463, %464, %465, %466, %467, %468, %469, %470 in 1 : vector<2x16xf32>, vector<2x16xf32>, vector<2x16xf32>, vector<2x16xf32>, vector<2x16xf32>, vector<2x16xf32>, vector<2x16xf32>, vector<2x16xf32> -> vector<2x128xf32>
    %c26 = arith.constant 26 : index
    %c0_118 = arith.constant 0 : index
    %472 = vector.load %arg30[%c26, %c0_118] : memref<32x128xf32, #tpu.memory_space<vmem>>, vector<2x128xf32>
    tpu.vector_store %arg30[%c26, %c0_118], %471 {strides = array<i32>} : memref<32x128xf32, #tpu.memory_space<vmem>>, vector<2x128xf32>,
    %473 = vector.extract_strided_slice %332 {offsets = [0, 224], sizes = [2, 16], strides = [1, 1]} : vector<16x256xf32> to vector<2x16xf32>
    %474 = vector.extract_strided_slice %332 {offsets = [2, 224], sizes = [2, 16], strides = [1, 1]} : vector<16x256xf32> to vector<2x16xf32>
    %475 = vector.extract_strided_slice %332 {offsets = [4, 224], sizes = [2, 16], strides = [1, 1]} : vector<16x256xf32> to vector<2x16xf32>
    %476 = vector.extract_strided_slice %332 {offsets = [6, 224], sizes = [2, 16], strides = [1, 1]} : vector<16x256xf32> to vector<2x16xf32>
    %477 = vector.extract_strided_slice %332 {offsets = [8, 224], sizes = [2, 16], strides = [1, 1]} : vector<16x256xf32> to vector<2x16xf32>
    %478 = vector.extract_strided_slice %332 {offsets = [10, 224], sizes = [2, 16], strides = [1, 1]} : vector<16x256xf32> to vector<2x16xf32>
    %479 = vector.extract_strided_slice %332 {offsets = [12, 224], sizes = [2, 16], strides = [1, 1]} : vector<16x256xf32> to vector<2x16xf32>
    %480 = vector.extract_strided_slice %332 {offsets = [14, 224], sizes = [2, 16], strides = [1, 1]} : vector<16x256xf32> to vector<2x16xf32>
    %481 = tpu.concatenate %473, %474, %475, %476, %477, %478, %479, %480 in 1 : vector<2x16xf32>, vector<2x16xf32>, vector<2x16xf32>, vector<2x16xf32>, vector<2x16xf32>, vector<2x16xf32>, vector<2x16xf32>, vector<2x16xf32> -> vector<2x128xf32>
    %c28 = arith.constant 28 : index
    %c0_119 = arith.constant 0 : index
    %482 = vector.load %arg30[%c28, %c0_119] : memref<32x128xf32, #tpu.memory_space<vmem>>, vector<2x128xf32>
    tpu.vector_store %arg30[%c28, %c0_119], %481 {strides = array<i32>} : memref<32x128xf32, #tpu.memory_space<vmem>>, vector<2x128xf32>,
    %483 = vector.extract_strided_slice %332 {offsets = [0, 240], sizes = [2, 16], strides = [1, 1]} : vector<16x256xf32> to vector<2x16xf32>
    %484 = vector.extract_strided_slice %332 {offsets = [2, 240], sizes = [2, 16], strides = [1, 1]} : vector<16x256xf32> to vector<2x16xf32>
    %485 = vector.extract_strided_slice %332 {offsets = [4, 240], sizes = [2, 16], strides = [1, 1]} : vector<16x256xf32> to vector<2x16xf32>
    %486 = vector.extract_strided_slice %332 {offsets = [6, 240], sizes = [2, 16], strides = [1, 1]} : vector<16x256xf32> to vector<2x16xf32>
    %487 = vector.extract_strided_slice %332 {offsets = [8, 240], sizes = [2, 16], strides = [1, 1]} : vector<16x256xf32> to vector<2x16xf32>
    %488 = vector.extract_strided_slice %332 {offsets = [10, 240], sizes = [2, 16], strides = [1, 1]} : vector<16x256xf32> to vector<2x16xf32>
    %489 = vector.extract_strided_slice %332 {offsets = [12, 240], sizes = [2, 16], strides = [1, 1]} : vector<16x256xf32> to vector<2x16xf32>
    %490 = vector.extract_strided_slice %332 {offsets = [14, 240], sizes = [2, 16], strides = [1, 1]} : vector<16x256xf32> to vector<2x16xf32>
    %491 = tpu.concatenate %483, %484, %485, %486, %487, %488, %489, %490 in 1 : vector<2x16xf32>, vector<2x16xf32>, vector<2x16xf32>, vector<2x16xf32>, vector<2x16xf32>, vector<2x16xf32>, vector<2x16xf32>, vector<2x16xf32> -> vector<2x128xf32>
    %c30 = arith.constant 30 : index
    %c0_120 = arith.constant 0 : index
    %492 = vector.load %arg30[%c30, %c0_120] : memref<32x128xf32, #tpu.memory_space<vmem>>, vector<2x128xf32>
    tpu.vector_store %arg30[%c30, %c0_120], %491 {strides = array<i32>} : memref<32x128xf32, #tpu.memory_space<vmem>>, vector<2x128xf32>,
    %c0_121 = arith.constant 0 : index
    %c0_122 = arith.constant 0 : index
    %493 = vector.load %arg30[%c0_121, %c0_122] : memref<32x128xf32, #tpu.memory_space<vmem>>, vector<32x128xf32>
    %494 = arith.truncf %493 : vector<32x128xf32> to vector<32x128xbf16>
    %c0_123 = arith.constant 0 : index
    %c0_124 = arith.constant 0 : index
    %495 = vector.load %arg6[%c0_123, %c0_124] : memref<128x32xbf16, #tpu.memory_space<vmem>>, vector<128x32xbf16>
    %cst_125 = arith.constant dense<0.000000e+00> : vector<32x32xf32>
    %496 = tpu.matmul %494, %495, %cst_125 {dimension_numbers = #tpu.dot_dimension_numbers<[1], [0], [0], [1], [0, 0, 1, 1], [], []>} : vector<32x128xbf16>, vector<128x32xbf16>, vector<32x32xf32> -> vector<32x32xf32>
    %c0_126 = arith.constant 0 : index
    %c0_127 = arith.constant 0 : index
    %497 = vector.load %arg7[%c0_126, %c0_127] : memref<1x32xf32, #tpu.memory_space<vmem>>, vector<1x32xf32>
    %498 = vector.broadcast %497 : vector<1x32xf32> to vector<32x32xf32>
    %499 = arith.addf %496, %498 : vector<32x32xf32>
    %c0_128 = arith.constant 0 : index
    %c0_129 = arith.constant 0 : index
    %500 = vector.load %arg1[%c0_128, %c0_129] : memref<32x96xf32, #tpu.memory_space<vmem>>, vector<32x96xf32>
    %cst_130 = arith.constant 0.000000e+00 : f32
    %501 = vector.broadcast %cst_130 : f32 to vector<32x96xf32>
    %502 = tpu.concatenate %12, %499, %500, %501 in 1 : vector<32x32xf32>, vector<32x32xf32>, vector<32x96xf32>, vector<32x96xf32> -> vector<32x256xf32>
    %503 = arith.truncf %502 : vector<32x256xf32> to vector<32x256xbf16>
    %c0_131 = arith.constant 0 : index
    %c0_132 = arith.constant 0 : index
    %c0_133 = arith.constant 0 : index
    %504 = vector.load %arg22[%c0_131, %c0_132, %c0_133] : memref<3x256x256xbf16, #tpu.memory_space<vmem>>, vector<1x256x256xbf16>
    %505 = vector.shape_cast %504 : vector<1x256x256xbf16> to vector<256x256xbf16>
    %cst_134 = arith.constant dense<0.000000e+00> : vector<32x256xf32>
    %506 = tpu.matmul %503, %505, %cst_134 {dimension_numbers = #tpu.dot_dimension_numbers<[1], [0], [0], [1], [0, 0, 1, 1], [], []>} : vector<32x256xbf16>, vector<256x256xbf16>, vector<32x256xf32> -> vector<32x256xf32>
    %c0_135 = arith.constant 0 : index
    %c0_136 = arith.constant 0 : index
    %c0_137 = arith.constant 0 : index
    %507 = vector.load %arg23[%c0_135, %c0_136, %c0_137] : memref<3x1x256xf32, #tpu.memory_space<vmem>>, vector<1x1x256xf32>
    %508 = vector.shape_cast %507 : vector<1x1x256xf32> to vector<1x256xf32>
    %509 = vector.broadcast %508 : vector<1x256xf32> to vector<32x256xf32>
    %510 = arith.addf %506, %509 : vector<32x256xf32>
    %cst_138 = arith.constant 0.000000e+00 : f32
    %511 = vector.broadcast %cst_138 : f32 to vector<32x256xf32>
    %512 = arith.maximumf %510, %511 : vector<32x256xf32>
    %513 = arith.truncf %512 : vector<32x256xf32> to vector<32x256xbf16>
    %c0_139 = arith.constant 0 : index
    %c0_140 = arith.constant 0 : index
    %c0_141 = arith.constant 0 : index
    %514 = vector.load %arg24[%c0_139, %c0_140, %c0_141] : memref<3x256x256xbf16, #tpu.memory_space<vmem>>, vector<1x256x256xbf16>
    %515 = vector.shape_cast %514 : vector<1x256x256xbf16> to vector<256x256xbf16>
    %cst_142 = arith.constant dense<0.000000e+00> : vector<32x256xf32>
    %516 = tpu.matmul %513, %515, %cst_142 {dimension_numbers = #tpu.dot_dimension_numbers<[1], [0], [0], [1], [0, 0, 1, 1], [], []>} : vector<32x256xbf16>, vector<256x256xbf16>, vector<32x256xf32> -> vector<32x256xf32>
    %c0_143 = arith.constant 0 : index
    %c0_144 = arith.constant 0 : index
    %c0_145 = arith.constant 0 : index
    %517 = vector.load %arg25[%c0_143, %c0_144, %c0_145] : memref<3x1x256xf32, #tpu.memory_space<vmem>>, vector<1x1x256xf32>
    %518 = vector.shape_cast %517 : vector<1x1x256xf32> to vector<1x256xf32>
    %519 = vector.broadcast %518 : vector<1x256xf32> to vector<32x256xf32>
    %520 = arith.addf %516, %519 : vector<32x256xf32>
    %521 = arith.addf %520, %502 : vector<32x256xf32>
    %522 = arith.truncf %521 : vector<32x256xf32> to vector<32x256xbf16>
    %c1 = arith.constant 1 : index
    %c0_146 = arith.constant 0 : index
    %c0_147 = arith.constant 0 : index
    %523 = vector.load %arg22[%c1, %c0_146, %c0_147] : memref<3x256x256xbf16, #tpu.memory_space<vmem>>, vector<1x256x256xbf16>
    %524 = vector.shape_cast %523 : vector<1x256x256xbf16> to vector<256x256xbf16>
    %cst_148 = arith.constant dense<0.000000e+00> : vector<32x256xf32>
    %525 = tpu.matmul %522, %524, %cst_148 {dimension_numbers = #tpu.dot_dimension_numbers<[1], [0], [0], [1], [0, 0, 1, 1], [], []>} : vector<32x256xbf16>, vector<256x256xbf16>, vector<32x256xf32> -> vector<32x256xf32>
    %c1_149 = arith.constant 1 : index
    %c0_150 = arith.constant 0 : index
    %c0_151 = arith.constant 0 : index
    %526 = vector.load %arg23[%c1_149, %c0_150, %c0_151] : memref<3x1x256xf32, #tpu.memory_space<vmem>>, vector<1x1x256xf32>
    %527 = vector.shape_cast %526 : vector<1x1x256xf32> to vector<1x256xf32>
    %528 = vector.broadcast %527 : vector<1x256xf32> to vector<32x256xf32>
    %529 = arith.addf %525, %528 : vector<32x256xf32>
    %cst_152 = arith.constant 0.000000e+00 : f32
    %530 = vector.broadcast %cst_152 : f32 to vector<32x256xf32>
    %531 = arith.maximumf %529, %530 : vector<32x256xf32>
    %532 = arith.truncf %531 : vector<32x256xf32> to vector<32x256xbf16>
    %c1_153 = arith.constant 1 : index
    %c0_154 = arith.constant 0 : index
    %c0_155 = arith.constant 0 : index
    %533 = vector.load %arg24[%c1_153, %c0_154, %c0_155] : memref<3x256x256xbf16, #tpu.memory_space<vmem>>, vector<1x256x256xbf16>
    %534 = vector.shape_cast %533 : vector<1x256x256xbf16> to vector<256x256xbf16>
    %cst_156 = arith.constant dense<0.000000e+00> : vector<32x256xf32>
    %535 = tpu.matmul %532, %534, %cst_156 {dimension_numbers = #tpu.dot_dimension_numbers<[1], [0], [0], [1], [0, 0, 1, 1], [], []>} : vector<32x256xbf16>, vector<256x256xbf16>, vector<32x256xf32> -> vector<32x256xf32>
    %c1_157 = arith.constant 1 : index
    %c0_158 = arith.constant 0 : index
    %c0_159 = arith.constant 0 : index
    %536 = vector.load %arg25[%c1_157, %c0_158, %c0_159] : memref<3x1x256xf32, #tpu.memory_space<vmem>>, vector<1x1x256xf32>
    %537 = vector.shape_cast %536 : vector<1x1x256xf32> to vector<1x256xf32>
    %538 = vector.broadcast %537 : vector<1x256xf32> to vector<32x256xf32>
    %539 = arith.addf %535, %538 : vector<32x256xf32>
    %540 = arith.addf %539, %521 : vector<32x256xf32>
    %541 = arith.truncf %540 : vector<32x256xf32> to vector<32x256xbf16>
    %c2_160 = arith.constant 2 : index
    %c0_161 = arith.constant 0 : index
    %c0_162 = arith.constant 0 : index
    %542 = vector.load %arg22[%c2_160, %c0_161, %c0_162] : memref<3x256x256xbf16, #tpu.memory_space<vmem>>, vector<1x256x256xbf16>
    %543 = vector.shape_cast %542 : vector<1x256x256xbf16> to vector<256x256xbf16>
    %cst_163 = arith.constant dense<0.000000e+00> : vector<32x256xf32>
    %544 = tpu.matmul %541, %543, %cst_163 {dimension_numbers = #tpu.dot_dimension_numbers<[1], [0], [0], [1], [0, 0, 1, 1], [], []>} : vector<32x256xbf16>, vector<256x256xbf16>, vector<32x256xf32> -> vector<32x256xf32>
    %c2_164 = arith.constant 2 : index
    %c0_165 = arith.constant 0 : index
    %c0_166 = arith.constant 0 : index
    %545 = vector.load %arg23[%c2_164, %c0_165, %c0_166] : memref<3x1x256xf32, #tpu.memory_space<vmem>>, vector<1x1x256xf32>
    %546 = vector.shape_cast %545 : vector<1x1x256xf32> to vector<1x256xf32>
    %547 = vector.broadcast %546 : vector<1x256xf32> to vector<32x256xf32>
    %548 = arith.addf %544, %547 : vector<32x256xf32>
    %cst_167 = arith.constant 0.000000e+00 : f32
    %549 = vector.broadcast %cst_167 : f32 to vector<32x256xf32>
    %550 = arith.maximumf %548, %549 : vector<32x256xf32>
    %551 = arith.truncf %550 : vector<32x256xf32> to vector<32x256xbf16>
    %c2_168 = arith.constant 2 : index
    %c0_169 = arith.constant 0 : index
    %c0_170 = arith.constant 0 : index
    %552 = vector.load %arg24[%c2_168, %c0_169, %c0_170] : memref<3x256x256xbf16, #tpu.memory_space<vmem>>, vector<1x256x256xbf16>
    %553 = vector.shape_cast %552 : vector<1x256x256xbf16> to vector<256x256xbf16>
    %cst_171 = arith.constant dense<0.000000e+00> : vector<32x256xf32>
    %554 = tpu.matmul %551, %553, %cst_171 {dimension_numbers = #tpu.dot_dimension_numbers<[1], [0], [0], [1], [0, 0, 1, 1], [], []>} : vector<32x256xbf16>, vector<256x256xbf16>, vector<32x256xf32> -> vector<32x256xf32>
    %c2_172 = arith.constant 2 : index
    %c0_173 = arith.constant 0 : index
    %c0_174 = arith.constant 0 : index
    %555 = vector.load %arg25[%c2_172, %c0_173, %c0_174] : memref<3x1x256xf32, #tpu.memory_space<vmem>>, vector<1x1x256xf32>
    %556 = vector.shape_cast %555 : vector<1x1x256xf32> to vector<1x256xf32>
    %557 = vector.broadcast %556 : vector<1x256xf32> to vector<32x256xf32>
    %558 = arith.addf %554, %557 : vector<32x256xf32>
    %559 = arith.addf %558, %540 : vector<32x256xf32>
    %560 = arith.truncf %559 : vector<32x256xf32> to vector<32x256xbf16>
    %c0_175 = arith.constant 0 : index
    %c0_176 = arith.constant 0 : index
    %561 = vector.load %arg26[%c0_175, %c0_176] : memref<256x128xbf16, #tpu.memory_space<vmem>>, vector<256x128xbf16>
    %cst_177 = arith.constant dense<0.000000e+00> : vector<32x128xf32>
    %562 = tpu.matmul %560, %561, %cst_177 {dimension_numbers = #tpu.dot_dimension_numbers<[1], [0], [0], [1], [0, 0, 1, 1], [], []>} : vector<32x256xbf16>, vector<256x128xbf16>, vector<32x128xf32> -> vector<32x128xf32>
    %c0_178 = arith.constant 0 : index
    %c0_179 = arith.constant 0 : index
    %563 = vector.load %arg27[%c0_178, %c0_179] : memref<1x128xf32, #tpu.memory_space<vmem>>, vector<1x128xf32>
    %564 = vector.broadcast %563 : vector<1x128xf32> to vector<32x128xf32>
    %565 = arith.addf %562, %564 : vector<32x128xf32>
    %c0_180 = arith.constant 0 : index
    %c0_181 = arith.constant 0 : index
    %566 = vector.load %arg28[%c0_180, %c0_181] : memref<32x128xf32, #tpu.memory_space<vmem>>, vector<32x128xf32>
    tpu.vector_store %arg28[%c0_180, %c0_181], %565 {strides = array<i32>} : memref<32x128xf32, #tpu.memory_space<vmem>>, vector<32x128xf32>,
    return
  }
}

</mosaic_0001>

<llo_original>
// kernel: stgsat_forward.1
$region0: #{stgsat_forward.1}
  #allocation0 [shape = 'u32[]', space=smem, size = 0x4, offset = 0x4, fixed_abs, tag = 'smem constant byte address 0x4 - core index']
  #allocation1 [shape = 'u32[144,128]{1,0:T(1,128)}', space=vmem, size = 0x12000, scoped, tag = 'internal scratch']
  #allocation2 [shape = 'f32[16,256]{1,0:T(8,128)}', space=vmem, size = 0x4000, scoped, tag = 'scratch operand']
  #allocation3 [shape = 'f32[32,128]{1,0:T(8,128)}', space=vmem, size = 0x4000, scoped, tag = 'scratch operand']
  %s0 = inlined_call_operand.vmem [shape: f32[32,24], index: 0, kind: input, shape index: {}]
  %s1 = inlined_call_operand.vmem [shape: f32[32,96], index: 1, kind: input, shape index: {}]
  %s2 = inlined_call_operand.vmem [shape: f32[32,32], index: 2, kind: input, shape index: {}]
  %s3 = inlined_call_operand.vmem [shape: f32[16,16], index: 3, kind: input, shape index: {}]
  %s4 = inlined_call_operand.vmem [shape: bf16[24,128], index: 4, kind: input, shape index: {}]
  %s5 = inlined_call_operand.vmem [shape: f32[1,128], index: 5, kind: input, shape index: {}]
  %s6 = inlined_call_operand.vmem [shape: bf16[128,32], index: 6, kind: input, shape index: {}]
  %s7 = inlined_call_operand.vmem [shape: f32[1,32], index: 7, kind: input, shape index: {}]
  %s8 = inlined_call_operand.vmem [shape: bf16[128,32], index: 8, kind: input, shape index: {}]
  %s9 = inlined_call_operand.vmem [shape: f32[1,32], index: 9, kind: input, shape index: {}]
  %s10 = inlined_call_operand.vmem [shape: bf16[32,32], index: 10, kind: input, shape index: {}]
  %s11 = inlined_call_operand.vmem [shape: f32[2,16], index: 11, kind: input, shape index: {}]
  %s12 = inlined_call_operand.vmem [shape: f32[2,32], index: 12, kind: input, shape index: {}]
  %s13 = inlined_call_operand.vmem [shape: bf16[32,128], index: 13, kind: input, shape index: {}]
  %s14 = inlined_call_operand.vmem [shape: f32[1,128], index: 14, kind: input, shape index: {}]
  %s15 = inlined_call_operand.vmem [shape: bf16[256,32], index: 15, kind: input, shape index: {}]
  %s16 = inlined_call_operand.vmem [shape: f32[1,32], index: 16, kind: input, shape index: {}]
  %s17 = inlined_call_operand.vmem [shape: bf16[32,32], index: 17, kind: input, shape index: {}]
  %s18 = inlined_call_operand.vmem [shape: f32[2,16], index: 18, kind: input, shape index: {}]
  %s19 = inlined_call_operand.vmem [shape: f32[2,32], index: 19, kind: input, shape index: {}]
  %s20 = inlined_call_operand.vmem [shape: bf16[32,256], index: 20, kind: input, shape index: {}]
  %s21 = inlined_call_operand.vmem [shape: f32[1,256], index: 21, kind: input, shape index: {}]
  %s22 = inlined_call_operand.vmem [shape: bf16[3,256,256], index: 22, kind: input, shape index: {}]
  %s23 = inlined_call_operand.vmem [shape: f32[3,1,256], index: 23, kind: input, shape index: {}]
  %s24 = inlined_call_operand.vmem [shape: bf16[3,256,256], index: 24, kind: input, shape index: {}]
  %s25 = inlined_call_operand.vmem [shape: f32[3,1,256], index: 25, kind: input, shape index: {}]
  %s26 = inlined_call_operand.vmem [shape: bf16[256,128], index: 26, kind: input, shape index: {}]
  %s27 = inlined_call_operand.vmem [shape: f32[1,128], index: 27, kind: input, shape index: {}]
  %s28 = inlined_call_operand.vmem [shape: f32[32,128], index: 28, kind: output, shape index: {}]
  %s29 = sld [smem:[#allocation0]]
  $region122: #{stgsat_forward.1} parent=0
    _
  %s31 = ssub.s32 1, %s29
  %s32 = scalar_select 0, %s31, %s29
  // Predicated region
  $region2: #{stgsat_forward.1} parent=0 // pred_check
    _
  $region3: #{stgsat_forward.1} parent=0 // pred_check_branch
    %34 = sbr.rel (0) target = $region5
  $region4: #{stgsat_forward.1} parent=0 // pred_region
    _
  $region5: #{stgsat_forward.1} parent=0 // pred_fallthru
    _
  // Predicated region
  $region6: #{stgsat_forward.1} parent=0 // pred_check
    _
  $region7: #{stgsat_forward.1} parent=0 // pred_check_branch
    %36 = sbr.rel (0) target = $region9
  $region8: #{stgsat_forward.1} parent=0 // pred_region
    _
  $region9: #{stgsat_forward.1} parent=0 // pred_fallthru
    _
  // Predicated region
  $region10: #{stgsat_forward.1} parent=0 // pred_check
    _
  $region11: #{stgsat_forward.1} parent=0 // pred_check_branch
    %38 = sbr.rel (0) target = $region13
  $region12: #{stgsat_forward.1} parent=0 // pred_region
    _
  $region13: #{stgsat_forward.1} parent=0 // pred_fallthru
    _
  // Predicated region
  $region14: #{stgsat_forward.1} parent=0 // pred_check
    _
  $region15: #{stgsat_forward.1} parent=0 // pred_check_branch
    %40 = sbr.rel (0) target = $region17
  $region16: #{stgsat_forward.1} parent=0 // pred_region
    _
  $region17: #{stgsat_forward.1} parent=0 // pred_fallthru
    _
  // Predicated region
  $region18: #{stgsat_forward.1} parent=0 // pred_check
    _
  $region19: #{stgsat_forward.1} parent=0 // pred_check_branch
    %42 = sbr.rel (0) target = $region21
  $region20: #{stgsat_forward.1} parent=0 // pred_region
    _
  $region21: #{stgsat_forward.1} parent=0 // pred_fallthru
    _
  // Predicated region
  $region22: #{stgsat_forward.1} parent=0 // pred_check
    _
  $region23: #{stgsat_forward.1} parent=0 // pred_check_branch
    %44 = sbr.rel (0) target = $region25
  $region24: #{stgsat_forward.1} parent=0 // pred_region
    _
  $region25: #{stgsat_forward.1} parent=0 // pred_fallthru
    _
  // Predicated region
  $region26: #{stgsat_forward.1} parent=0 // pred_check
    _
  $region27: #{stgsat_forward.1} parent=0 // pred_check_branch
    %46 = sbr.rel (0) target = $region29
  $region28: #{stgsat_forward.1} parent=0 // pred_region
    _
  $region29: #{stgsat_forward.1} parent=0 // pred_fallthru
    _
  // Predicated region
  $region30: #{stgsat_forward.1} parent=0 // pred_check
    _
  $region31: #{stgsat_forward.1} parent=0 // pred_check_branch
    %48 = sbr.rel (0) target = $region33
  $region32: #{stgsat_forward.1} parent=0 // pred_region
    _
  $region33: #{stgsat_forward.1} parent=0 // pred_fallthru
    _
  // Predicated region
  $region34: #{stgsat_forward.1} parent=0 // pred_check
    _
  $region35: #{stgsat_forward.1} parent=0 // pred_check_branch
    %50 = sbr.rel (0) target = $region37
  $region36: #{stgsat_forward.1} parent=0 // pred_region
    _
  $region37: #{stgsat_forward.1} parent=0 // pred_fallthru
    _
  // Predicated region
  $region38: #{stgsat_forward.1} parent=0 // pred_check
    _
  $region39: #{stgsat_forward.1} parent=0 // pred_check_branch
    %52 = sbr.rel (0) target = $region41
  $region40: #{stgsat_forward.1} parent=0 // pred_region
    _
  $region41: #{stgsat_forward.1} parent=0 // pred_fallthru
    _
  // Predicated region
  $region42: #{stgsat_forward.1} parent=0 // pred_check
    _
  $region43: #{stgsat_forward.1} parent=0 // pred_check_branch
    %54 = sbr.rel (0) target = $region45
  $region44: #{stgsat_forward.1} parent=0 // pred_region
    _
  $region45: #{stgsat_forward.1} parent=0 // pred_fallthru
    _
  // Predicated region
  $region46: #{stgsat_forward.1} parent=0 // pred_check
    _
  $region47: #{stgsat_forward.1} parent=0 // pred_check_branch
    %56 = sbr.rel (0) target = $region49
  $region48: #{stgsat_forward.1} parent=0 // pred_region
    _
  $region49: #{stgsat_forward.1} parent=0 // pred_fallthru
    _
  // Predicated region
  $region50: #{stgsat_forward.1} parent=0 // pred_check
    _
  $region51: #{stgsat_forward.1} parent=0 // pred_check_branch
    %58 = sbr.rel (0) target = $region53
  $region52: #{stgsat_forward.1} parent=0 // pred_region
    _
  $region53: #{stgsat_forward.1} parent=0 // pred_fallthru
    _
  // Predicated region
  $region54: #{stgsat_forward.1} parent=0 // pred_check
    _
  $region55: #{stgsat_forward.1} parent=0 // pred_check_branch
    %60 = sbr.rel (0) target = $region57
  $region56: #{stgsat_forward.1} parent=0 // pred_region
    _
  $region57: #{stgsat_forward.1} parent=0 // pred_fallthru
    _
  // Predicated region
  $region58: #{stgsat_forward.1} parent=0 // pred_check
    _
  $region59: #{stgsat_forward.1} parent=0 // pred_check_branch
    %62 = sbr.rel (0) target = $region61
  $region60: #{stgsat_forward.1} parent=0 // pred_region
    _
  $region61: #{stgsat_forward.1} parent=0 // pred_fallthru
    _
  // Predicated region
  $region62: #{stgsat_forward.1} parent=0 // pred_check
    _
  $region63: #{stgsat_forward.1} parent=0 // pred_check_branch
    %64 = sbr.rel (0) target = $region65
  $region64: #{stgsat_forward.1} parent=0 // pred_region
    _
  $region65: #{stgsat_forward.1} parent=0 // pred_fallthru
    _
  // Predicated region
  $region66: #{stgsat_forward.1} parent=0 // pred_check
    _
  $region67: #{stgsat_forward.1} parent=0 // pred_check_branch
    %66 = sbr.rel (0) target = $region69
  $region68: #{stgsat_forward.1} parent=0 // pred_region
    _
  $region69: #{stgsat_forward.1} parent=0 // pred_fallthru
    _
  // Predicated region
  $region70: #{stgsat_forward.1} parent=0 // pred_check
    _
  $region71: #{stgsat_forward.1} parent=0 // pred_check_branch
    %68 = sbr.rel (0) target = $region73
  $region72: #{stgsat_forward.1} parent=0 // pred_region
    _
  $region73: #{stgsat_forward.1} parent=0 // pred_fallthru
    _
  // Predicated region
  $region74: #{stgsat_forward.1} parent=0 // pred_check
    _
  $region75: #{stgsat_forward.1} parent=0 // pred_check_branch
    %70 = sbr.rel (0) target = $region77
  $region76: #{stgsat_forward.1} parent=0 // pred_region
    _
  $region77: #{stgsat_forward.1} parent=0 // pred_fallthru
    _
  // Predicated region
  $region78: #{stgsat_forward.1} parent=0 // pred_check
    _
  $region79: #{stgsat_forward.1} parent=0 // pred_check_branch
    %72 = sbr.rel (0) target = $region81
  $region80: #{stgsat_forward.1} parent=0 // pred_region
    _
  $region81: #{stgsat_forward.1} parent=0 // pred_fallthru
    _
  // Predicated region
  $region82: #{stgsat_forward.1} parent=0 // pred_check
    _
  $region83: #{stgsat_forward.1} parent=0 // pred_check_branch
    %74 = sbr.rel (0) target = $region85
  $region84: #{stgsat_forward.1} parent=0 // pred_region
    _
  $region85: #{stgsat_forward.1} parent=0 // pred_fallthru
    _
  // Predicated region
  $region86: #{stgsat_forward.1} parent=0 // pred_check
    _
  $region87: #{stgsat_forward.1} parent=0 // pred_check_branch
    %76 = sbr.rel (0) target = $region89
  $region88: #{stgsat_forward.1} parent=0 // pred_region
    _
  $region89: #{stgsat_forward.1} parent=0 // pred_fallthru
    _
  // Predicated region
  $region90: #{stgsat_forward.1} parent=0 // pred_check
    _
  $region91: #{stgsat_forward.1} parent=0 // pred_check_branch
    %78 = sbr.rel (0) target = $region93
  $region92: #{stgsat_forward.1} parent=0 // pred_region
    _
  $region93: #{stgsat_forward.1} parent=0 // pred_fallthru
    _
  // Predicated region
  $region94: #{stgsat_forward.1} parent=0 // pred_check
    _
  $region95: #{stgsat_forward.1} parent=0 // pred_check_branch
    %80 = sbr.rel (0) target = $region97
  $region96: #{stgsat_forward.1} parent=0 // pred_region
    _
  $region97: #{stgsat_forward.1} parent=0 // pred_fallthru
    _
  // Predicated region
  $region98: #{stgsat_forward.1} parent=0 // pred_check
    _
  $region99: #{stgsat_forward.1} parent=0 // pred_check_branch
    %82 = sbr.rel (0) target = $region101
  $region100: #{stgsat_forward.1} parent=0 // pred_region
    _
  $region101: #{stgsat_forward.1} parent=0 // pred_fallthru
    _
  // Predicated region
  $region102: #{stgsat_forward.1} parent=0 // pred_check
    _
  $region103: #{stgsat_forward.1} parent=0 // pred_check_branch
    %84 = sbr.rel (0) target = $region105
  $region104: #{stgsat_forward.1} parent=0 // pred_region
    _
  $region105: #{stgsat_forward.1} parent=0 // pred_fallthru
    _
  // Predicated region
  $region106: #{stgsat_forward.1} parent=0 // pred_check
    _
  $region107: #{stgsat_forward.1} parent=0 // pred_check_branch
    %86 = sbr.rel (0) target = $region109
  $region108: #{stgsat_forward.1} parent=0 // pred_region
    _
  $region109: #{stgsat_forward.1} parent=0 // pred_fallthru
    _
  // Predicated region
  $region110: #{stgsat_forward.1} parent=0 // pred_check
    _
  $region111: #{stgsat_forward.1} parent=0 // pred_check_branch
    %88 = sbr.rel (0) target = $region113
  $region112: #{stgsat_forward.1} parent=0 // pred_region
    _
  $region113: #{stgsat_forward.1} parent=0 // pred_fallthru
    _
  %v90 = vld [vmem:[%s0] sm:$0xff]
  %v91 = vld [vmem:[%s0 + $0x8] sm:$0xff]
  %v92 = vld [vmem:[%s0 + $0x10] sm:$0xff]
  %v93 = vld [vmem:[%s0 + $0x18] sm:$0xff]
  %v94 = vpack.c.bf16 %v91, %v90
  %v95 = vpack.c.bf16 %v93, %v92
  %v96 = vld [vmem:[%s4] sm:$0xf]
  %v97 = vld [vmem:[%s4 + $0x4] sm:$0xf]
  %v98 = vld [vmem:[%s4 + $0x8] sm:$0xf]
  %v99 = vld [vmem:[%s5] sm:$0x1]
  %v101 = vlaneseq
  %v102 = vshrl.u32 %v101, 7
  %v103 = vsub.s32 0, %v102
  %v104 = vrot.slane %v99, %v103
  %v109 = vunpack.c.l.b16 %v96
  %v110 = vunpack.c.l.b16 %v97
  %v111 = vunpack.c.l.b16 %v98
  %v112 = vpack.c.b16 %v110, %v109
  %v113 = vpack.c.b16 %v111, %v111
  %vm115 = vcmask 195584
  %v117 = vsel %vm115, %v94, 0
  %v120 = vsel %vm115, %v95, 0
  %vm122 = vcmask 1043456
  %v124 = vsel %vm122, %v113, 0
  %126 = vmatprep.subr.bf16.mxu0 0
  %127 = vmatpush1.bf16.msra.mxu0 %v112
  %128 = vmatprep.subr.bf16.mxu0 0
  %129 = vmatpush1.bf16.msra.mxu0 %v124
  %130 = vmatprep.subr.bf16.mxu0 0
  %131 = vmatpush1.bf16.msra.mxu0 0
  %132 = vmatprep.subr.bf16.mxu0 0
  %133 = vmatpush1.bf16.msra.mxu0 0
  %134 = vmatprep.subr.bf16.mxu0 0
  %135 = vmatpush1.bf16.msra.mxu0 0
  %136 = vmatprep.subr.bf16.mxu0 0
  %137 = vmatpush1.bf16.msra.mxu0 0
  %138 = vmatprep.subr.bf16.mxu0 0
  %139 = vmatpush1.bf16.msra.mxu0 0
  %140 = vmatprep.subr.bf16.mxu0 0
  %141 = vmatpush1.bf16.msra.mxu0 0
  %142 = vmatprep.subr.bf16.mxu0 0
  %143 = vmatpush1.bf16.msra.mxu0 0
  %144 = vmatprep.subr.bf16.mxu0 0
  %145 = vmatpush1.bf16.msra.mxu0 0
  %146 = vmatprep.subr.bf16.mxu0 0
  %147 = vmatpush1.bf16.msra.mxu0 0
  %148 = vmatprep.subr.bf16.mxu0 0
  %149 = vmatpush1.bf16.msra.mxu0 0
  %150 = vmatprep.subr.bf16.mxu0 0
  %151 = vmatpush1.bf16.msra.mxu0 0
  %152 = vmatprep.subr.bf16.mxu0 0
  %153 = vmatpush1.bf16.msra.mxu0 0
  %154 = vmatprep.subr.bf16.mxu0 0
  %155 = vmatpush1.bf16.msra.mxu0 0
  %156 = vmatprep.subr.bf16.mxu0 0
  %157 = vmatpush1.bf16.msra.mxu0 0
  %158 = vmatprep.mubr.bf16.mxu0 0
  %159 = vmatmul.mubr.bf16.gmra.mrb[0].mxu0 %v117
  %v160 = vpop.f32.mrb[0].mxu0
  %v161 = vadd.f32 %v104, %v160
  %v162 = vpop.f32.mrb[0].mxu0
  %v163 = vpop.f32.mrb[0].mxu0
  %v164 = vadd.f32 %v104, %v163
  %v165 = vpop.f32.mrb[0].mxu0
  %166 = vmatprep.mubr.bf16.mxu0 0
  %167 = vmatmul.mubr.bf16.gmra.mrb[0].mxu0 %v120
  %v168 = vpop.f32.mrb[0].mxu0
  %v169 = vadd.f32 %v104, %v168
  %v170 = vpop.f32.mrb[0].mxu0
  %v171 = vpop.f32.mrb[0].mxu0
  %v172 = vadd.f32 %v104, %v171
  %v173 = vpop.f32.mrb[0].mxu0
  %174 = vdwg.mxu0
  %v175 = vpack.c.bf16 %v164, %v161
  %v176 = vpack.c.bf16 %v172, %v169
  %v177 = vld [vmem:[%s6] sm:$0xf]
  %v178 = vld [vmem:[%s6 + $0x4] sm:$0xf]
  %v179 = vld [vmem:[%s6 + $0x8] sm:$0xf]
  %v180 = vld [vmem:[%s6 + $0xc] sm:$0xf]
  %v181 = vld [vmem:[%s6 + $0x10] sm:$0xf]
  %v182 = vld [vmem:[%s6 + $0x14] sm:$0xf]
  %v183 = vld [vmem:[%s6 + $0x18] sm:$0xf]
  %v184 = vld [vmem:[%s6 + $0x1c] sm:$0xf]
  %v185 = vld [vmem:[%s6 + $0x20] sm:$0xf]
  %v186 = vld [vmem:[%s6 + $0x24] sm:$0xf]
  %v187 = vld [vmem:[%s6 + $0x28] sm:$0xf]
  %v188 = vld [vmem:[%s6 + $0x2c] sm:$0xf]
  %v189 = vld [vmem:[%s6 + $0x30] sm:$0xf]
  %v190 = vld [vmem:[%s6 + $0x34] sm:$0xf]
  %v191 = vld [vmem:[%s6 + $0x38] sm:$0xf]
  %v192 = vld [vmem:[%s6 + $0x3c] sm:$0xf]
  %v193 = vld [vmem:[%s7] sm:$0x1]
  %v195 = vlaneseq
  %v196 = vshrl.u32 %v195, 7
  %v197 = vsub.s32 0, %v196
  %v198 = vrot.slane %v193, %v197
  %v216 = vunpack.c.l.b16 %v177
  %v217 = vunpack.c.l.b16 %v178
  %v218 = vunpack.c.l.b16 %v179
  %v219 = vunpack.c.l.b16 %v180
  %v220 = vunpack.c.l.b16 %v181
  %v221 = vunpack.c.l.b16 %v182
  %v222 = vunpack.c.l.b16 %v183
  %v223 = vunpack.c.l.b16 %v184
  %v224 = vunpack.c.l.b16 %v185
  %v225 = vunpack.c.l.b16 %v186
  %v226 = vunpack.c.l.b16 %v187
  %v227 = vunpack.c.l.b16 %v188
  %v228 = vunpack.c.l.b16 %v189
  %v229 = vunpack.c.l.b16 %v190
  %v230 = vunpack.c.l.b16 %v191
  %v231 = vunpack.c.l.b16 %v192
  %v232 = vpack.c.b16 %v217, %v216
  %v233 = vpack.c.b16 %v219, %v218
  %v234 = vpack.c.b16 %v221, %v220
  %v235 = vpack.c.b16 %v223, %v222
  %v236 = vpack.c.b16 %v225, %v224
  %v237 = vpack.c.b16 %v227, %v226
  %v238 = vpack.c.b16 %v229, %v228
  %v239 = vpack.c.b16 %v231, %v230
  %248 = vmatprep.subr.bf16.mxu0 0
  %249 = vmatpush1.bf16.msra.mxu0 %v232
  %250 = vmatprep.subr.bf16.mxu0 0
  %251 = vmatpush1.bf16.msra.mxu0 %v233
  %252 = vmatprep.subr.bf16.mxu0 0
  %253 = vmatpush1.bf16.msra.mxu0 %v234
  %254 = vmatprep.subr.bf16.mxu0 0
  %255 = vmatpush1.bf16.msra.mxu0 %v235
  %256 = vmatprep.subr.bf16.mxu0 0
  %257 = vmatpush1.bf16.msra.mxu0 %v236
  %258 = vmatprep.subr.bf16.mxu0 0
  %259 = vmatpush1.bf16.msra.mxu0 %v237
  %260 = vmatprep.subr.bf16.mxu0 0
  %261 = vmatpush1.bf16.msra.mxu0 %v238
  %262 = vmatprep.subr.bf16.mxu0 0
  %263 = vmatpush1.bf16.msra.mxu0 %v239
  %264 = vmatprep.subr.bf16.mxu0 0
  %265 = vmatpush1.bf16.msra.mxu0 0
  %266 = vmatprep.subr.bf16.mxu0 0
  %267 = vmatpush1.bf16.msra.mxu0 0
  %268 = vmatprep.subr.bf16.mxu0 0
  %269 = vmatpush1.bf16.msra.mxu0 0
  %270 = vmatprep.subr.bf16.mxu0 0
  %271 = vmatpush1.bf16.msra.mxu0 0
  %272 = vmatprep.subr.bf16.mxu0 0
  %273 = vmatpush1.bf16.msra.mxu0 0
  %274 = vmatprep.subr.bf16.mxu0 0
  %275 = vmatpush1.bf16.msra.mxu0 0
  %276 = vmatprep.subr.bf16.mxu0 0
  %277 = vmatpush1.bf16.msra.mxu0 0
  %278 = vmatprep.subr.bf16.mxu0 0
  %279 = vmatpush1.bf16.msra.mxu0 0
  %280 = vmatprep.mubr.bf16.mxu0 0
  %281 = vmatmul.mubr.bf16.gmra.mrb[0].mxu0 %v175
  %v282 = vpop.f32.mrb[0].mxu0
  %v283 = vadd.f32 %v198, %v282
  %v284 = vpop.f32.mrb[0].mxu0
  %v285 = vpop.f32.mrb[0].mxu0
  %v286 = vadd.f32 %v198, %v285
  %v287 = vpop.f32.mrb[0].mxu0
  %288 = vmatprep.mubr.bf16.mxu0 0
  %289 = vmatmul.mubr.bf16.gmra.mrb[0].mxu0 %v176
  %v290 = vpop.f32.mrb[0].mxu0
  %v291 = vadd.f32 %v198, %v290
  %v292 = vpop.f32.mrb[0].mxu0
  %v293 = vpop.f32.mrb[0].mxu0
  %v294 = vadd.f32 %v198, %v293
  %v295 = vpop.f32.mrb[0].mxu0
  %296 = vdwg.mxu0
  %v297 = vld [vmem:[%s8] sm:$0xf]
  %v298 = vld [vmem:[%s8 + $0x4] sm:$0xf]
  %v299 = vld [vmem:[%s8 + $0x8] sm:$0xf]
  %v300 = vld [vmem:[%s8 + $0xc] sm:$0xf]
  %v301 = vld [vmem:[%s8 + $0x10] sm:$0xf]
  %v302 = vld [vmem:[%s8 + $0x14] sm:$0xf]
  %v303 = vld [vmem:[%s8 + $0x18] sm:$0xf]
  %v304 = vld [vmem:[%s8 + $0x1c] sm:$0xf]
  %v305 = vld [vmem:[%s8 + $0x20] sm:$0xf]
  %v306 = vld [vmem:[%s8 + $0x24] sm:$0xf]
  %v307 = vld [vmem:[%s8 + $0x28] sm:$0xf]
  %v308 = vld [vmem:[%s8 + $0x2c] sm:$0xf]
  %v309 = vld [vmem:[%s8 + $0x30] sm:$0xf]
  %v310 = vld [vmem:[%s8 + $0x34] sm:$0xf]
  %v311 = vld [vmem:[%s8 + $0x38] sm:$0xf]
  %v312 = vld [vmem:[%s8 + $0x3c] sm:$0xf]
  %v313 = vld [vmem:[%s9] sm:$0x1]
  %v315 = vlaneseq
  %v316 = vshrl.u32 %v315, 7
  %v317 = vsub.s32 0, %v316
  %v318 = vrot.slane %v313, %v317
  %v336 = vunpack.c.l.b16 %v297
  %v337 = vunpack.c.l.b16 %v298
  %v338 = vunpack.c.l.b16 %v299
  %v339 = vunpack.c.l.b16 %v300
  %v340 = vunpack.c.l.b16 %v301
  %v341 = vunpack.c.l.b16 %v302
  %v342 = vunpack.c.l.b16 %v303
  %v343 = vunpack.c.l.b16 %v304
  %v344 = vunpack.c.l.b16 %v305
  %v345 = vunpack.c.l.b16 %v306
  %v346 = vunpack.c.l.b16 %v307
  %v347 = vunpack.c.l.b16 %v308
  %v348 = vunpack.c.l.b16 %v309
  %v349 = vunpack.c.l.b16 %v310
  %v350 = vunpack.c.l.b16 %v311
  %v351 = vunpack.c.l.b16 %v312
  %v352 = vpack.c.b16 %v337, %v336
  %v353 = vpack.c.b16 %v339, %v338
  %v354 = vpack.c.b16 %v341, %v340
  %v355 = vpack.c.b16 %v343, %v342
  %v356 = vpack.c.b16 %v345, %v344
  %v357 = vpack.c.b16 %v347, %v346
  %v358 = vpack.c.b16 %v349, %v348
  %v359 = vpack.c.b16 %v351, %v350
  %368 = vmatprep.subr.bf16.mxu0 0
  %369 = vmatpush1.bf16.msra.mxu0 %v352
  %370 = vmatprep.subr.bf16.mxu0 0
  %371 = vmatpush1.bf16.msra.mxu0 %v353
  %372 = vmatprep.subr.bf16.mxu0 0
  %373 = vmatpush1.bf16.msra.mxu0 %v354
  %374 = vmatprep.subr.bf16.mxu0 0
  %375 = vmatpush1.bf16.msra.mxu0 %v355
  %376 = vmatprep.subr.bf16.mxu0 0
  %377 = vmatpush1.bf16.msra.mxu0 %v356
  %378 = vmatprep.subr.bf16.mxu0 0
  %379 = vmatpush1.bf16.msra.mxu0 %v357
  %380 = vmatprep.subr.bf16.mxu0 0
  %381 = vmatpush1.bf16.msra.mxu0 %v358
  %382 = vmatprep.subr.bf16.mxu0 0
  %383 = vmatpush1.bf16.msra.mxu0 %v359
  %384 = vmatprep.subr.bf16.mxu0 0
  %385 = vmatpush1.bf16.msra.mxu0 0
  %386 = vmatprep.subr.bf16.mxu0 0
  %387 = vmatpush1.bf16.msra.mxu0 0
  %388 = vmatprep.subr.bf16.mxu0 0
  %389 = vmatpush1.bf16.msra.mxu0 0
  %390 = vmatprep.subr.bf16.mxu0 0
  %391 = vmatpush1.bf16.msra.mxu0 0
  %392 = vmatprep.subr.bf16.mxu0 0
  %393 = vmatpush1.bf16.msra.mxu0 0
  %394 = vmatprep.subr.bf16.mxu0 0
  %395 = vmatpush1.bf16.msra.mxu0 0
  %396 = vmatprep.subr.bf16.mxu0 0
  %397 = vmatpush1.bf16.msra.mxu0 0
  %398 = vmatprep.subr.bf16.mxu0 0
  %399 = vmatpush1.bf16.msra.mxu0 0
  %400 = vmatprep.mubr.bf16.mxu0 0
  %401 = vmatmul.mubr.bf16.gmra.mrb[0].mxu0 %v175
  %v402 = vpop.f32.mrb[0].mxu0
  %v403 = vadd.f32 %v318, %v402
  %v404 = vpop.f32.mrb[0].mxu0
  %v405 = vpop.f32.mrb[0].mxu0
  %v406 = vadd.f32 %v318, %v405
  %v407 = vpop.f32.mrb[0].mxu0
  %408 = vmatprep.mubr.bf16.mxu0 0
  %409 = vmatmul.mubr.bf16.gmra.mrb[0].mxu0 %v176
  %v410 = vpop.f32.mrb[0].mxu0
  %v411 = vadd.f32 %v318, %v410
  %v412 = vpop.f32.mrb[0].mxu0
  %v413 = vpop.f32.mrb[0].mxu0
  %v414 = vadd.f32 %v318, %v413
  %v415 = vpop.f32.mrb[0].mxu0
  %416 = vdwg.mxu0
  %v417 = vld [vmem:[%s10] sm:$0xf]
  %v418 = vld [vmem:[%s10 + $0x4] sm:$0xf]
  %v419 = vld [vmem:[%s10 + $0x8] sm:$0xf]
  %v420 = vld [vmem:[%s10 + $0xc] sm:$0xf]
  %v421 = vld [vmem:[%s11] sm:$0x3]
  %v422 = vld [vmem:[%s12] sm:$0x3]
  %v423 = vld [vmem:[%s2] sm:$0xff]
  %v424 = vld [vmem:[%s2 + $0x8] sm:$0xff]
  %v425 = vld [vmem:[%s2 + $0x10] sm:$0xff]
  %v426 = vld [vmem:[%s2 + $0x18] sm:$0xff]
  %v427 = vld [vmem:[%s13] sm:$0xf]
  %v428 = vld [vmem:[%s13 + $0x4] sm:$0xf]
  %v429 = vld [vmem:[%s13 + $0x8] sm:$0xf]
  %v430 = vld [vmem:[%s13 + $0xc] sm:$0xf]
  %v431 = vld [vmem:[%s14] sm:$0x1]
  %v432 = vpack.c.bf16 %v406, %v403
  %v433 = vpack.c.bf16 %v414, %v411
  %v438 = vunpack.c.l.b16 %v417
  %v439 = vunpack.c.l.b16 %v418
  %v440 = vunpack.c.l.b16 %v419
  %v441 = vunpack.c.l.b16 %v420
  %v442 = vpack.c.b16 %v439, %v438
  %v443 = vpack.c.b16 %v441, %v440
  %vm446 = vcmask 261120
  %v448 = vsel %vm446, %v432, 0
  %v451 = vsel %vm446, %v433, 0
  %453 = vmatprep.subr.bf16.mxu0 0
  %454 = vmatpush1.bf16.msra.mxu0 %v442
  %455 = vmatprep.subr.bf16.mxu0 0
  %456 = vmatpush1.bf16.msra.mxu0 %v443
  %457 = vmatprep.subr.bf16.mxu0 0
  %458 = vmatpush1.bf16.msra.mxu0 0
  %459 = vmatprep.subr.bf16.mxu0 0
  %460 = vmatpush1.bf16.msra.mxu0 0
  %461 = vmatprep.subr.bf16.mxu0 0
  %462 = vmatpush1.bf16.msra.mxu0 0
  %463 = vmatprep.subr.bf16.mxu0 0
  %464 = vmatpush1.bf16.msra.mxu0 0
  %465 = vmatprep.subr.bf16.mxu0 0
  %466 = vmatpush1.bf16.msra.mxu0 0
  %467 = vmatprep.subr.bf16.mxu0 0
  %468 = vmatpush1.bf16.msra.mxu0 0
  %469 = vmatprep.subr.bf16.mxu0 0
  %470 = vmatpush1.bf16.msra.mxu0 0
  %471 = vmatprep.subr.bf16.mxu0 0
  %472 = vmatpush1.bf16.msra.mxu0 0
  %473 = vmatprep.subr.bf16.mxu0 0
  %474 = vmatpush1.bf16.msra.mxu0 0
  %475 = vmatprep.subr.bf16.mxu0 0
  %476 = vmatpush1.bf16.msra.mxu0 0
  %477 = vmatprep.subr.bf16.mxu0 0
  %478 = vmatpush1.bf16.msra.mxu0 0
  %479 = vmatprep.subr.bf16.mxu0 0
  %480 = vmatpush1.bf16.msra.mxu0 0
  %481 = vmatprep.subr.bf16.mxu0 0
  %482 = vmatpush1.bf16.msra.mxu0 0
  %483 = vmatprep.subr.bf16.mxu0 0
  %484 = vmatpush1.bf16.msra.mxu0 0
  %485 = vmatprep.mubr.bf16.mxu0 0
  %486 = vmatmul.mubr.bf16.gmra.mrb[0].mxu0 %v448
  %v487 = vpop.f32.mrb[0].mxu0
  %v488 = vadd.f32 0.0, %v487
  %v489 = vpop.f32.mrb[0].mxu0
  %v490 = vpop.f32.mrb[0].mxu0
  %v491 = vadd.f32 0.0, %v490
  %v492 = vpop.f32.mrb[0].mxu0
  %493 = vmatprep.mubr.bf16.mxu0 0
  %494 = vmatmul.mubr.bf16.gmra.mrb[0].mxu0 %v451
  %v495 = vpop.f32.mrb[0].mxu0
  %v496 = vadd.f32 0.0, %v495
  %v497 = vpop.f32.mrb[0].mxu0
  %v498 = vpop.f32.mrb[0].mxu0
  %v499 = vadd.f32 0.0, %v498
  %v500 = vpop.f32.mrb[0].mxu0
  %501 = vdwg.mxu0
  %v503 = vsel %vm446, %v422, 0
  %v506 = vsel %vm446, %v488, 0
  %v509 = vsel %vm446, %v491, 0
  %v512 = vsel %vm446, %v496, 0
  %v515 = vsel %vm446, %v499, 0
  %517 = vmatprep.subr.mxu0 0.0
  %518 = vmatpush1.xpose.msra.mxu0 %v506
  %519 = vmatprep.subr.mxu0 0.0
  %520 = vmatpush1.xpose.msra.mxu0 %v509
  %521 = vmatprep.subr.mxu0 0.0
  %522 = vmatpush1.xpose.msra.mxu0 %v512
  %523 = vmatprep.subr.mxu0 0.0
  %524 = vmatpush1.xpose.msra.mxu0 %v515
  %525 = vmatprep.subr.mxu0 0.0
  %526 = vmatpush1.xpose.msra.mxu0 0.0
  %527 = vmatprep.subr.mxu0 0.0
  %528 = vmatpush1.xpose.msra.mxu0 0.0
  %529 = vmatprep.subr.mxu0 0.0
  %530 = vmatpush1.xpose.msra.mxu0 0.0
  %531 = vmatprep.subr.mxu0 0.0
  %532 = vmatpush1.xpose.msra.mxu0 0.0
  %533 = vmatprep.subr.mxu0 0.0
  %534 = vmatpush1.xpose.msra.mxu0 0.0
  %535 = vmatprep.subr.mxu0 0.0
  %536 = vmatpush1.xpose.msra.mxu0 0.0
  %537 = vmatprep.subr.mxu0 0.0
  %538 = vmatpush1.xpose.msra.mxu0 0.0
  %539 = vmatprep.subr.mxu0 0.0
  %540 = vmatpush1.xpose.msra.mxu0 0.0
  %541 = vmatprep.subr.mxu0 0.0
  %542 = vmatpush1.xpose.msra.mxu0 0.0
  %543 = vmatprep.subr.mxu0 0.0
  %544 = vmatpush1.xpose.msra.mxu0 0.0
  %545 = vmatprep.subr.mxu0 0.0
  %546 = vmatpush1.xpose.msra.mxu0 0.0
  %547 = vmatprep.subr.mxu0 0.0
  %548 = vmatpush1.xpose.msra.mxu0 0.0
  %549 = vmatprep.subr.mxu0 0.0
  %550 = vmatpush1.xpose.msra.mxu0 0.0
  %551 = vmatprep.subr.mxu0 0.0
  %552 = vmatpush1.xpose.msra.mxu0 0.0
  %553 = vmatprep.subr.mxu0 0.0
  %554 = vmatpush1.xpose.msra.mxu0 0.0
  %555 = vmatprep.subr.mxu0 0.0
  %556 = vmatpush1.xpose.msra.mxu0 0.0
  %557 = vmatprep.subr.mxu0 0.0
  %558 = vmatpush1.xpose.msra.mxu0 0.0
  %559 = vmatprep.subr.mxu0 0.0
  %560 = vmatpush1.xpose.msra.mxu0 0.0
  %561 = vmatprep.subr.mxu0 0.0
  %562 = vmatpush1.xpose.msra.mxu0 0.0
  %563 = vmatprep.subr.mxu0 0.0
  %564 = vmatpush1.xpose.msra.mxu0 0.0
  %565 = vmatprep.subr.mxu0 0.0
  %566 = vmatpush1.xpose.msra.mxu0 0.0
  %567 = vmatprep.subr.mxu0 0.0
  %568 = vmatpush1.xpose.msra.mxu0 0.0
  %569 = vmatprep.subr.mxu0 0.0
  %570 = vmatpush1.xpose.msra.mxu0 0.0
  %571 = vmatprep.subr.mxu0 0.0
  %572 = vmatpush1.xpose.msra.mxu0 0.0
  %573 = vmatprep.subr.mxu0 0.0
  %574 = vmatpush1.xpose.msra.mxu0 0.0
  %575 = vmatprep.subr.mxu0 0.0
  %576 = vmatpush1.xpose.msra.mxu0 0.0
  %577 = vmatprep.subr.mxu0 0.0
  %578 = vmatpush1.xpose.msra.mxu0 0.0
  %579 = vmatprep.subr.mxu0 0.0
  %580 = vmatpush1.xpose.msra.mxu0 0.0
  %581 = vmatprep.mubr.f32.mxu0 0.0
  %582 = vmatmul.mubr.f32.gmra.mrb[0].mxu0 %v503
  %v583 = vpop.f32.mrb[0].mxu0
  %v584 = vadd.f32 0.0, %v583
  %v585 = vpop.f32.mrb[0].mxu0
  %586 = vdwg.mxu0
  %v587 = vlaneseq
  %v588 = vshrl.u32 %v587, 7
  %v589 = vsub.s32 0, %v588
  %v590 = vrot.slane %v421, %v589
  %v591 = vmul.f32 %v488, %v590
  %v592 = vmul.f32 %v491, %v590
  %v593 = vmul.f32 %v496, %v590
  %v594 = vmul.f32 %v499, %v590
  %vm595 = vcmask 130048
  %v596 = vsel %vm595, %v591, 0.0
  %597 = vadd.xlane.f32.xlu0 %v596
  %v598 = vpop.xlane.xlu0 %597
  %v599 = vsel %vm595, %v592, 0.0
  %600 = vadd.xlane.f32.xlu0 %v599
  %v601 = vpop.xlane.xlu0 %600
  %v602 = vsel %vm595, %v593, 0.0
  %603 = vadd.xlane.f32.xlu0 %v602
  %v604 = vpop.xlane.xlu0 %603
  %v605 = vsel %vm595, %v594, 0.0
  %606 = vadd.xlane.f32.xlu0 %v605
  %v607 = vpop.xlane.xlu0 %606
  %v608 = vlaneseq
  %v609 = vshrl.u32 %v608, 7
  %v610 = vsub.s32 0, %v609
  %v611 = vrot.slane %v584, %v610
  %v612 = vadd.f32 %v598, %v611
  %v613 = vadd.f32 %v601, %v611
  %v614 = vadd.f32 %v604, %v611
  %v615 = vadd.f32 %v607, %v611
  %vm616 = vcmp.gt.f32.partialorder %v612, 0.0
  %vm617 = vcmp.gt.f32.partialorder %v613, 0.0
  %vm618 = vcmp.gt.f32.partialorder %v614, 0.0
  %vm619 = vcmp.gt.f32.partialorder %v615, 0.0
  %v620 = vmul.f32 %v612, 0.2
  %v621 = vmul.f32 %v613, 0.2
  %v622 = vmul.f32 %v614, 0.2
  %v623 = vmul.f32 %v615, 0.2
  %v624 = vsel %vm616, %v612, %v620
  %v625 = vsel %vm617, %v613, %v621
  %v626 = vsel %vm618, %v614, %v622
  %v627 = vsel %vm619, %v615, %v623
  %vm628 = vcmp.gt.f32.partialorder %v423, 0.0
  %vm629 = vcmp.gt.f32.partialorder %v424, 0.0
  %vm630 = vcmp.gt.f32.partialorder %v425, 0.0
  %vm631 = vcmp.gt.f32.partialorder %v426, 0.0
  %v632 = vsel %vm628, %v624, -1e+30
  %v633 = vsel %vm629, %v625, -1e+30
  %v634 = vsel %vm630, %v626, -1e+30
  %v635 = vsel %vm631, %v627, -1e+30
  %v636 = vsel %vm446, %v632, -inf
  %637 = vmax.xlane.f32.xlu0 %v636
  %v638 = vpop.xlane.xlu0 %637
  %v639 = vsel %vm446, %v633, -inf
  %640 = vmax.xlane.f32.xlu0 %v639
  %v641 = vpop.xlane.xlu0 %640
  %v642 = vsel %vm446, %v634, -inf
  %643 = vmax.xlane.f32.xlu0 %v642
  %v644 = vpop.xlane.xlu0 %643
  %v645 = vsel %vm446, %v635, -inf
  %646 = vmax.xlane.f32.xlu0 %v645
  %v647 = vpop.xlane.xlu0 %646
  %v648 = vsub.f32 %v632, %v638
  %v649 = vsub.f32 %v633, %v641
  %v650 = vsub.f32 %v634, %v644
  %v651 = vsub.f32 %v635, %v647
  %v652 = vmul.f32 %v648, 1.442695
  %v653 = vpow.pop %v652
  %v654 = vmul.f32 %v649, 1.442695
  %v655 = vpow.pop %v654
  %v656 = vmul.f32 %v650, 1.442695
  %v657 = vpow.pop %v656
  %v658 = vmul.f32 %v651, 1.442695
  %v659 = vpow.pop %v658
  %v660 = vsel %vm446, %v653, 0.0
  %661 = vadd.xlane.f32.xlu0 %v660
  %v662 = vpop.xlane.xlu0 %661
  %v663 = vsel %vm446, %v655, 0.0
  %664 = vadd.xlane.f32.xlu0 %v663
  %v665 = vpop.xlane.xlu0 %664
  %v666 = vsel %vm446, %v657, 0.0
  %667 = vadd.xlane.f32.xlu0 %v666
  %v668 = vpop.xlane.xlu0 %667
  %v669 = vsel %vm446, %v659, 0.0
  %670 = vadd.xlane.f32.xlu0 %v669
  %v671 = vpop.xlane.xlu0 %670
  %v672 = vrcp.pop %v662
  %v673 = vmul.f32 %v653, %v672
  %v674 = vrcp.pop %v665
  %v675 = vmul.f32 %v655, %v674
  %v676 = vrcp.pop %v668
  %v677 = vmul.f32 %v657, %v676
  %v678 = vrcp.pop %v671
  %v679 = vmul.f32 %v659, %v678
  %v680 = vpack.c.bf16 %v675, %v673
  %v681 = vpack.c.bf16 %v679, %v677
  %v682 = vpack.c.bf16 %v491, %v488
  %v683 = vpack.c.bf16 %v499, %v496
  %v685 = vsel %vm446, %v680, 0
  %v688 = vsel %vm446, %v681, 0
  %690 = vmatprep.subr.bf16.mxu0 0
  %691 = vmatpush1.bf16.msra.mxu0 %v682
  %692 = vmatprep.subr.bf16.mxu0 0
  %693 = vmatpush1.bf16.msra.mxu0 %v683
  %694 = vmatprep.subr.bf16.mxu0 0
  %695 = vmatpush1.bf16.msra.mxu0 0
  %696 = vmatprep.subr.bf16.mxu0 0
  %697 = vmatpush1.bf16.msra.mxu0 0
  %698 = vmatprep.subr.bf16.mxu0 0
  %699 = vmatpush1.bf16.msra.mxu0 0
  %700 = vmatprep.subr.bf16.mxu0 0
  %701 = vmatpush1.bf16.msra.mxu0 0
  %702 = vmatprep.subr.bf16.mxu0 0
  %703 = vmatpush1.bf16.msra.mxu0 0
  %704 = vmatprep.subr.bf16.mxu0 0
  %705 = vmatpush1.bf16.msra.mxu0 0
  %706 = vmatprep.subr.bf16.mxu0 0
  %707 = vmatpush1.bf16.msra.mxu0 0
  %708 = vmatprep.subr.bf16.mxu0 0
  %709 = vmatpush1.bf16.msra.mxu0 0
  %710 = vmatprep.subr.bf16.mxu0 0
  %711 = vmatpush1.bf16.msra.mxu0 0
  %712 = vmatprep.subr.bf16.mxu0 0
  %713 = vmatpush1.bf16.msra.mxu0 0
  %714 = vmatprep.subr.bf16.mxu0 0
  %715 = vmatpush1.bf16.msra.mxu0 0
  %716 = vmatprep.subr.bf16.mxu0 0
  %717 = vmatpush1.bf16.msra.mxu0 0
  %718 = vmatprep.subr.bf16.mxu0 0
  %719 = vmatpush1.bf16.msra.mxu0 0
  %720 = vmatprep.subr.bf16.mxu0 0
  %721 = vmatpush1.bf16.msra.mxu0 0
  %722 = vmatprep.mubr.bf16.mxu0 0
  %723 = vmatmul.mubr.bf16.gmra.mrb[0].mxu0 %v685
  %v724 = vpop.f32.mrb[0].mxu0
  %v725 = vadd.f32 0.0, %v724
  %v726 = vpop.f32.mrb[0].mxu0
  %v727 = vpop.f32.mrb[0].mxu0
  %v728 = vadd.f32 0.0, %v727
  %v729 = vpop.f32.mrb[0].mxu0
  %730 = vmatprep.mubr.bf16.mxu0 0
  %731 = vmatmul.mubr.bf16.gmra.mrb[0].mxu0 %v688
  %v732 = vpop.f32.mrb[0].mxu0
  %v733 = vadd.f32 0.0, %v732
  %v734 = vpop.f32.mrb[0].mxu0
  %v735 = vpop.f32.mrb[0].mxu0
  %v736 = vadd.f32 0.0, %v735
  %v737 = vpop.f32.mrb[0].mxu0
  %738 = vdwg.mxu0
  %v739 = vpack.c.bf16 %v728, %v725
  %v740 = vpack.c.bf16 %v736, %v733
  %v741 = vlaneseq
  %v742 = vshrl.u32 %v741, 7
  %v743 = vsub.s32 1, %v742
  %v744 = vrot.slane %v421, %v743
  %746 = vrot.lane.b32.xlu0 %v744, 16
  %v747 = vpop.permute.xlu0 %746
  %v749 = vmul.f32 %v488, %v747
  %v750 = vmul.f32 %v491, %v747
  %v751 = vmul.f32 %v496, %v747
  %v752 = vmul.f32 %v499, %v747
  %757 = vrot.lane.b32.xlu0 %v749, 112
  %v758 = vpop.permute.xlu0 %757
  %759 = vrot.lane.b32.xlu0 %v750, 112
  %v760 = vpop.permute.xlu0 %759
  %761 = vrot.lane.b32.xlu0 %v751, 112
  %v762 = vpop.permute.xlu0 %761
  %763 = vrot.lane.b32.xlu0 %v752, 112
  %v764 = vpop.permute.xlu0 %763
  %v769 = vsel %vm595, %v758, 0.0
  %770 = vadd.xlane.f32.xlu0 %v769
  %v771 = vpop.xlane.xlu0 %770
  %v772 = vsel %vm595, %v760, 0.0
  %773 = vadd.xlane.f32.xlu0 %v772
  %v774 = vpop.xlane.xlu0 %773
  %v775 = vsel %vm595, %v762, 0.0
  %776 = vadd.xlane.f32.xlu0 %v775
  %v777 = vpop.xlane.xlu0 %776
  %v778 = vsel %vm595, %v764, 0.0
  %779 = vadd.xlane.f32.xlu0 %v778
  %v780 = vpop.xlane.xlu0 %779
  %v781 = vlaneseq
  %v782 = vshrl.u32 %v781, 7
  %v783 = vsub.s32 1, %v782
  %v784 = vrot.slane %v584, %v783
  %v785 = vadd.f32 %v771, %v784
  %v786 = vadd.f32 %v774, %v784
  %v787 = vadd.f32 %v777, %v784
  %v788 = vadd.f32 %v780, %v784
  %vm789 = vcmp.gt.f32.partialorder %v785, 0.0
  %vm790 = vcmp.gt.f32.partialorder %v786, 0.0
  %vm791 = vcmp.gt.f32.partialorder %v787, 0.0
  %vm792 = vcmp.gt.f32.partialorder %v788, 0.0
  %v793 = vmul.f32 %v785, 0.2
  %v794 = vmul.f32 %v786, 0.2
  %v795 = vmul.f32 %v787, 0.2
  %v796 = vmul.f32 %v788, 0.2
  %v797 = vsel %vm789, %v785, %v793
  %v798 = vsel %vm790, %v786, %v794
  %v799 = vsel %vm791, %v787, %v795
  %v800 = vsel %vm792, %v788, %v796
  %v801 = vsel %vm628, %v797, -1e+30
  %v802 = vsel %vm629, %v798, -1e+30
  %v803 = vsel %vm630, %v799, -1e+30
  %v804 = vsel %vm631, %v800, -1e+30
  %v805 = vsel %vm446, %v801, -inf
  %806 = vmax.xlane.f32.xlu0 %v805
  %v807 = vpop.xlane.xlu0 %806
  %v808 = vsel %vm446, %v802, -inf
  %809 = vmax.xlane.f32.xlu0 %v808
  %v810 = vpop.xlane.xlu0 %809
  %v811 = vsel %vm446, %v803, -inf
  %812 = vmax.xlane.f32.xlu0 %v811
  %v813 = vpop.xlane.xlu0 %812
  %v814 = vsel %vm446, %v804, -inf
  %815 = vmax.xlane.f32.xlu0 %v814
  %v816 = vpop.xlane.xlu0 %815
  %v817 = vsub.f32 %v801, %v807
  %v818 = vsub.f32 %v802, %v810
  %v819 = vsub.f32 %v803, %v813
  %v820 = vsub.f32 %v804, %v816
  %v821 = vmul.f32 %v817, 1.442695
  %v822 = vpow.pop %v821
  %v823 = vmul.f32 %v818, 1.442695
  %v824 = vpow.pop %v823
  %v825 = vmul.f32 %v819, 1.442695
  %v826 = vpow.pop %v825
  %v827 = vmul.f32 %v820, 1.442695
  %v828 = vpow.pop %v827
  %v829 = vsel %vm446, %v822, 0.0
  %830 = vadd.xlane.f32.xlu0 %v829
  %v831 = vpop.xlane.xlu0 %830
  %v832 = vsel %vm446, %v824, 0.0
  %833 = vadd.xlane.f32.xlu0 %v832
  %v834 = vpop.xlane.xlu0 %833
  %v835 = vsel %vm446, %v826, 0.0
  %836 = vadd.xlane.f32.xlu0 %v835
  %v837 = vpop.xlane.xlu0 %836
  %v838 = vsel %vm446, %v828, 0.0
  %839 = vadd.xlane.f32.xlu0 %v838
  %v840 = vpop.xlane.xlu0 %839
  %v841 = vrcp.pop %v831
  %v842 = vmul.f32 %v822, %v841
  %v843 = vrcp.pop %v834
  %v844 = vmul.f32 %v824, %v843
  %v845 = vrcp.pop %v837
  %v846 = vmul.f32 %v826, %v845
  %v847 = vrcp.pop %v840
  %v848 = vmul.f32 %v828, %v847
  %v849 = vpack.c.bf16 %v844, %v842
  %v850 = vpack.c.bf16 %v848, %v846
  %853 = vrot.lane.b32.xlu0 %v682, 112
  %v854 = vpop.permute.xlu0 %853
  %855 = vrot.lane.b32.xlu0 %v683, 112
  %v856 = vpop.permute.xlu0 %855
  %v860 = vsel %vm446, %v849, 0
  %v863 = vsel %vm446, %v850, 0
  %865 = vmatprep.subr.bf16.mxu0 0
  %866 = vmatpush1.bf16.msra.mxu0 %v854
  %867 = vmatprep.subr.bf16.mxu0 0
  %868 = vmatpush1.bf16.msra.mxu0 %v856
  %869 = vmatprep.subr.bf16.mxu0 0
  %870 = vmatpush1.bf16.msra.mxu0 0
  %871 = vmatprep.subr.bf16.mxu0 0
  %872 = vmatpush1.bf16.msra.mxu0 0
  %873 = vmatprep.subr.bf16.mxu0 0
  %874 = vmatpush1.bf16.msra.mxu0 0
  %875 = vmatprep.subr.bf16.mxu0 0
  %876 = vmatpush1.bf16.msra.mxu0 0
  %877 = vmatprep.subr.bf16.mxu0 0
  %878 = vmatpush1.bf16.msra.mxu0 0
  %879 = vmatprep.subr.bf16.mxu0 0
  %880 = vmatpush1.bf16.msra.mxu0 0
  %881 = vmatprep.subr.bf16.mxu0 0
  %882 = vmatpush1.bf16.msra.mxu0 0
  %883 = vmatprep.subr.bf16.mxu0 0
  %884 = vmatpush1.bf16.msra.mxu0 0
  %885 = vmatprep.subr.bf16.mxu0 0
  %886 = vmatpush1.bf16.msra.mxu0 0
  %887 = vmatprep.subr.bf16.mxu0 0
  %888 = vmatpush1.bf16.msra.mxu0 0
  %889 = vmatprep.subr.bf16.mxu0 0
  %890 = vmatpush1.bf16.msra.mxu0 0
  %891 = vmatprep.subr.bf16.mxu0 0
  %892 = vmatpush1.bf16.msra.mxu0 0
  %893 = vmatprep.subr.bf16.mxu0 0
  %894 = vmatpush1.bf16.msra.mxu0 0
  %895 = vmatprep.subr.bf16.mxu0 0
  %896 = vmatpush1.bf16.msra.mxu0 0
  %897 = vmatprep.mubr.bf16.mxu0 0
  %898 = vmatmul.mubr.bf16.gmra.mrb[0].mxu0 %v860
  %v899 = vpop.f32.mrb[0].mxu0
  %v900 = vadd.f32 0.0, %v899
  %v901 = vpop.f32.mrb[0].mxu0
  %v902 = vpop.f32.mrb[0].mxu0
  %v903 = vadd.f32 0.0, %v902
  %v904 = vpop.f32.mrb[0].mxu0
  %905 = vmatprep.mubr.bf16.mxu0 0
  %906 = vmatmul.mubr.bf16.gmra.mrb[0].mxu0 %v863
  %v907 = vpop.f32.mrb[0].mxu0
  %v908 = vadd.f32 0.0, %v907
  %v909 = vpop.f32.mrb[0].mxu0
  %v910 = vpop.f32.mrb[0].mxu0
  %v911 = vadd.f32 0.0, %v910
  %v912 = vpop.f32.mrb[0].mxu0
  %913 = vdwg.mxu0
  %v914 = vpack.c.bf16 %v903, %v900
  %v915 = vpack.c.bf16 %v911, %v908
  %v918 = vunpack.c.l.b16 %v429
  %v919 = vunpack.c.l.b16 %v430
  %v920 = vpack.c.b16 %v919, %v918
  %v923 = vsel %vm595, %v914, 0
  %v926 = vsel %vm595, %v915, 0
  %928 = vmatprep.subr.bf16.mxu0 0
  %929 = vmatpush1.bf16.msra.mxu0 %v920
  %930 = vmatprep.subr.bf16.mxu0 0
  %931 = vmatpush1.bf16.msra.mxu0 0
  %932 = vmatprep.subr.bf16.mxu0 0
  %933 = vmatpush1.bf16.msra.mxu0 0
  %934 = vmatprep.subr.bf16.mxu0 0
  %935 = vmatpush1.bf16.msra.mxu0 0
  %936 = vmatprep.subr.bf16.mxu0 0
  %937 = vmatpush1.bf16.msra.mxu0 0
  %938 = vmatprep.subr.bf16.mxu0 0
  %939 = vmatpush1.bf16.msra.mxu0 0
  %940 = vmatprep.subr.bf16.mxu0 0
  %941 = vmatpush1.bf16.msra.mxu0 0
  %942 = vmatprep.subr.bf16.mxu0 0
  %943 = vmatpush1.bf16.msra.mxu0 0
  %944 = vmatprep.subr.bf16.mxu0 0
  %945 = vmatpush1.bf16.msra.mxu0 0
  %946 = vmatprep.subr.bf16.mxu0 0
  %947 = vmatpush1.bf16.msra.mxu0 0
  %948 = vmatprep.subr.bf16.mxu0 0
  %949 = vmatpush1.bf16.msra.mxu0 0
  %950 = vmatprep.subr.bf16.mxu0 0
  %951 = vmatpush1.bf16.msra.mxu0 0
  %952 = vmatprep.subr.bf16.mxu0 0
  %953 = vmatpush1.bf16.msra.mxu0 0
  %954 = vmatprep.subr.bf16.mxu0 0
  %955 = vmatpush1.bf16.msra.mxu0 0
  %956 = vmatprep.subr.bf16.mxu0 0
  %957 = vmatpush1.bf16.msra.mxu0 0
  %958 = vmatprep.subr.bf16.mxu0 0
  %959 = vmatpush1.bf16.msra.mxu0 0
  %960 = vmatprep.mubr.bf16.mxu0 0
  %961 = vmatmul.mubr.bf16.gmra.mrb[0].mxu0 %v923
  %v962 = vpop.f32.mrb[0].mxu0
  %v963 = vadd.f32 0.0, %v962
  %v964 = vpop.f32.mrb[0].mxu0
  %v965 = vpop.f32.mrb[0].mxu0
  %v966 = vadd.f32 0.0, %v965
  %v967 = vpop.f32.mrb[0].mxu0
  %968 = vmatprep.mubr.bf16.mxu0 0
  %969 = vmatmul.mubr.bf16.gmra.mrb[0].mxu0 %v926
  %v970 = vpop.f32.mrb[0].mxu0
  %v971 = vadd.f32 0.0, %v970
  %v972 = vpop.f32.mrb[0].mxu0
  %v973 = vpop.f32.mrb[0].mxu0
  %v974 = vadd.f32 0.0, %v973
  %v975 = vpop.f32.mrb[0].mxu0
  %976 = vdwg.mxu0
  %v979 = vunpack.c.l.b16 %v427
  %v980 = vunpack.c.l.b16 %v428
  %v981 = vpack.c.b16 %v980, %v979
  %v984 = vsel %vm595, %v739, 0
  %v987 = vsel %vm595, %v740, 0
  %989 = vmatprep.subr.bf16.mxu0 0
  %990 = vmatpush1.bf16.msra.mxu0 %v981
  %991 = vmatprep.subr.bf16.mxu0 0
  %992 = vmatpush1.bf16.msra.mxu0 0
  %993 = vmatprep.subr.bf16.mxu0 0
  %994 = vmatpush1.bf16.msra.mxu0 0
  %995 = vmatprep.subr.bf16.mxu0 0
  %996 = vmatpush1.bf16.msra.mxu0 0
  %997 = vmatprep.subr.bf16.mxu0 0
  %998 = vmatpush1.bf16.msra.mxu0 0
  %999 = vmatprep.subr.bf16.mxu0 0
  %1000 = vmatpush1.bf16.msra.mxu0 0
  %1001 = vmatprep.subr.bf16.mxu0 0
  %1002 = vmatpush1.bf16.msra.mxu0 0
  %1003 = vmatprep.subr.bf16.mxu0 0
  %1004 = vmatpush1.bf16.msra.mxu0 0
  %1005 = vmatprep.subr.bf16.mxu0 0
  %1006 = vmatpush1.bf16.msra.mxu0 0
  %1007 = vmatprep.subr.bf16.mxu0 0
  %1008 = vmatpush1.bf16.msra.mxu0 0
  %1009 = vmatprep.subr.bf16.mxu0 0
  %1010 = vmatpush1.bf16.msra.mxu0 0
  %1011 = vmatprep.subr.bf16.mxu0 0
  %1012 = vmatpush1.bf16.msra.mxu0 0
  %1013 = vmatprep.subr.bf16.mxu0 0
  %1014 = vmatpush1.bf16.msra.mxu0 0
  %1015 = vmatprep.subr.bf16.mxu0 0
  %1016 = vmatpush1.bf16.msra.mxu0 0
  %1017 = vmatprep.subr.bf16.mxu0 0
  %1018 = vmatpush1.bf16.msra.mxu0 0
  %1019 = vmatprep.subr.bf16.mxu0 0
  %1020 = vmatpush1.bf16.msra.mxu0 0
  %1021 = vmatprep.mubr.bf16.mxu0 0
  %1022 = vmatmul.mubr.bf16.gmra.mrb[0].mxu0 %v984
  %v1023 = vpop.f32.mrb[0].mxu0
  %v1024 = vadd.f32 %v963, %v1023
  %v1025 = vpop.f32.mrb[0].mxu0
  %v1026 = vpop.f32.mrb[0].mxu0
  %v1027 = vadd.f32 %v966, %v1026
  %v1028 = vpop.f32.mrb[0].mxu0
  %1029 = vmatprep.mubr.bf16.mxu0 0
  %1030 = vmatmul.mubr.bf16.gmra.mrb[0].mxu0 %v987
  %v1031 = vpop.f32.mrb[0].mxu0
  %v1032 = vadd.f32 %v971, %v1031
  %v1033 = vpop.f32.mrb[0].mxu0
  %v1034 = vpop.f32.mrb[0].mxu0
  %v1035 = vadd.f32 %v974, %v1034
  %v1036 = vpop.f32.mrb[0].mxu0
  %1037 = vdwg.mxu0
  %v1039 = vlaneseq
  %v1040 = vshrl.u32 %v1039, 7
  %v1041 = vsub.s32 0, %v1040
  %v1042 = vrot.slane %v431, %v1041
  %v1044 = vadd.f32 %v1024, %v1042
  %v1045 = vadd.f32 %v1027, %v1042
  %v1046 = vadd.f32 %v1032, %v1042
  %v1047 = vadd.f32 %v1035, %v1042
  %v1049 = vrot.slane %v1044, 2
  %1050 = vrot.lane.b32.xlu0 %v1049, 16
  %v1051 = vpop.permute.xlu0 %1050
  %v1053 = vrot.slane %v1044, 4
  %1054 = vrot.lane.b32.xlu0 %v1053, 32
  %v1055 = vpop.permute.xlu0 %1054
  %v1057 = vrot.slane %v1044, 6
  %1058 = vrot.lane.b32.xlu0 %v1057, 48
  %v1059 = vpop.permute.xlu0 %1058
  %1062 = vrot.lane.b32.xlu0 %v1045, 64
  %v1063 = vpop.permute.xlu0 %1062
  %v1065 = vrot.slane %v1045, 2
  %1066 = vrot.lane.b32.xlu0 %v1065, 80
  %v1067 = vpop.permute.xlu0 %1066
  %v1069 = vrot.slane %v1045, 4
  %1070 = vrot.lane.b32.xlu0 %v1069, 96
  %v1071 = vpop.permute.xlu0 %1070
  %v1073 = vrot.slane %v1045, 6
  %1074 = vrot.lane.b32.xlu0 %v1073, 112
  %v1075 = vpop.permute.xlu0 %1074
  %v1078 = vrot.slane %v1046, 2
  %1079 = vrot.lane.b32.xlu0 %v1078, 16
  %v1080 = vpop.permute.xlu0 %1079
  %v1082 = vrot.slane %v1046, 4
  %1083 = vrot.lane.b32.xlu0 %v1082, 32
  %v1084 = vpop.permute.xlu0 %1083
  %v1086 = vrot.slane %v1046, 6
  %1087 = vrot.lane.b32.xlu0 %v1086, 48
  %v1088 = vpop.permute.xlu0 %1087
  %1091 = vrot.lane.b32.xlu0 %v1047, 64
  %v1092 = vpop.permute.xlu0 %1091
  %v1094 = vrot.slane %v1047, 2
  %1095 = vrot.lane.b32.xlu0 %v1094, 80
  %v1096 = vpop.permute.xlu0 %1095
  %v1098 = vrot.slane %v1047, 4
  %1099 = vrot.lane.b32.xlu0 %v1098, 96
  %v1100 = vpop.permute.xlu0 %1099
  %v1102 = vrot.slane %v1047, 6
  %1103 = vrot.lane.b32.xlu0 %v1102, 112
  %v1104 = vpop.permute.xlu0 %1103
  %v1106 = vsel %vm595, %v1044, %v1051
  %v1107 = vsel %vm446, %v1106, %v1055
  %vm1108 = vcmask 392192
  %v1109 = vsel %vm1108, %v1107, %v1059
  %vm1110 = vcmask 523264
  %v1111 = vsel %vm1110, %v1109, %v1063
  %vm1112 = vcmask 654336
  %v1113 = vsel %vm1112, %v1111, %v1067
  %vm1114 = vcmask 785408
  %v1115 = vsel %vm1114, %v1113, %v1071
  %vm1116 = vcmask 916480
  %v1117 = vsel %vm1116, %v1115, %v1075
  %v1118 = vsel %vm595, %v1046, %v1080
  %v1119 = vsel %vm446, %v1118, %v1084
  %v1120 = vsel %vm1108, %v1119, %v1088
  %v1121 = vsel %vm1110, %v1120, %v1092
  %v1122 = vsel %vm1112, %v1121, %v1096
  %v1123 = vsel %vm1114, %v1122, %v1100
  %v1124 = vsel %vm1116, %v1123, %v1104
  %1125 = vst [vmem:[#allocation2] sm:$0x3] %v1117
  %1126 = vst [vmem:[#allocation2 + $0x8] sm:$0x3] %v1124
  %1127 = vrot.lane.b32.xlu0 %v1044, 112
  %v1128 = vpop.permute.xlu0 %1127
  %1131 = vrot.lane.b32.xlu0 %v1053, 16
  %v1132 = vpop.permute.xlu0 %1131
  %1134 = vrot.lane.b32.xlu0 %v1057, 32
  %v1135 = vpop.permute.xlu0 %1134
  %1137 = vrot.lane.b32.xlu0 %v1045, 48
  %v1138 = vpop.permute.xlu0 %1137
  %1140 = vrot.lane.b32.xlu0 %v1065, 64
  %v1141 = vpop.permute.xlu0 %1140
  %1143 = vrot.lane.b32.xlu0 %v1069, 80
  %v1144 = vpop.permute.xlu0 %1143
  %1146 = vrot.lane.b32.xlu0 %v1073, 96
  %v1147 = vpop.permute.xlu0 %1146
  %1149 = vrot.lane.b32.xlu0 %v1046, 112
  %v1150 = vpop.permute.xlu0 %1149
  %1153 = vrot.lane.b32.xlu0 %v1082, 16
  %v1154 = vpop.permute.xlu0 %1153
  %1156 = vrot.lane.b32.xlu0 %v1086, 32
  %v1157 = vpop.permute.xlu0 %1156
  %1159 = vrot.lane.b32.xlu0 %v1047, 48
  %v1160 = vpop.permute.xlu0 %1159
  %1162 = vrot.lane.b32.xlu0 %v1094, 64
  %v1163 = vpop.permute.xlu0 %1162
  %1165 = vrot.lane.b32.xlu0 %v1098, 80
  %v1166 = vpop.permute.xlu0 %1165
  %1168 = vrot.lane.b32.xlu0 %v1102, 96
  %v1169 = vpop.permute.xlu0 %1168
  %v1171 = vsel %vm595, %v1128, %v1049
  %v1172 = vsel %vm446, %v1171, %v1132
  %v1173 = vsel %vm1108, %v1172, %v1135
  %v1174 = vsel %vm1110, %v1173, %v1138
  %v1175 = vsel %vm1112, %v1174, %v1141
  %v1176 = vsel %vm1114, %v1175, %v1144
  %v1177 = vsel %vm1116, %v1176, %v1147
  %v1178 = vsel %vm595, %v1150, %v1078
  %v1179 = vsel %vm446, %v1178, %v1154
  %v1180 = vsel %vm1108, %v1179, %v1157
  %v1181 = vsel %vm1110, %v1180, %v1160
  %v1182 = vsel %vm1112, %v1181, %v1163
  %v1183 = vsel %vm1114, %v1182, %v1166
  %v1184 = vsel %vm1116, %v1183, %v1169
  %v1187 = vrot.slane %v1177, 6
  %v1188 = vrot.slane %v1184, 6
  %1191 = vst [vmem:[#allocation2] sm:$0xc] %v1187
  %1192 = vst [vmem:[#allocation2 + $0x8] sm:$0xc] %v1188
  %1193 = vrot.lane.b32.xlu0 %v1044, 96
  %v1194 = vpop.permute.xlu0 %1193
  %1196 = vrot.lane.b32.xlu0 %v1049, 112
  %v1197 = vpop.permute.xlu0 %1196
  %1200 = vrot.lane.b32.xlu0 %v1057, 16
  %v1201 = vpop.permute.xlu0 %1200
  %1203 = vrot.lane.b32.xlu0 %v1045, 32
  %v1204 = vpop.permute.xlu0 %1203
  %1206 = vrot.lane.b32.xlu0 %v1065, 48
  %v1207 = vpop.permute.xlu0 %1206
  %1209 = vrot.lane.b32.xlu0 %v1069, 64
  %v1210 = vpop.permute.xlu0 %1209
  %1212 = vrot.lane.b32.xlu0 %v1073, 80
  %v1213 = vpop.permute.xlu0 %1212
  %1215 = vrot.lane.b32.xlu0 %v1046, 96
  %v1216 = vpop.permute.xlu0 %1215
  %1218 = vrot.lane.b32.xlu0 %v1078, 112
  %v1219 = vpop.permute.xlu0 %1218
  %1222 = vrot.lane.b32.xlu0 %v1086, 16
  %v1223 = vpop.permute.xlu0 %1222
  %1225 = vrot.lane.b32.xlu0 %v1047, 32
  %v1226 = vpop.permute.xlu0 %1225
  %1228 = vrot.lane.b32.xlu0 %v1094, 48
  %v1229 = vpop.permute.xlu0 %1228
  %1231 = vrot.lane.b32.xlu0 %v1098, 64
  %v1232 = vpop.permute.xlu0 %1231
  %1234 = vrot.lane.b32.xlu0 %v1102, 80
  %v1235 = vpop.permute.xlu0 %1234
  %v1237 = vsel %vm595, %v1194, %v1197
  %v1238 = vsel %vm446, %v1237, %v1053
  %v1239 = vsel %vm1108, %v1238, %v1201
  %v1240 = vsel %vm1110, %v1239, %v1204
  %v1241 = vsel %vm1112, %v1240, %v1207
  %v1242 = vsel %vm1114, %v1241, %v1210
  %v1243 = vsel %vm1116, %v1242, %v1213
  %v1244 = vsel %vm595, %v1216, %v1219
  %v1245 = vsel %vm446, %v1244, %v1082
  %v1246 = vsel %vm1108, %v1245, %v1223
  %v1247 = vsel %vm1110, %v1246, %v1226
  %v1248 = vsel %vm1112, %v1247, %v1229
  %v1249 = vsel %vm1114, %v1248, %v1232
  %v1250 = vsel %vm1116, %v1249, %v1235
  %v1253 = vrot.slane %v1243, 4
  %v1254 = vrot.slane %v1250, 4
  %1257 = vst [vmem:[#allocation2] sm:$0x30] %v1253
  %1258 = vst [vmem:[#allocation2 + $0x8] sm:$0x30] %v1254
  %1259 = vrot.lane.b32.xlu0 %v1044, 80
  %v1260 = vpop.permute.xlu0 %1259
  %1262 = vrot.lane.b32.xlu0 %v1049, 96
  %v1263 = vpop.permute.xlu0 %1262
  %1265 = vrot.lane.b32.xlu0 %v1053, 112
  %v1266 = vpop.permute.xlu0 %1265
  %1269 = vrot.lane.b32.xlu0 %v1045, 16
  %v1270 = vpop.permute.xlu0 %1269
  %1272 = vrot.lane.b32.xlu0 %v1065, 32
  %v1273 = vpop.permute.xlu0 %1272
  %1275 = vrot.lane.b32.xlu0 %v1069, 48
  %v1276 = vpop.permute.xlu0 %1275
  %1278 = vrot.lane.b32.xlu0 %v1073, 64
  %v1279 = vpop.permute.xlu0 %1278
  %1281 = vrot.lane.b32.xlu0 %v1046, 80
  %v1282 = vpop.permute.xlu0 %1281
  %1284 = vrot.lane.b32.xlu0 %v1078, 96
  %v1285 = vpop.permute.xlu0 %1284
  %1287 = vrot.lane.b32.xlu0 %v1082, 112
  %v1288 = vpop.permute.xlu0 %1287
  %1291 = vrot.lane.b32.xlu0 %v1047, 16
  %v1292 = vpop.permute.xlu0 %1291
  %1294 = vrot.lane.b32.xlu0 %v1094, 32
  %v1295 = vpop.permute.xlu0 %1294
  %1297 = vrot.lane.b32.xlu0 %v1098, 48
  %v1298 = vpop.permute.xlu0 %1297
  %1300 = vrot.lane.b32.xlu0 %v1102, 64
  %v1301 = vpop.permute.xlu0 %1300
  %v1303 = vsel %vm595, %v1260, %v1263
  %v1304 = vsel %vm446, %v1303, %v1266
  %v1305 = vsel %vm1108, %v1304, %v1057
  %v1306 = vsel %vm1110, %v1305, %v1270
  %v1307 = vsel %vm1112, %v1306, %v1273
  %v1308 = vsel %vm1114, %v1307, %v1276
  %v1309 = vsel %vm1116, %v1308, %v1279
  %v1310 = vsel %vm595, %v1282, %v1285
  %v1311 = vsel %vm446, %v1310, %v1288
  %v1312 = vsel %vm1108, %v1311, %v1086
  %v1313 = vsel %vm1110, %v1312, %v1292
  %v1314 = vsel %vm1112, %v1313, %v1295
  %v1315 = vsel %vm1114, %v1314, %v1298
  %v1316 = vsel %vm1116, %v1315, %v1301
  %v1319 = vrot.slane %v1309, 2
  %v1320 = vrot.slane %v1316, 2
  %1323 = vst [vmem:[#allocation2] sm:$0xc0] %v1319
  %1324 = vst [vmem:[#allocation2 + $0x8] sm:$0xc0] %v1320
  %1325 = vrot.lane.b32.xlu0 %v1044, 64
  %v1326 = vpop.permute.xlu0 %1325
  %1328 = vrot.lane.b32.xlu0 %v1049, 80
  %v1329 = vpop.permute.xlu0 %1328
  %1331 = vrot.lane.b32.xlu0 %v1053, 96
  %v1332 = vpop.permute.xlu0 %1331
  %1334 = vrot.lane.b32.xlu0 %v1057, 112
  %v1335 = vpop.permute.xlu0 %1334
  %1337 = vrot.lane.b32.xlu0 %v1065, 16
  %v1338 = vpop.permute.xlu0 %1337
  %1340 = vrot.lane.b32.xlu0 %v1069, 32
  %v1341 = vpop.permute.xlu0 %1340
  %1343 = vrot.lane.b32.xlu0 %v1073, 48
  %v1344 = vpop.permute.xlu0 %1343
  %1346 = vrot.lane.b32.xlu0 %v1046, 64
  %v1347 = vpop.permute.xlu0 %1346
  %1349 = vrot.lane.b32.xlu0 %v1078, 80
  %v1350 = vpop.permute.xlu0 %1349
  %1352 = vrot.lane.b32.xlu0 %v1082, 96
  %v1353 = vpop.permute.xlu0 %1352
  %1355 = vrot.lane.b32.xlu0 %v1086, 112
  %v1356 = vpop.permute.xlu0 %1355
  %1358 = vrot.lane.b32.xlu0 %v1094, 16
  %v1359 = vpop.permute.xlu0 %1358
  %1361 = vrot.lane.b32.xlu0 %v1098, 32
  %v1362 = vpop.permute.xlu0 %1361
  %1364 = vrot.lane.b32.xlu0 %v1102, 48
  %v1365 = vpop.permute.xlu0 %1364
  %v1367 = vsel %vm595, %v1326, %v1329
  %v1368 = vsel %vm446, %v1367, %v1332
  %v1369 = vsel %vm1108, %v1368, %v1335
  %v1370 = vsel %vm1110, %v1369, %v1045
  %v1371 = vsel %vm1112, %v1370, %v1338
  %v1372 = vsel %vm1114, %v1371, %v1341
  %v1373 = vsel %vm1116, %v1372, %v1344
  %v1374 = vsel %vm595, %v1347, %v1350
  %v1375 = vsel %vm446, %v1374, %v1353
  %v1376 = vsel %vm1108, %v1375, %v1356
  %v1377 = vsel %vm1110, %v1376, %v1047
  %v1378 = vsel %vm1112, %v1377, %v1359
  %v1379 = vsel %vm1114, %v1378, %v1362
  %v1380 = vsel %vm1116, %v1379, %v1365
  %1381 = vst [vmem:[#allocation2 + $0x10] sm:$0x3] %v1373
  %1382 = vst [vmem:[#allocation2 + $0x18] sm:$0x3] %v1380
  %1383 = vrot.lane.b32.xlu0 %v1044, 48
  %v1384 = vpop.permute.xlu0 %1383
  %1386 = vrot.lane.b32.xlu0 %v1049, 64
  %v1387 = vpop.permute.xlu0 %1386
  %1389 = vrot.lane.b32.xlu0 %v1053, 80
  %v1390 = vpop.permute.xlu0 %1389
  %1392 = vrot.lane.b32.xlu0 %v1057, 96
  %v1393 = vpop.permute.xlu0 %1392
  %1395 = vrot.lane.b32.xlu0 %v1045, 112
  %v1396 = vpop.permute.xlu0 %1395
  %1399 = vrot.lane.b32.xlu0 %v1069, 16
  %v1400 = vpop.permute.xlu0 %1399
  %1402 = vrot.lane.b32.xlu0 %v1073, 32
  %v1403 = vpop.permute.xlu0 %1402
  %1405 = vrot.lane.b32.xlu0 %v1046, 48
  %v1406 = vpop.permute.xlu0 %1405
  %1408 = vrot.lane.b32.xlu0 %v1078, 64
  %v1409 = vpop.permute.xlu0 %1408
  %1411 = vrot.lane.b32.xlu0 %v1082, 80
  %v1412 = vpop.permute.xlu0 %1411
  %1414 = vrot.lane.b32.xlu0 %v1086, 96
  %v1415 = vpop.permute.xlu0 %1414
  %1417 = vrot.lane.b32.xlu0 %v1047, 112
  %v1418 = vpop.permute.xlu0 %1417
  %1421 = vrot.lane.b32.xlu0 %v1098, 16
  %v1422 = vpop.permute.xlu0 %1421
  %1424 = vrot.lane.b32.xlu0 %v1102, 32
  %v1425 = vpop.permute.xlu0 %1424
  %v1427 = vsel %vm595, %v1384, %v1387
  %v1428 = vsel %vm446, %v1427, %v1390
  %v1429 = vsel %vm1108, %v1428, %v1393
  %v1430 = vsel %vm1110, %v1429, %v1396
  %v1431 = vsel %vm1112, %v1430, %v1065
  %v1432 = vsel %vm1114, %v1431, %v1400
  %v1433 = vsel %vm1116, %v1432, %v1403
  %v1434 = vsel %vm595, %v1406, %v1409
  %v1435 = vsel %vm446, %v1434, %v1412
  %v1436 = vsel %vm1108, %v1435, %v1415
  %v1437 = vsel %vm1110, %v1436, %v1418
  %v1438 = vsel %vm1112, %v1437, %v1094
  %v1439 = vsel %vm1114, %v1438, %v1422
  %v1440 = vsel %vm1116, %v1439, %v1425
  %v1443 = vrot.slane %v1433, 6
  %v1444 = vrot.slane %v1440, 6
  %1447 = vst [vmem:[#allocation2 + $0x10] sm:$0xc] %v1443
  %1448 = vst [vmem:[#allocation2 + $0x18] sm:$0xc] %v1444
  %1449 = vrot.lane.b32.xlu0 %v1044, 32
  %v1450 = vpop.permute.xlu0 %1449
  %1452 = vrot.lane.b32.xlu0 %v1049, 48
  %v1453 = vpop.permute.xlu0 %1452
  %1455 = vrot.lane.b32.xlu0 %v1053, 64
  %v1456 = vpop.permute.xlu0 %1455
  %1458 = vrot.lane.b32.xlu0 %v1057, 80
  %v1459 = vpop.permute.xlu0 %1458
  %1461 = vrot.lane.b32.xlu0 %v1045, 96
  %v1462 = vpop.permute.xlu0 %1461
  %1464 = vrot.lane.b32.xlu0 %v1065, 112
  %v1465 = vpop.permute.xlu0 %1464
  %1468 = vrot.lane.b32.xlu0 %v1073, 16
  %v1469 = vpop.permute.xlu0 %1468
  %1471 = vrot.lane.b32.xlu0 %v1046, 32
  %v1472 = vpop.permute.xlu0 %1471
  %1474 = vrot.lane.b32.xlu0 %v1078, 48
  %v1475 = vpop.permute.xlu0 %1474
  %1477 = vrot.lane.b32.xlu0 %v1082, 64
  %v1478 = vpop.permute.xlu0 %1477
  %1480 = vrot.lane.b32.xlu0 %v1086, 80
  %v1481 = vpop.permute.xlu0 %1480
  %1483 = vrot.lane.b32.xlu0 %v1047, 96
  %v1484 = vpop.permute.xlu0 %1483
  %1486 = vrot.lane.b32.xlu0 %v1094, 112
  %v1487 = vpop.permute.xlu0 %1486
  %1490 = vrot.lane.b32.xlu0 %v1102, 16
  %v1491 = vpop.permute.xlu0 %1490
  %v1493 = vsel %vm595, %v1450, %v1453
  %v1494 = vsel %vm446, %v1493, %v1456
  %v1495 = vsel %vm1108, %v1494, %v1459
  %v1496 = vsel %vm1110, %v1495, %v1462
  %v1497 = vsel %vm1112, %v1496, %v1465
  %v1498 = vsel %vm1114, %v1497, %v1069
  %v1499 = vsel %vm1116, %v1498, %v1469
  %v1500 = vsel %vm595, %v1472, %v1475
  %v1501 = vsel %vm446, %v1500, %v1478
  %v1502 = vsel %vm1108, %v1501, %v1481
  %v1503 = vsel %vm1110, %v1502, %v1484
  %v1504 = vsel %vm1112, %v1503, %v1487
  %v1505 = vsel %vm1114, %v1504, %v1098
  %v1506 = vsel %vm1116, %v1505, %v1491
  %v1509 = vrot.slane %v1499, 4
  %v1510 = vrot.slane %v1506, 4
  %1513 = vst [vmem:[#allocation2 + $0x10] sm:$0x30] %v1509
  %1514 = vst [vmem:[#allocation2 + $0x18] sm:$0x30] %v1510
  %1515 = vrot.lane.b32.xlu0 %v1044, 16
  %v1516 = vpop.permute.xlu0 %1515
  %1518 = vrot.lane.b32.xlu0 %v1049, 32
  %v1519 = vpop.permute.xlu0 %1518
  %1521 = vrot.lane.b32.xlu0 %v1053, 48
  %v1522 = vpop.permute.xlu0 %1521
  %1524 = vrot.lane.b32.xlu0 %v1057, 64
  %v1525 = vpop.permute.xlu0 %1524
  %1527 = vrot.lane.b32.xlu0 %v1045, 80
  %v1528 = vpop.permute.xlu0 %1527
  %1530 = vrot.lane.b32.xlu0 %v1065, 96
  %v1531 = vpop.permute.xlu0 %1530
  %1533 = vrot.lane.b32.xlu0 %v1069, 112
  %v1534 = vpop.permute.xlu0 %1533
  %1537 = vrot.lane.b32.xlu0 %v1046, 16
  %v1538 = vpop.permute.xlu0 %1537
  %1540 = vrot.lane.b32.xlu0 %v1078, 32
  %v1541 = vpop.permute.xlu0 %1540
  %1543 = vrot.lane.b32.xlu0 %v1082, 48
  %v1544 = vpop.permute.xlu0 %1543
  %1546 = vrot.lane.b32.xlu0 %v1086, 64
  %v1547 = vpop.permute.xlu0 %1546
  %1549 = vrot.lane.b32.xlu0 %v1047, 80
  %v1550 = vpop.permute.xlu0 %1549
  %1552 = vrot.lane.b32.xlu0 %v1094, 96
  %v1553 = vpop.permute.xlu0 %1552
  %1555 = vrot.lane.b32.xlu0 %v1098, 112
  %v1556 = vpop.permute.xlu0 %1555
  %v1559 = vsel %vm595, %v1516, %v1519
  %v1560 = vsel %vm446, %v1559, %v1522
  %v1561 = vsel %vm1108, %v1560, %v1525
  %v1562 = vsel %vm1110, %v1561, %v1528
  %v1563 = vsel %vm1112, %v1562, %v1531
  %v1564 = vsel %vm1114, %v1563, %v1534
  %v1565 = vsel %vm1116, %v1564, %v1073
  %v1566 = vsel %vm595, %v1538, %v1541
  %v1567 = vsel %vm446, %v1566, %v1544
  %v1568 = vsel %vm1108, %v1567, %v1547
  %v1569 = vsel %vm1110, %v1568, %v1550
  %v1570 = vsel %vm1112, %v1569, %v1553
  %v1571 = vsel %vm1114, %v1570, %v1556
  %v1572 = vsel %vm1116, %v1571, %v1102
  %v1575 = vrot.slane %v1565, 2
  %v1576 = vrot.slane %v1572, 2
  %1579 = vst [vmem:[#allocation2 + $0x10] sm:$0xc0] %v1575
  %1580 = vst [vmem:[#allocation2 + $0x18] sm:$0xc0] %v1576
  %v1581 = vld [vmem:[#allocation2] sm:$0xff]
  %v1582 = vld [vmem:[#allocation2 + $0x8] sm:$0xff]
  %v1583 = vld [vmem:[#allocation2 + $0x10] sm:$0xff]
  %v1584 = vld [vmem:[#allocation2 + $0x18] sm:$0xff]
  %v1585 = vpack.c.bf16 %v1583, %v1581
  %v1586 = vpack.c.bf16 %v1584, %v1582
  %v1587 = vld [vmem:[%s15] sm:$0xf]
  %v1588 = vld [vmem:[%s15 + $0x4] sm:$0xf]
  %v1589 = vld [vmem:[%s15 + $0x8] sm:$0xf]
  %v1590 = vld [vmem:[%s15 + $0xc] sm:$0xf]
  %v1591 = vld [vmem:[%s15 + $0x10] sm:$0xf]
  %v1592 = vld [vmem:[%s15 + $0x14] sm:$0xf]
  %v1593 = vld [vmem:[%s15 + $0x18] sm:$0xf]
  %v1594 = vld [vmem:[%s15 + $0x1c] sm:$0xf]
  %v1595 = vld [vmem:[%s15 + $0x20] sm:$0xf]
  %v1596 = vld [vmem:[%s15 + $0x24] sm:$0xf]
  %v1597 = vld [vmem:[%s15 + $0x28] sm:$0xf]
  %v1598 = vld [vmem:[%s15 + $0x2c] sm:$0xf]
  %v1599 = vld [vmem:[%s15 + $0x30] sm:$0xf]
  %v1600 = vld [vmem:[%s15 + $0x34] sm:$0xf]
  %v1601 = vld [vmem:[%s15 + $0x38] sm:$0xf]
  %v1602 = vld [vmem:[%s15 + $0x3c] sm:$0xf]
  %v1603 = vld [vmem:[%s15 + $0x40] sm:$0xf]
  %v1604 = vld [vmem:[%s15 + $0x44] sm:$0xf]
  %v1605 = vld [vmem:[%s15 + $0x48] sm:$0xf]
  %v1606 = vld [vmem:[%s15 + $0x4c] sm:$0xf]
  %v1607 = vld [vmem:[%s15 + $0x50] sm:$0xf]
  %v1608 = vld [vmem:[%s15 + $0x54] sm:$0xf]
  %v1609 = vld [vmem:[%s15 + $0x58] sm:$0xf]
  %v1610 = vld [vmem:[%s15 + $0x5c] sm:$0xf]
  %v1611 = vld [vmem:[%s15 + $0x60] sm:$0xf]
  %v1612 = vld [vmem:[%s15 + $0x64] sm:$0xf]
  %v1613 = vld [vmem:[%s15 + $0x68] sm:$0xf]
  %v1614 = vld [vmem:[%s15 + $0x6c] sm:$0xf]
  %v1615 = vld [vmem:[%s15 + $0x70] sm:$0xf]
  %v1616 = vld [vmem:[%s15 + $0x74] sm:$0xf]
  %v1617 = vld [vmem:[%s15 + $0x78] sm:$0xf]
  %v1618 = vld [vmem:[%s15 + $0x7c] sm:$0xf]
  %v1619 = vld [vmem:[%s16] sm:$0x1]
  %v1621 = vlaneseq
  %v1622 = vshrl.u32 %v1621, 7
  %v1623 = vsub.s32 0, %v1622
  %v1624 = vrot.slane %v1619, %v1623
  %v1658 = vunpack.c.l.b16 %v1587
  %v1659 = vunpack.c.l.b16 %v1588
  %v1660 = vunpack.c.l.b16 %v1589
  %v1661 = vunpack.c.l.b16 %v1590
  %v1662 = vunpack.c.l.b16 %v1591
  %v1663 = vunpack.c.l.b16 %v1592
  %v1664 = vunpack.c.l.b16 %v1593
  %v1665 = vunpack.c.l.b16 %v1594
  %v1666 = vunpack.c.l.b16 %v1595
  %v1667 = vunpack.c.l.b16 %v1596
  %v1668 = vunpack.c.l.b16 %v1597
  %v1669 = vunpack.c.l.b16 %v1598
  %v1670 = vunpack.c.l.b16 %v1599
  %v1671 = vunpack.c.l.b16 %v1600
  %v1672 = vunpack.c.l.b16 %v1601
  %v1673 = vunpack.c.l.b16 %v1602
  %v1674 = vunpack.c.l.b16 %v1603
  %v1675 = vunpack.c.l.b16 %v1604
  %v1676 = vunpack.c.l.b16 %v1605
  %v1677 = vunpack.c.l.b16 %v1606
  %v1678 = vunpack.c.l.b16 %v1607
  %v1679 = vunpack.c.l.b16 %v1608
  %v1680 = vunpack.c.l.b16 %v1609
  %v1681 = vunpack.c.l.b16 %v1610
  %v1682 = vunpack.c.l.b16 %v1611
  %v1683 = vunpack.c.l.b16 %v1612
  %v1684 = vunpack.c.l.b16 %v1613
  %v1685 = vunpack.c.l.b16 %v1614
  %v1686 = vunpack.c.l.b16 %v1615
  %v1687 = vunpack.c.l.b16 %v1616
  %v1688 = vunpack.c.l.b16 %v1617
  %v1689 = vunpack.c.l.b16 %v1618
  %v1690 = vpack.c.b16 %v1659, %v1658
  %v1691 = vpack.c.b16 %v1661, %v1660
  %v1692 = vpack.c.b16 %v1663, %v1662
  %v1693 = vpack.c.b16 %v1665, %v1664
  %v1694 = vpack.c.b16 %v1667, %v1666
  %v1695 = vpack.c.b16 %v1669, %v1668
  %v1696 = vpack.c.b16 %v1671, %v1670
  %v1697 = vpack.c.b16 %v1673, %v1672
  %v1698 = vpack.c.b16 %v1675, %v1674
  %v1699 = vpack.c.b16 %v1677, %v1676
  %v1700 = vpack.c.b16 %v1679, %v1678
  %v1701 = vpack.c.b16 %v1681, %v1680
  %v1702 = vpack.c.b16 %v1683, %v1682
  %v1703 = vpack.c.b16 %v1685, %v1684
  %v1704 = vpack.c.b16 %v1687, %v1686
  %v1705 = vpack.c.b16 %v1689, %v1688
  %1722 = vmatprep.subr.bf16.mxu0 0
  %1723 = vmatpush1.bf16.msra.mxu0 %v1690
  %1724 = vmatprep.subr.bf16.mxu0 0
  %1725 = vmatpush1.bf16.msra.mxu0 %v1691
  %1726 = vmatprep.subr.bf16.mxu0 0
  %1727 = vmatpush1.bf16.msra.mxu0 %v1692
  %1728 = vmatprep.subr.bf16.mxu0 0
  %1729 = vmatpush1.bf16.msra.mxu0 %v1693
  %1730 = vmatprep.subr.bf16.mxu0 0
  %1731 = vmatpush1.bf16.msra.mxu0 %v1694
  %1732 = vmatprep.subr.bf16.mxu0 0
  %1733 = vmatpush1.bf16.msra.mxu0 %v1695
  %1734 = vmatprep.subr.bf16.mxu0 0
  %1735 = vmatpush1.bf16.msra.mxu0 %v1696
  %1736 = vmatprep.subr.bf16.mxu0 0
  %1737 = vmatpush1.bf16.msra.mxu0 %v1697
  %1738 = vmatprep.subr.bf16.mxu0 0
  %1739 = vmatpush1.bf16.msra.mxu0 %v1698
  %1740 = vmatprep.subr.bf16.mxu0 0
  %1741 = vmatpush1.bf16.msra.mxu0 %v1699
  %1742 = vmatprep.subr.bf16.mxu0 0
  %1743 = vmatpush1.bf16.msra.mxu0 %v1700
  %1744 = vmatprep.subr.bf16.mxu0 0
  %1745 = vmatpush1.bf16.msra.mxu0 %v1701
  %1746 = vmatprep.subr.bf16.mxu0 0
  %1747 = vmatpush1.bf16.msra.mxu0 %v1702
  %1748 = vmatprep.subr.bf16.mxu0 0
  %1749 = vmatpush1.bf16.msra.mxu0 %v1703
  %1750 = vmatprep.subr.bf16.mxu0 0
  %1751 = vmatpush1.bf16.msra.mxu0 %v1704
  %1752 = vmatprep.subr.bf16.mxu0 0
  %1753 = vmatpush1.bf16.msra.mxu0 %v1705
  %1754 = vmatprep.mubr.bf16.mxu0 %v1586
  %1755 = vmatmul.mubr.bf16.gmra.mrb[0].mxu0 %v1585
  %v1756 = vpop.f32.mrb[0].mxu0
  %v1757 = vadd.f32 %v1624, %v1756
  %v1758 = vpop.f32.mrb[0].mxu0
  %v1759 = vpop.f32.mrb[0].mxu0
  %v1760 = vadd.f32 %v1624, %v1759
  %v1761 = vpop.f32.mrb[0].mxu0
  %1762 = vdwg.mxu0
  %v1763 = vld [vmem:[%s17] sm:$0xf]
  %v1764 = vld [vmem:[%s17 + $0x4] sm:$0xf]
  %v1765 = vld [vmem:[%s17 + $0x8] sm:$0xf]
  %v1766 = vld [vmem:[%s17 + $0xc] sm:$0xf]
  %v1767 = vld [vmem:[%s18] sm:$0x3]
  %v1768 = vld [vmem:[%s19] sm:$0x3]
  %v1769 = vld [vmem:[%s3] sm:$0xff]
  %v1770 = vld [vmem:[%s3 + $0x8] sm:$0xff]
  %v1771 = vld [vmem:[%s20] sm:$0xff]
  %v1772 = vld [vmem:[%s20 + $0x8] sm:$0xff]
  %v1773 = vld [vmem:[%s20 + $0x10] sm:$0xff]
  %v1774 = vld [vmem:[%s20 + $0x18] sm:$0xff]
  %v1775 = vld [vmem:[%s21] sm:$0x3]
  %v1776 = vpack.c.bf16 %v1760, %v1757
  %v1781 = vunpack.c.l.b16 %v1763
  %v1782 = vunpack.c.l.b16 %v1764
  %v1783 = vunpack.c.l.b16 %v1765
  %v1784 = vunpack.c.l.b16 %v1766
  %v1785 = vpack.c.b16 %v1782, %v1781
  %v1786 = vpack.c.b16 %v1784, %v1783
  %v1790 = vsel %vm446, %v1776, 0
  %1792 = vmatprep.subr.bf16.mxu0 0
  %1793 = vmatpush1.bf16.msra.mxu0 %v1785
  %1794 = vmatprep.subr.bf16.mxu0 0
  %1795 = vmatpush1.bf16.msra.mxu0 %v1786
  %1796 = vmatprep.subr.bf16.mxu0 0
  %1797 = vmatpush1.bf16.msra.mxu0 0
  %1798 = vmatprep.subr.bf16.mxu0 0
  %1799 = vmatpush1.bf16.msra.mxu0 0
  %1800 = vmatprep.subr.bf16.mxu0 0
  %1801 = vmatpush1.bf16.msra.mxu0 0
  %1802 = vmatprep.subr.bf16.mxu0 0
  %1803 = vmatpush1.bf16.msra.mxu0 0
  %1804 = vmatprep.subr.bf16.mxu0 0
  %1805 = vmatpush1.bf16.msra.mxu0 0
  %1806 = vmatprep.subr.bf16.mxu0 0
  %1807 = vmatpush1.bf16.msra.mxu0 0
  %1808 = vmatprep.subr.bf16.mxu0 0
  %1809 = vmatpush1.bf16.msra.mxu0 0
  %1810 = vmatprep.subr.bf16.mxu0 0
  %1811 = vmatpush1.bf16.msra.mxu0 0
  %1812 = vmatprep.subr.bf16.mxu0 0
  %1813 = vmatpush1.bf16.msra.mxu0 0
  %1814 = vmatprep.subr.bf16.mxu0 0
  %1815 = vmatpush1.bf16.msra.mxu0 0
  %1816 = vmatprep.subr.bf16.mxu0 0
  %1817 = vmatpush1.bf16.msra.mxu0 0
  %1818 = vmatprep.subr.bf16.mxu0 0
  %1819 = vmatpush1.bf16.msra.mxu0 0
  %1820 = vmatprep.subr.bf16.mxu0 0
  %1821 = vmatpush1.bf16.msra.mxu0 0
  %1822 = vmatprep.subr.bf16.mxu0 0
  %1823 = vmatpush1.bf16.msra.mxu0 0
  %1824 = vmatprep.mubr.bf16.mxu0 0
  %1825 = vmatmul.mubr.bf16.gmra.mrb[0].mxu0 %v1790
  %v1826 = vpop.f32.mrb[0].mxu0
  %v1827 = vadd.f32 0.0, %v1826
  %v1828 = vpop.f32.mrb[0].mxu0
  %v1829 = vpop.f32.mrb[0].mxu0
  %v1830 = vadd.f32 0.0, %v1829
  %v1831 = vpop.f32.mrb[0].mxu0
  %1832 = vdwg.mxu0
  %v1834 = vsel %vm446, %v1768, 0
  %v1837 = vsel %vm446, %v1827, 0
  %v1840 = vsel %vm446, %v1830, 0
  %1842 = vmatprep.subr.mxu0 0.0
  %1843 = vmatpush1.xpose.msra.mxu0 %v1837
  %1844 = vmatprep.subr.mxu0 0.0
  %1845 = vmatpush1.xpose.msra.mxu0 %v1840
  %1846 = vmatprep.subr.mxu0 0.0
  %1847 = vmatpush1.xpose.msra.mxu0 0.0
  %1848 = vmatprep.subr.mxu0 0.0
  %1849 = vmatpush1.xpose.msra.mxu0 0.0
  %1850 = vmatprep.subr.mxu0 0.0
  %1851 = vmatpush1.xpose.msra.mxu0 0.0
  %1852 = vmatprep.subr.mxu0 0.0
  %1853 = vmatpush1.xpose.msra.mxu0 0.0
  %1854 = vmatprep.subr.mxu0 0.0
  %1855 = vmatpush1.xpose.msra.mxu0 0.0
  %1856 = vmatprep.subr.mxu0 0.0
  %1857 = vmatpush1.xpose.msra.mxu0 0.0
  %1858 = vmatprep.subr.mxu0 0.0
  %1859 = vmatpush1.xpose.msra.mxu0 0.0
  %1860 = vmatprep.subr.mxu0 0.0
  %1861 = vmatpush1.xpose.msra.mxu0 0.0
  %1862 = vmatprep.subr.mxu0 0.0
  %1863 = vmatpush1.xpose.msra.mxu0 0.0
  %1864 = vmatprep.subr.mxu0 0.0
  %1865 = vmatpush1.xpose.msra.mxu0 0.0
  %1866 = vmatprep.subr.mxu0 0.0
  %1867 = vmatpush1.xpose.msra.mxu0 0.0
  %1868 = vmatprep.subr.mxu0 0.0
  %1869 = vmatpush1.xpose.msra.mxu0 0.0
  %1870 = vmatprep.subr.mxu0 0.0
  %1871 = vmatpush1.xpose.msra.mxu0 0.0
  %1872 = vmatprep.subr.mxu0 0.0
  %1873 = vmatpush1.xpose.msra.mxu0 0.0
  %1874 = vmatprep.subr.mxu0 0.0
  %1875 = vmatpush1.xpose.msra.mxu0 0.0
  %1876 = vmatprep.subr.mxu0 0.0
  %1877 = vmatpush1.xpose.msra.mxu0 0.0
  %1878 = vmatprep.subr.mxu0 0.0
  %1879 = vmatpush1.xpose.msra.mxu0 0.0
  %1880 = vmatprep.subr.mxu0 0.0
  %1881 = vmatpush1.xpose.msra.mxu0 0.0
  %1882 = vmatprep.subr.mxu0 0.0
  %1883 = vmatpush1.xpose.msra.mxu0 0.0
  %1884 = vmatprep.subr.mxu0 0.0
  %1885 = vmatpush1.xpose.msra.mxu0 0.0
  %1886 = vmatprep.subr.mxu0 0.0
  %1887 = vmatpush1.xpose.msra.mxu0 0.0
  %1888 = vmatprep.subr.mxu0 0.0
  %1889 = vmatpush1.xpose.msra.mxu0 0.0
  %1890 = vmatprep.subr.mxu0 0.0
  %1891 = vmatpush1.xpose.msra.mxu0 0.0
  %1892 = vmatprep.subr.mxu0 0.0
  %1893 = vmatpush1.xpose.msra.mxu0 0.0
  %1894 = vmatprep.subr.mxu0 0.0
  %1895 = vmatpush1.xpose.msra.mxu0 0.0
  %1896 = vmatprep.subr.mxu0 0.0
  %1897 = vmatpush1.xpose.msra.mxu0 0.0
  %1898 = vmatprep.subr.mxu0 0.0
  %1899 = vmatpush1.xpose.msra.mxu0 0.0
  %1900 = vmatprep.subr.mxu0 0.0
  %1901 = vmatpush1.xpose.msra.mxu0 0.0
  %1902 = vmatprep.subr.mxu0 0.0
  %1903 = vmatpush1.xpose.msra.mxu0 0.0
  %1904 = vmatprep.subr.mxu0 0.0
  %1905 = vmatpush1.xpose.msra.mxu0 0.0
  %1906 = vmatprep.mubr.f32.mxu0 0.0
  %1907 = vmatmul.mubr.f32.gmra.mrb[0].mxu0 %v1834
  %v1908 = vpop.f32.mrb[0].mxu0
  %v1909 = vadd.f32 0.0, %v1908
  %v1910 = vpop.f32.mrb[0].mxu0
  %1911 = vdwg.mxu0
  %v1912 = vlaneseq
  %v1913 = vshrl.u32 %v1912, 7
  %v1914 = vsub.s32 0, %v1913
  %v1915 = vrot.slane %v1767, %v1914
  %v1916 = vmul.f32 %v1827, %v1915
  %v1917 = vmul.f32 %v1830, %v1915
  %v1918 = vsel %vm595, %v1916, 0.0
  %1919 = vadd.xlane.f32.xlu0 %v1918
  %v1920 = vpop.xlane.xlu0 %1919
  %v1921 = vsel %vm595, %v1917, 0.0
  %1922 = vadd.xlane.f32.xlu0 %v1921
  %v1923 = vpop.xlane.xlu0 %1922
  %v1924 = vlaneseq
  %v1925 = vshrl.u32 %v1924, 7
  %v1926 = vsub.s32 0, %v1925
  %v1927 = vrot.slane %v1909, %v1926
  %v1928 = vadd.f32 %v1920, %v1927
  %v1929 = vadd.f32 %v1923, %v1927
  %vm1930 = vcmp.gt.f32.partialorder %v1928, 0.0
  %vm1931 = vcmp.gt.f32.partialorder %v1929, 0.0
  %v1932 = vmul.f32 %v1928, 0.2
  %v1933 = vmul.f32 %v1929, 0.2
  %v1934 = vsel %vm1930, %v1928, %v1932
  %v1935 = vsel %vm1931, %v1929, %v1933
  %vm1936 = vcmp.gt.f32.partialorder %v1769, 0.0
  %vm1937 = vcmp.gt.f32.partialorder %v1770, 0.0
  %v1938 = vsel %vm1936, %v1934, -1e+30
  %v1939 = vsel %vm1937, %v1935, -1e+30
  %v1940 = vsel %vm595, %v1938, -inf
  %1941 = vmax.xlane.f32.xlu0 %v1940
  %v1942 = vpop.xlane.xlu0 %1941
  %v1943 = vsel %vm595, %v1939, -inf
  %1944 = vmax.xlane.f32.xlu0 %v1943
  %v1945 = vpop.xlane.xlu0 %1944
  %v1946 = vsub.f32 %v1938, %v1942
  %v1947 = vsub.f32 %v1939, %v1945
  %v1948 = vmul.f32 %v1946, 1.442695
  %v1949 = vpow.pop %v1948
  %v1950 = vmul.f32 %v1947, 1.442695
  %v1951 = vpow.pop %v1950
  %v1952 = vsel %vm595, %v1949, 0.0
  %1953 = vadd.xlane.f32.xlu0 %v1952
  %v1954 = vpop.xlane.xlu0 %1953
  %v1955 = vsel %vm595, %v1951, 0.0
  %1956 = vadd.xlane.f32.xlu0 %v1955
  %v1957 = vpop.xlane.xlu0 %1956
  %v1958 = vrcp.pop %v1954
  %v1959 = vmul.f32 %v1949, %v1958
  %v1960 = vrcp.pop %v1957
  %v1961 = vmul.f32 %v1951, %v1960
  %v1962 = vpack.c.bf16 %v1961, %v1959
  %v1963 = vpack.c.bf16 %v1830, %v1827
  %v1965 = vsel %vm595, %v1962, 0
  %1967 = vmatprep.subr.bf16.mxu0 0
  %1968 = vmatpush1.bf16.msra.mxu0 %v1963
  %1969 = vmatprep.subr.bf16.mxu0 0
  %1970 = vmatpush1.bf16.msra.mxu0 0
  %1971 = vmatprep.subr.bf16.mxu0 0
  %1972 = vmatpush1.bf16.msra.mxu0 0
  %1973 = vmatprep.subr.bf16.mxu0 0
  %1974 = vmatpush1.bf16.msra.mxu0 0
  %1975 = vmatprep.subr.bf16.mxu0 0
  %1976 = vmatpush1.bf16.msra.mxu0 0
  %1977 = vmatprep.subr.bf16.mxu0 0
  %1978 = vmatpush1.bf16.msra.mxu0 0
  %1979 = vmatprep.subr.bf16.mxu0 0
  %1980 = vmatpush1.bf16.msra.mxu0 0
  %1981 = vmatprep.subr.bf16.mxu0 0
  %1982 = vmatpush1.bf16.msra.mxu0 0
  %1983 = vmatprep.subr.bf16.mxu0 0
  %1984 = vmatpush1.bf16.msra.mxu0 0
  %1985 = vmatprep.subr.bf16.mxu0 0
  %1986 = vmatpush1.bf16.msra.mxu0 0
  %1987 = vmatprep.subr.bf16.mxu0 0
  %1988 = vmatpush1.bf16.msra.mxu0 0
  %1989 = vmatprep.subr.bf16.mxu0 0
  %1990 = vmatpush1.bf16.msra.mxu0 0
  %1991 = vmatprep.subr.bf16.mxu0 0
  %1992 = vmatpush1.bf16.msra.mxu0 0
  %1993 = vmatprep.subr.bf16.mxu0 0
  %1994 = vmatpush1.bf16.msra.mxu0 0
  %1995 = vmatprep.subr.bf16.mxu0 0
  %1996 = vmatpush1.bf16.msra.mxu0 0
  %1997 = vmatprep.subr.bf16.mxu0 0
  %1998 = vmatpush1.bf16.msra.mxu0 0
  %1999 = vmatprep.mubr.bf16.mxu0 0
  %2000 = vmatmul.mubr.bf16.gmra.mrb[0].mxu0 %v1965
  %v2001 = vpop.f32.mrb[0].mxu0
  %v2002 = vadd.f32 0.0, %v2001
  %v2003 = vpop.f32.mrb[0].mxu0
  %v2004 = vpop.f32.mrb[0].mxu0
  %v2005 = vadd.f32 0.0, %v2004
  %v2006 = vpop.f32.mrb[0].mxu0
  %2007 = vdwg.mxu0
  %v2008 = vpack.c.bf16 %v2005, %v2002
  %v2009 = vlaneseq
  %v2010 = vshrl.u32 %v2009, 7
  %v2011 = vsub.s32 1, %v2010
  %v2012 = vrot.slane %v1767, %v2011
  %2014 = vrot.lane.b32.xlu0 %v2012, 16
  %v2015 = vpop.permute.xlu0 %2014
  %v2017 = vmul.f32 %v1827, %v2015
  %v2018 = vmul.f32 %v1830, %v2015
  %2021 = vrot.lane.b32.xlu0 %v2017, 112
  %v2022 = vpop.permute.xlu0 %2021
  %2023 = vrot.lane.b32.xlu0 %v2018, 112
  %v2024 = vpop.permute.xlu0 %2023
  %v2027 = vsel %vm595, %v2022, 0.0
  %2028 = vadd.xlane.f32.xlu0 %v2027
  %v2029 = vpop.xlane.xlu0 %2028
  %v2030 = vsel %vm595, %v2024, 0.0
  %2031 = vadd.xlane.f32.xlu0 %v2030
  %v2032 = vpop.xlane.xlu0 %2031
  %v2033 = vlaneseq
  %v2034 = vshrl.u32 %v2033, 7
  %v2035 = vsub.s32 1, %v2034
  %v2036 = vrot.slane %v1909, %v2035
  %v2037 = vadd.f32 %v2029, %v2036
  %v2038 = vadd.f32 %v2032, %v2036
  %vm2039 = vcmp.gt.f32.partialorder %v2037, 0.0
  %vm2040 = vcmp.gt.f32.partialorder %v2038, 0.0
  %v2041 = vmul.f32 %v2037, 0.2
  %v2042 = vmul.f32 %v2038, 0.2
  %v2043 = vsel %vm2039, %v2037, %v2041
  %v2044 = vsel %vm2040, %v2038, %v2042
  %v2045 = vsel %vm1936, %v2043, -1e+30
  %v2046 = vsel %vm1937, %v2044, -1e+30
  %v2047 = vsel %vm595, %v2045, -inf
  %2048 = vmax.xlane.f32.xlu0 %v2047
  %v2049 = vpop.xlane.xlu0 %2048
  %v2050 = vsel %vm595, %v2046, -inf
  %2051 = vmax.xlane.f32.xlu0 %v2050
  %v2052 = vpop.xlane.xlu0 %2051
  %v2053 = vsub.f32 %v2045, %v2049
  %v2054 = vsub.f32 %v2046, %v2052
  %v2055 = vmul.f32 %v2053, 1.442695
  %v2056 = vpow.pop %v2055
  %v2057 = vmul.f32 %v2054, 1.442695
  %v2058 = vpow.pop %v2057
  %v2059 = vsel %vm595, %v2056, 0.0
  %2060 = vadd.xlane.f32.xlu0 %v2059
  %v2061 = vpop.xlane.xlu0 %2060
  %v2062 = vsel %vm595, %v2058, 0.0
  %2063 = vadd.xlane.f32.xlu0 %v2062
  %v2064 = vpop.xlane.xlu0 %2063
  %v2065 = vrcp.pop %v2061
  %v2066 = vmul.f32 %v2056, %v2065
  %v2067 = vrcp.pop %v2064
  %v2068 = vmul.f32 %v2058, %v2067
  %v2069 = vpack.c.bf16 %v2068, %v2066
  %2071 = vrot.lane.b32.xlu0 %v1963, 112
  %v2072 = vpop.permute.xlu0 %2071
  %v2075 = vsel %vm595, %v2069, 0
  %2077 = vmatprep.subr.bf16.mxu0 0
  %2078 = vmatpush1.bf16.msra.mxu0 %v2072
  %2079 = vmatprep.subr.bf16.mxu0 0
  %2080 = vmatpush1.bf16.msra.mxu0 0
  %2081 = vmatprep.subr.bf16.mxu0 0
  %2082 = vmatpush1.bf16.msra.mxu0 0
  %2083 = vmatprep.subr.bf16.mxu0 0
  %2084 = vmatpush1.bf16.msra.mxu0 0
  %2085 = vmatprep.subr.bf16.mxu0 0
  %2086 = vmatpush1.bf16.msra.mxu0 0
  %2087 = vmatprep.subr.bf16.mxu0 0
  %2088 = vmatpush1.bf16.msra.mxu0 0
  %2089 = vmatprep.subr.bf16.mxu0 0
  %2090 = vmatpush1.bf16.msra.mxu0 0
  %2091 = vmatprep.subr.bf16.mxu0 0
  %2092 = vmatpush1.bf16.msra.mxu0 0
  %2093 = vmatprep.subr.bf16.mxu0 0
  %2094 = vmatpush1.bf16.msra.mxu0 0
  %2095 = vmatprep.subr.bf16.mxu0 0
  %2096 = vmatpush1.bf16.msra.mxu0 0
  %2097 = vmatprep.subr.bf16.mxu0 0
  %2098 = vmatpush1.bf16.msra.mxu0 0
  %2099 = vmatprep.subr.bf16.mxu0 0
  %2100 = vmatpush1.bf16.msra.mxu0 0
  %2101 = vmatprep.subr.bf16.mxu0 0
  %2102 = vmatpush1.bf16.msra.mxu0 0
  %2103 = vmatprep.subr.bf16.mxu0 0
  %2104 = vmatpush1.bf16.msra.mxu0 0
  %2105 = vmatprep.subr.bf16.mxu0 0
  %2106 = vmatpush1.bf16.msra.mxu0 0
  %2107 = vmatprep.subr.bf16.mxu0 0
  %2108 = vmatpush1.bf16.msra.mxu0 0
  %2109 = vmatprep.mubr.bf16.mxu0 0
  %2110 = vmatmul.mubr.bf16.gmra.mrb[0].mxu0 %v2075
  %v2111 = vpop.f32.mrb[0].mxu0
  %v2112 = vadd.f32 0.0, %v2111
  %v2113 = vpop.f32.mrb[0].mxu0
  %v2114 = vpop.f32.mrb[0].mxu0
  %v2115 = vadd.f32 0.0, %v2114
  %v2116 = vpop.f32.mrb[0].mxu0
  %2117 = vdwg.mxu0
  %v2118 = vpack.c.bf16 %v2115, %v2112
  %v2121 = vunpack.c.l.b16 %v1773
  %v2122 = vunpack.c.h.b16 %v1773
  %v2123 = vunpack.c.l.b16 %v1774
  %v2124 = vunpack.c.h.b16 %v1774
  %v2125 = vpack.c.b16 %v2123, %v2121
  %v2126 = vpack.c.b16 %v2124, %v2122
  %v2130 = vsel %vm595, %v2118, 0
  %2132 = vmatprep.subr.bf16.mxu0 %v2126
  %2133 = vmatpush1.bf16.msra.mxu0 %v2125
  %2134 = vmatprep.subr.bf16.mxu0 0
  %2135 = vmatpush1.bf16.msra.mxu0 0
  %2136 = vmatprep.subr.bf16.mxu0 0
  %2137 = vmatpush1.bf16.msra.mxu0 0
  %2138 = vmatprep.subr.bf16.mxu0 0
  %2139 = vmatpush1.bf16.msra.mxu0 0
  %2140 = vmatprep.subr.bf16.mxu0 0
  %2141 = vmatpush1.bf16.msra.mxu0 0
  %2142 = vmatprep.subr.bf16.mxu0 0
  %2143 = vmatpush1.bf16.msra.mxu0 0
  %2144 = vmatprep.subr.bf16.mxu0 0
  %2145 = vmatpush1.bf16.msra.mxu0 0
  %2146 = vmatprep.subr.bf16.mxu0 0
  %2147 = vmatpush1.bf16.msra.mxu0 0
  %2148 = vmatprep.subr.bf16.mxu0 0
  %2149 = vmatpush1.bf16.msra.mxu0 0
  %2150 = vmatprep.subr.bf16.mxu0 0
  %2151 = vmatpush1.bf16.msra.mxu0 0
  %2152 = vmatprep.subr.bf16.mxu0 0
  %2153 = vmatpush1.bf16.msra.mxu0 0
  %2154 = vmatprep.subr.bf16.mxu0 0
  %2155 = vmatpush1.bf16.msra.mxu0 0
  %2156 = vmatprep.subr.bf16.mxu0 0
  %2157 = vmatpush1.bf16.msra.mxu0 0
  %2158 = vmatprep.subr.bf16.mxu0 0
  %2159 = vmatpush1.bf16.msra.mxu0 0
  %2160 = vmatprep.subr.bf16.mxu0 0
  %2161 = vmatpush1.bf16.msra.mxu0 0
  %2162 = vmatprep.subr.bf16.mxu0 0
  %2163 = vmatpush1.bf16.msra.mxu0 0
  %2164 = vmatprep.mubr.bf16.mxu0 0
  %2165 = vmatmul.mubr.bf16.gmra.mrb[0].mxu0 %v2130
  %v2166 = vpop.f32.mrb[0].mxu0
  %v2167 = vadd.f32 0.0, %v2166
  %v2168 = vpop.f32.mrb[0].mxu0
  %v2169 = vadd.f32 0.0, %v2168
  %v2170 = vpop.f32.mrb[0].mxu0
  %v2171 = vadd.f32 0.0, %v2170
  %v2172 = vpop.f32.mrb[0].mxu0
  %v2173 = vadd.f32 0.0, %v2172
  %2174 = vdwg.mxu0
  %v2177 = vunpack.c.l.b16 %v1771
  %v2178 = vunpack.c.h.b16 %v1771
  %v2179 = vunpack.c.l.b16 %v1772
  %v2180 = vunpack.c.h.b16 %v1772
  %v2181 = vpack.c.b16 %v2179, %v2177
  %v2182 = vpack.c.b16 %v2180, %v2178
  %v2186 = vsel %vm595, %v2008, 0
  %2188 = vmatprep.subr.bf16.mxu0 %v2182
  %2189 = vmatpush1.bf16.msra.mxu0 %v2181
  %2190 = vmatprep.subr.bf16.mxu0 0
  %2191 = vmatpush1.bf16.msra.mxu0 0
  %2192 = vmatprep.subr.bf16.mxu0 0
  %2193 = vmatpush1.bf16.msra.mxu0 0
  %2194 = vmatprep.subr.bf16.mxu0 0
  %2195 = vmatpush1.bf16.msra.mxu0 0
  %2196 = vmatprep.subr.bf16.mxu0 0
  %2197 = vmatpush1.bf16.msra.mxu0 0
  %2198 = vmatprep.subr.bf16.mxu0 0
  %2199 = vmatpush1.bf16.msra.mxu0 0
  %2200 = vmatprep.subr.bf16.mxu0 0
  %2201 = vmatpush1.bf16.msra.mxu0 0
  %2202 = vmatprep.subr.bf16.mxu0 0
  %2203 = vmatpush1.bf16.msra.mxu0 0
  %2204 = vmatprep.subr.bf16.mxu0 0
  %2205 = vmatpush1.bf16.msra.mxu0 0
  %2206 = vmatprep.subr.bf16.mxu0 0
  %2207 = vmatpush1.bf16.msra.mxu0 0
  %2208 = vmatprep.subr.bf16.mxu0 0
  %2209 = vmatpush1.bf16.msra.mxu0 0
  %2210 = vmatprep.subr.bf16.mxu0 0
  %2211 = vmatpush1.bf16.msra.mxu0 0
  %2212 = vmatprep.subr.bf16.mxu0 0
  %2213 = vmatpush1.bf16.msra.mxu0 0
  %2214 = vmatprep.subr.bf16.mxu0 0
  %2215 = vmatpush1.bf16.msra.mxu0 0
  %2216 = vmatprep.subr.bf16.mxu0 0
  %2217 = vmatpush1.bf16.msra.mxu0 0
  %2218 = vmatprep.subr.bf16.mxu0 0
  %2219 = vmatpush1.bf16.msra.mxu0 0
  %2220 = vmatprep.mubr.bf16.mxu0 0
  %2221 = vmatmul.mubr.bf16.gmra.mrb[0].mxu0 %v2186
  %v2222 = vpop.f32.mrb[0].mxu0
  %v2223 = vadd.f32 %v2167, %v2222
  %v2224 = vpop.f32.mrb[0].mxu0
  %v2225 = vadd.f32 %v2169, %v2224
  %v2226 = vpop.f32.mrb[0].mxu0
  %v2227 = vadd.f32 %v2171, %v2226
  %v2228 = vpop.f32.mrb[0].mxu0
  %v2229 = vadd.f32 %v2173, %v2228
  %2230 = vdwg.mxu0
  %v2232 = vlaneseq
  %v2233 = vshrl.u32 %v2232, 7
  %v2234 = vsub.s32 0, %v2233
  %v2235 = vrot.slane %v1775, %v2234
  %v2236 = vlaneseq
  %v2237 = vshrl.u32 %v2236, 7
  %v2238 = vsub.s32 1, %v2237
  %v2239 = vrot.slane %v1775, %v2238
  %v2242 = vadd.f32 %v2223, %v2235
  %v2243 = vadd.f32 %v2225, %v2239
  %v2244 = vadd.f32 %v2227, %v2235
  %v2245 = vadd.f32 %v2229, %v2239
  %v2247 = vrot.slane %v2242, 2
  %2248 = vrot.lane.b32.xlu0 %v2247, 16
  %v2249 = vpop.permute.xlu0 %2248
  %v2251 = vrot.slane %v2242, 4
  %2252 = vrot.lane.b32.xlu0 %v2251, 32
  %v2253 = vpop.permute.xlu0 %2252
  %v2255 = vrot.slane %v2242, 6
  %2256 = vrot.lane.b32.xlu0 %v2255, 48
  %v2257 = vpop.permute.xlu0 %2256
  %2260 = vrot.lane.b32.xlu0 %v2244, 64
  %v2261 = vpop.permute.xlu0 %2260
  %v2263 = vrot.slane %v2244, 2
  %2264 = vrot.lane.b32.xlu0 %v2263, 80
  %v2265 = vpop.permute.xlu0 %2264
  %v2267 = vrot.slane %v2244, 4
  %2268 = vrot.lane.b32.xlu0 %v2267, 96
  %v2269 = vpop.permute.xlu0 %2268
  %v2271 = vrot.slane %v2244, 6
  %2272 = vrot.lane.b32.xlu0 %v2271, 112
  %v2273 = vpop.permute.xlu0 %2272
  %v2275 = vsel %vm595, %v2242, %v2249
  %v2276 = vsel %vm446, %v2275, %v2253
  %v2277 = vsel %vm1108, %v2276, %v2257
  %v2278 = vsel %vm1110, %v2277, %v2261
  %v2279 = vsel %vm1112, %v2278, %v2265
  %v2280 = vsel %vm1114, %v2279, %v2269
  %v2281 = vsel %vm1116, %v2280, %v2273
  %2282 = vst [vmem:[#allocation3] sm:$0x3] %v2281
  %2283 = vrot.lane.b32.xlu0 %v2242, 112
  %v2284 = vpop.permute.xlu0 %2283
  %2287 = vrot.lane.b32.xlu0 %v2251, 16
  %v2288 = vpop.permute.xlu0 %2287
  %2290 = vrot.lane.b32.xlu0 %v2255, 32
  %v2291 = vpop.permute.xlu0 %2290
  %2293 = vrot.lane.b32.xlu0 %v2244, 48
  %v2294 = vpop.permute.xlu0 %2293
  %2296 = vrot.lane.b32.xlu0 %v2263, 64
  %v2297 = vpop.permute.xlu0 %2296
  %2299 = vrot.lane.b32.xlu0 %v2267, 80
  %v2300 = vpop.permute.xlu0 %2299
  %2302 = vrot.lane.b32.xlu0 %v2271, 96
  %v2303 = vpop.permute.xlu0 %2302
  %v2305 = vsel %vm595, %v2284, %v2247
  %v2306 = vsel %vm446, %v2305, %v2288
  %v2307 = vsel %vm1108, %v2306, %v2291
  %v2308 = vsel %vm1110, %v2307, %v2294
  %v2309 = vsel %vm1112, %v2308, %v2297
  %v2310 = vsel %vm1114, %v2309, %v2300
  %v2311 = vsel %vm1116, %v2310, %v2303
  %2312 = vst [vmem:[#allocation3 + $0x2] sm:$0x3] %v2311
  %2313 = vrot.lane.b32.xlu0 %v2242, 96
  %v2314 = vpop.permute.xlu0 %2313
  %2316 = vrot.lane.b32.xlu0 %v2247, 112
  %v2317 = vpop.permute.xlu0 %2316
  %2320 = vrot.lane.b32.xlu0 %v2255, 16
  %v2321 = vpop.permute.xlu0 %2320
  %2323 = vrot.lane.b32.xlu0 %v2244, 32
  %v2324 = vpop.permute.xlu0 %2323
  %2326 = vrot.lane.b32.xlu0 %v2263, 48
  %v2327 = vpop.permute.xlu0 %2326
  %2329 = vrot.lane.b32.xlu0 %v2267, 64
  %v2330 = vpop.permute.xlu0 %2329
  %2332 = vrot.lane.b32.xlu0 %v2271, 80
  %v2333 = vpop.permute.xlu0 %2332
  %v2335 = vsel %vm595, %v2314, %v2317
  %v2336 = vsel %vm446, %v2335, %v2251
  %v2337 = vsel %vm1108, %v2336, %v2321
  %v2338 = vsel %vm1110, %v2337, %v2324
  %v2339 = vsel %vm1112, %v2338, %v2327
  %v2340 = vsel %vm1114, %v2339, %v2330
  %v2341 = vsel %vm1116, %v2340, %v2333
  %2342 = vst [vmem:[#allocation3 + $0x4] sm:$0x3] %v2341
  %2343 = vrot.lane.b32.xlu0 %v2242, 80
  %v2344 = vpop.permute.xlu0 %2343
  %2346 = vrot.lane.b32.xlu0 %v2247, 96
  %v2347 = vpop.permute.xlu0 %2346
  %2349 = vrot.lane.b32.xlu0 %v2251, 112
  %v2350 = vpop.permute.xlu0 %2349
  %2353 = vrot.lane.b32.xlu0 %v2244, 16
  %v2354 = vpop.permute.xlu0 %2353
  %2356 = vrot.lane.b32.xlu0 %v2263, 32
  %v2357 = vpop.permute.xlu0 %2356
  %2359 = vrot.lane.b32.xlu0 %v2267, 48
  %v2360 = vpop.permute.xlu0 %2359
  %2362 = vrot.lane.b32.xlu0 %v2271, 64
  %v2363 = vpop.permute.xlu0 %2362
  %v2365 = vsel %vm595, %v2344, %v2347
  %v2366 = vsel %vm446, %v2365, %v2350
  %v2367 = vsel %vm1108, %v2366, %v2255
  %v2368 = vsel %vm1110, %v2367, %v2354
  %v2369 = vsel %vm1112, %v2368, %v2357
  %v2370 = vsel %vm1114, %v2369, %v2360
  %v2371 = vsel %vm1116, %v2370, %v2363
  %2372 = vst [vmem:[#allocation3 + $0x6] sm:$0x3] %v2371
  %2373 = vrot.lane.b32.xlu0 %v2242, 64
  %v2374 = vpop.permute.xlu0 %2373
  %2376 = vrot.lane.b32.xlu0 %v2247, 80
  %v2377 = vpop.permute.xlu0 %2376
  %2379 = vrot.lane.b32.xlu0 %v2251, 96
  %v2380 = vpop.permute.xlu0 %2379
  %2382 = vrot.lane.b32.xlu0 %v2255, 112
  %v2383 = vpop.permute.xlu0 %2382
  %2385 = vrot.lane.b32.xlu0 %v2263, 16
  %v2386 = vpop.permute.xlu0 %2385
  %2388 = vrot.lane.b32.xlu0 %v2267, 32
  %v2389 = vpop.permute.xlu0 %2388
  %2391 = vrot.lane.b32.xlu0 %v2271, 48
  %v2392 = vpop.permute.xlu0 %2391
  %v2394 = vsel %vm595, %v2374, %v2377
  %v2395 = vsel %vm446, %v2394, %v2380
  %v2396 = vsel %vm1108, %v2395, %v2383
  %v2397 = vsel %vm1110, %v2396, %v2244
  %v2398 = vsel %vm1112, %v2397, %v2386
  %v2399 = vsel %vm1114, %v2398, %v2389
  %v2400 = vsel %vm1116, %v2399, %v2392
  %2401 = vst [vmem:[#allocation3 + $0x8] sm:$0x3] %v2400
  %2402 = vrot.lane.b32.xlu0 %v2242, 48
  %v2403 = vpop.permute.xlu0 %2402
  %2405 = vrot.lane.b32.xlu0 %v2247, 64
  %v2406 = vpop.permute.xlu0 %2405
  %2408 = vrot.lane.b32.xlu0 %v2251, 80
  %v2409 = vpop.permute.xlu0 %2408
  %2411 = vrot.lane.b32.xlu0 %v2255, 96
  %v2412 = vpop.permute.xlu0 %2411
  %2414 = vrot.lane.b32.xlu0 %v2244, 112
  %v2415 = vpop.permute.xlu0 %2414
  %2418 = vrot.lane.b32.xlu0 %v2267, 16
  %v2419 = vpop.permute.xlu0 %2418
  %2421 = vrot.lane.b32.xlu0 %v2271, 32
  %v2422 = vpop.permute.xlu0 %2421
  %v2424 = vsel %vm595, %v2403, %v2406
  %v2425 = vsel %vm446, %v2424, %v2409
  %v2426 = vsel %vm1108, %v2425, %v2412
  %v2427 = vsel %vm1110, %v2426, %v2415
  %v2428 = vsel %vm1112, %v2427, %v2263
  %v2429 = vsel %vm1114, %v2428, %v2419
  %v2430 = vsel %vm1116, %v2429, %v2422
  %2431 = vst [vmem:[#allocation3 + $0xa] sm:$0x3] %v2430
  %2432 = vrot.lane.b32.xlu0 %v2242, 32
  %v2433 = vpop.permute.xlu0 %2432
  %2435 = vrot.lane.b32.xlu0 %v2247, 48
  %v2436 = vpop.permute.xlu0 %2435
  %2438 = vrot.lane.b32.xlu0 %v2251, 64
  %v2439 = vpop.permute.xlu0 %2438
  %2441 = vrot.lane.b32.xlu0 %v2255, 80
  %v2442 = vpop.permute.xlu0 %2441
  %2444 = vrot.lane.b32.xlu0 %v2244, 96
  %v2445 = vpop.permute.xlu0 %2444
  %2447 = vrot.lane.b32.xlu0 %v2263, 112
  %v2448 = vpop.permute.xlu0 %2447
  %2451 = vrot.lane.b32.xlu0 %v2271, 16
  %v2452 = vpop.permute.xlu0 %2451
  %v2454 = vsel %vm595, %v2433, %v2436
  %v2455 = vsel %vm446, %v2454, %v2439
  %v2456 = vsel %vm1108, %v2455, %v2442
  %v2457 = vsel %vm1110, %v2456, %v2445
  %v2458 = vsel %vm1112, %v2457, %v2448
  %v2459 = vsel %vm1114, %v2458, %v2267
  %v2460 = vsel %vm1116, %v2459, %v2452
  %2461 = vst [vmem:[#allocation3 + $0xc] sm:$0x3] %v2460
  %2462 = vrot.lane.b32.xlu0 %v2242, 16
  %v2463 = vpop.permute.xlu0 %2462
  %2465 = vrot.lane.b32.xlu0 %v2247, 32
  %v2466 = vpop.permute.xlu0 %2465
  %2468 = vrot.lane.b32.xlu0 %v2251, 48
  %v2469 = vpop.permute.xlu0 %2468
  %2471 = vrot.lane.b32.xlu0 %v2255, 64
  %v2472 = vpop.permute.xlu0 %2471
  %2474 = vrot.lane.b32.xlu0 %v2244, 80
  %v2475 = vpop.permute.xlu0 %2474
  %2477 = vrot.lane.b32.xlu0 %v2263, 96
  %v2478 = vpop.permute.xlu0 %2477
  %2480 = vrot.lane.b32.xlu0 %v2267, 112
  %v2481 = vpop.permute.xlu0 %2480
  %v2484 = vsel %vm595, %v2463, %v2466
  %v2485 = vsel %vm446, %v2484, %v2469
  %v2486 = vsel %vm1108, %v2485, %v2472
  %v2487 = vsel %vm1110, %v2486, %v2475
  %v2488 = vsel %vm1112, %v2487, %v2478
  %v2489 = vsel %vm1114, %v2488, %v2481
  %v2490 = vsel %vm1116, %v2489, %v2271
  %2491 = vst [vmem:[#allocation3 + $0xe] sm:$0x3] %v2490
  %v2493 = vrot.slane %v2243, 2
  %2494 = vrot.lane.b32.xlu0 %v2493, 16
  %v2495 = vpop.permute.xlu0 %2494
  %v2497 = vrot.slane %v2243, 4
  %2498 = vrot.lane.b32.xlu0 %v2497, 32
  %v2499 = vpop.permute.xlu0 %2498
  %v2501 = vrot.slane %v2243, 6
  %2502 = vrot.lane.b32.xlu0 %v2501, 48
  %v2503 = vpop.permute.xlu0 %2502
  %2506 = vrot.lane.b32.xlu0 %v2245, 64
  %v2507 = vpop.permute.xlu0 %2506
  %v2509 = vrot.slane %v2245, 2
  %2510 = vrot.lane.b32.xlu0 %v2509, 80
  %v2511 = vpop.permute.xlu0 %2510
  %v2513 = vrot.slane %v2245, 4
  %2514 = vrot.lane.b32.xlu0 %v2513, 96
  %v2515 = vpop.permute.xlu0 %2514
  %v2517 = vrot.slane %v2245, 6
  %2518 = vrot.lane.b32.xlu0 %v2517, 112
  %v2519 = vpop.permute.xlu0 %2518
  %v2521 = vsel %vm595, %v2243, %v2495
  %v2522 = vsel %vm446, %v2521, %v2499
  %v2523 = vsel %vm1108, %v2522, %v2503
  %v2524 = vsel %vm1110, %v2523, %v2507
  %v2525 = vsel %vm1112, %v2524, %v2511
  %v2526 = vsel %vm1114, %v2525, %v2515
  %v2527 = vsel %vm1116, %v2526, %v2519
  %2528 = vst [vmem:[#allocation3 + $0x10] sm:$0x3] %v2527
  %2529 = vrot.lane.b32.xlu0 %v2243, 112
  %v2530 = vpop.permute.xlu0 %2529
  %2533 = vrot.lane.b32.xlu0 %v2497, 16
  %v2534 = vpop.permute.xlu0 %2533
  %2536 = vrot.lane.b32.xlu0 %v2501, 32
  %v2537 = vpop.permute.xlu0 %2536
  %2539 = vrot.lane.b32.xlu0 %v2245, 48
  %v2540 = vpop.permute.xlu0 %2539
  %2542 = vrot.lane.b32.xlu0 %v2509, 64
  %v2543 = vpop.permute.xlu0 %2542
  %2545 = vrot.lane.b32.xlu0 %v2513, 80
  %v2546 = vpop.permute.xlu0 %2545
  %2548 = vrot.lane.b32.xlu0 %v2517, 96
  %v2549 = vpop.permute.xlu0 %2548
  %v2551 = vsel %vm595, %v2530, %v2493
  %v2552 = vsel %vm446, %v2551, %v2534
  %v2553 = vsel %vm1108, %v2552, %v2537
  %v2554 = vsel %vm1110, %v2553, %v2540
  %v2555 = vsel %vm1112, %v2554, %v2543
  %v2556 = vsel %vm1114, %v2555, %v2546
  %v2557 = vsel %vm1116, %v2556, %v2549
  %2558 = vst [vmem:[#allocation3 + $0x12] sm:$0x3] %v2557
  %2559 = vrot.lane.b32.xlu0 %v2243, 96
  %v2560 = vpop.permute.xlu0 %2559
  %2562 = vrot.lane.b32.xlu0 %v2493, 112
  %v2563 = vpop.permute.xlu0 %2562
  %2566 = vrot.lane.b32.xlu0 %v2501, 16
  %v2567 = vpop.permute.xlu0 %2566
  %2569 = vrot.lane.b32.xlu0 %v2245, 32
  %v2570 = vpop.permute.xlu0 %2569
  %2572 = vrot.lane.b32.xlu0 %v2509, 48
  %v2573 = vpop.permute.xlu0 %2572
  %2575 = vrot.lane.b32.xlu0 %v2513, 64
  %v2576 = vpop.permute.xlu0 %2575
  %2578 = vrot.lane.b32.xlu0 %v2517, 80
  %v2579 = vpop.permute.xlu0 %2578
  %v2581 = vsel %vm595, %v2560, %v2563
  %v2582 = vsel %vm446, %v2581, %v2497
  %v2583 = vsel %vm1108, %v2582, %v2567
  %v2584 = vsel %vm1110, %v2583, %v2570
  %v2585 = vsel %vm1112, %v2584, %v2573
  %v2586 = vsel %vm1114, %v2585, %v2576
  %v2587 = vsel %vm1116, %v2586, %v2579
  %2588 = vst [vmem:[#allocation3 + $0x14] sm:$0x3] %v2587
  %2589 = vrot.lane.b32.xlu0 %v2243, 80
  %v2590 = vpop.permute.xlu0 %2589
  %2592 = vrot.lane.b32.xlu0 %v2493, 96
  %v2593 = vpop.permute.xlu0 %2592
  %2595 = vrot.lane.b32.xlu0 %v2497, 112
  %v2596 = vpop.permute.xlu0 %2595
  %2599 = vrot.lane.b32.xlu0 %v2245, 16
  %v2600 = vpop.permute.xlu0 %2599
  %2602 = vrot.lane.b32.xlu0 %v2509, 32
  %v2603 = vpop.permute.xlu0 %2602
  %2605 = vrot.lane.b32.xlu0 %v2513, 48
  %v2606 = vpop.permute.xlu0 %2605
  %2608 = vrot.lane.b32.xlu0 %v2517, 64
  %v2609 = vpop.permute.xlu0 %2608
  %v2611 = vsel %vm595, %v2590, %v2593
  %v2612 = vsel %vm446, %v2611, %v2596
  %v2613 = vsel %vm1108, %v2612, %v2501
  %v2614 = vsel %vm1110, %v2613, %v2600
  %v2615 = vsel %vm1112, %v2614, %v2603
  %v2616 = vsel %vm1114, %v2615, %v2606
  %v2617 = vsel %vm1116, %v2616, %v2609
  %2618 = vst [vmem:[#allocation3 + $0x16] sm:$0x3] %v2617
  %2619 = vrot.lane.b32.xlu0 %v2243, 64
  %v2620 = vpop.permute.xlu0 %2619
  %2622 = vrot.lane.b32.xlu0 %v2493, 80
  %v2623 = vpop.permute.xlu0 %2622
  %2625 = vrot.lane.b32.xlu0 %v2497, 96
  %v2626 = vpop.permute.xlu0 %2625
  %2628 = vrot.lane.b32.xlu0 %v2501, 112
  %v2629 = vpop.permute.xlu0 %2628
  %2631 = vrot.lane.b32.xlu0 %v2509, 16
  %v2632 = vpop.permute.xlu0 %2631
  %2634 = vrot.lane.b32.xlu0 %v2513, 32
  %v2635 = vpop.permute.xlu0 %2634
  %2637 = vrot.lane.b32.xlu0 %v2517, 48
  %v2638 = vpop.permute.xlu0 %2637
  %v2640 = vsel %vm595, %v2620, %v2623
  %v2641 = vsel %vm446, %v2640, %v2626
  %v2642 = vsel %vm1108, %v2641, %v2629
  %v2643 = vsel %vm1110, %v2642, %v2245
  %v2644 = vsel %vm1112, %v2643, %v2632
  %v2645 = vsel %vm1114, %v2644, %v2635
  %v2646 = vsel %vm1116, %v2645, %v2638
  %2647 = vst [vmem:[#allocation3 + $0x18] sm:$0x3] %v2646
  %2648 = vrot.lane.b32.xlu0 %v2243, 48
  %v2649 = vpop.permute.xlu0 %2648
  %2651 = vrot.lane.b32.xlu0 %v2493, 64
  %v2652 = vpop.permute.xlu0 %2651
  %2654 = vrot.lane.b32.xlu0 %v2497, 80
  %v2655 = vpop.permute.xlu0 %2654
  %2657 = vrot.lane.b32.xlu0 %v2501, 96
  %v2658 = vpop.permute.xlu0 %2657
  %2660 = vrot.lane.b32.xlu0 %v2245, 112
  %v2661 = vpop.permute.xlu0 %2660
  %2664 = vrot.lane.b32.xlu0 %v2513, 16
  %v2665 = vpop.permute.xlu0 %2664
  %2667 = vrot.lane.b32.xlu0 %v2517, 32
  %v2668 = vpop.permute.xlu0 %2667
  %v2670 = vsel %vm595, %v2649, %v2652
  %v2671 = vsel %vm446, %v2670, %v2655
  %v2672 = vsel %vm1108, %v2671, %v2658
  %v2673 = vsel %vm1110, %v2672, %v2661
  %v2674 = vsel %vm1112, %v2673, %v2509
  %v2675 = vsel %vm1114, %v2674, %v2665
  %v2676 = vsel %vm1116, %v2675, %v2668
  %2677 = vst [vmem:[#allocation3 + $0x1a] sm:$0x3] %v2676
  %2678 = vrot.lane.b32.xlu0 %v2243, 32
  %v2679 = vpop.permute.xlu0 %2678
  %2681 = vrot.lane.b32.xlu0 %v2493, 48
  %v2682 = vpop.permute.xlu0 %2681
  %2684 = vrot.lane.b32.xlu0 %v2497, 64
  %v2685 = vpop.permute.xlu0 %2684
  %2687 = vrot.lane.b32.xlu0 %v2501, 80
  %v2688 = vpop.permute.xlu0 %2687
  %2690 = vrot.lane.b32.xlu0 %v2245, 96
  %v2691 = vpop.permute.xlu0 %2690
  %2693 = vrot.lane.b32.xlu0 %v2509, 112
  %v2694 = vpop.permute.xlu0 %2693
  %2697 = vrot.lane.b32.xlu0 %v2517, 16
  %v2698 = vpop.permute.xlu0 %2697
  %v2700 = vsel %vm595, %v2679, %v2682
  %v2701 = vsel %vm446, %v2700, %v2685
  %v2702 = vsel %vm1108, %v2701, %v2688
  %v2703 = vsel %vm1110, %v2702, %v2691
  %v2704 = vsel %vm1112, %v2703, %v2694
  %v2705 = vsel %vm1114, %v2704, %v2513
  %v2706 = vsel %vm1116, %v2705, %v2698
  %2707 = vst [vmem:[#allocation3 + $0x1c] sm:$0x3] %v2706
  %2708 = vrot.lane.b32.xlu0 %v2243, 16
  %v2709 = vpop.permute.xlu0 %2708
  %2711 = vrot.lane.b32.xlu0 %v2493, 32
  %v2712 = vpop.permute.xlu0 %2711
  %2714 = vrot.lane.b32.xlu0 %v2497, 48
  %v2715 = vpop.permute.xlu0 %2714
  %2717 = vrot.lane.b32.xlu0 %v2501, 64
  %v2718 = vpop.permute.xlu0 %2717
  %2720 = vrot.lane.b32.xlu0 %v2245, 80
  %v2721 = vpop.permute.xlu0 %2720
  %2723 = vrot.lane.b32.xlu0 %v2509, 96
  %v2724 = vpop.permute.xlu0 %2723
  %2726 = vrot.lane.b32.xlu0 %v2513, 112
  %v2727 = vpop.permute.xlu0 %2726
  %v2730 = vsel %vm595, %v2709, %v2712
  %v2731 = vsel %vm446, %v2730, %v2715
  %v2732 = vsel %vm1108, %v2731, %v2718
  %v2733 = vsel %vm1110, %v2732, %v2721
  %v2734 = vsel %vm1112, %v2733, %v2724
  %v2735 = vsel %vm1114, %v2734, %v2727
  %v2736 = vsel %vm1116, %v2735, %v2517
  %2737 = vst [vmem:[#allocation3 + $0x1e] sm:$0x3] %v2736
  %v2738 = vld [vmem:[#allocation3] sm:$0xff]
  %v2739 = vld [vmem:[#allocation3 + $0x8] sm:$0xff]
  %v2740 = vld [vmem:[#allocation3 + $0x10] sm:$0xff]
  %v2741 = vld [vmem:[#allocation3 + $0x18] sm:$0xff]
  %v2742 = vpack.c.bf16 %v2739, %v2738
  %v2743 = vpack.c.bf16 %v2741, %v2740
  %v2744 = vld [vmem:[%s6] sm:$0xf]
  %v2745 = vld [vmem:[%s6 + $0x4] sm:$0xf]
  %v2746 = vld [vmem:[%s6 + $0x8] sm:$0xf]
  %v2747 = vld [vmem:[%s6 + $0xc] sm:$0xf]
  %v2748 = vld [vmem:[%s6 + $0x10] sm:$0xf]
  %v2749 = vld [vmem:[%s6 + $0x14] sm:$0xf]
  %v2750 = vld [vmem:[%s6 + $0x18] sm:$0xf]
  %v2751 = vld [vmem:[%s6 + $0x1c] sm:$0xf]
  %v2752 = vld [vmem:[%s6 + $0x20] sm:$0xf]
  %v2753 = vld [vmem:[%s6 + $0x24] sm:$0xf]
  %v2754 = vld [vmem:[%s6 + $0x28] sm:$0xf]
  %v2755 = vld [vmem:[%s6 + $0x2c] sm:$0xf]
  %v2756 = vld [vmem:[%s6 + $0x30] sm:$0xf]
  %v2757 = vld [vmem:[%s6 + $0x34] sm:$0xf]
  %v2758 = vld [vmem:[%s6 + $0x38] sm:$0xf]
  %v2759 = vld [vmem:[%s6 + $0x3c] sm:$0xf]
  %v2760 = vld [vmem:[%s7] sm:$0x1]
  %v2762 = vlaneseq
  %v2763 = vshrl.u32 %v2762, 7
  %v2764 = vsub.s32 0, %v2763
  %v2765 = vrot.slane %v2760, %v2764
  %v2783 = vunpack.c.l.b16 %v2744
  %v2784 = vunpack.c.l.b16 %v2745
  %v2785 = vunpack.c.l.b16 %v2746
  %v2786 = vunpack.c.l.b16 %v2747
  %v2787 = vunpack.c.l.b16 %v2748
  %v2788 = vunpack.c.l.b16 %v2749
  %v2789 = vunpack.c.l.b16 %v2750
  %v2790 = vunpack.c.l.b16 %v2751
  %v2791 = vunpack.c.l.b16 %v2752
  %v2792 = vunpack.c.l.b16 %v2753
  %v2793 = vunpack.c.l.b16 %v2754
  %v2794 = vunpack.c.l.b16 %v2755
  %v2795 = vunpack.c.l.b16 %v2756
  %v2796 = vunpack.c.l.b16 %v2757
  %v2797 = vunpack.c.l.b16 %v2758
  %v2798 = vunpack.c.l.b16 %v2759
  %v2799 = vpack.c.b16 %v2784, %v2783
  %v2800 = vpack.c.b16 %v2786, %v2785
  %v2801 = vpack.c.b16 %v2788, %v2787
  %v2802 = vpack.c.b16 %v2790, %v2789
  %v2803 = vpack.c.b16 %v2792, %v2791
  %v2804 = vpack.c.b16 %v2794, %v2793
  %v2805 = vpack.c.b16 %v2796, %v2795
  %v2806 = vpack.c.b16 %v2798, %v2797
  %2815 = vmatprep.subr.bf16.mxu0 0
  %2816 = vmatpush1.bf16.msra.mxu0 %v2799
  %2817 = vmatprep.subr.bf16.mxu0 0
  %2818 = vmatpush1.bf16.msra.mxu0 %v2800
  %2819 = vmatprep.subr.bf16.mxu0 0
  %2820 = vmatpush1.bf16.msra.mxu0 %v2801
  %2821 = vmatprep.subr.bf16.mxu0 0
  %2822 = vmatpush1.bf16.msra.mxu0 %v2802
  %2823 = vmatprep.subr.bf16.mxu0 0
  %2824 = vmatpush1.bf16.msra.mxu0 %v2803
  %2825 = vmatprep.subr.bf16.mxu0 0
  %2826 = vmatpush1.bf16.msra.mxu0 %v2804
  %2827 = vmatprep.subr.bf16.mxu0 0
  %2828 = vmatpush1.bf16.msra.mxu0 %v2805
  %2829 = vmatprep.subr.bf16.mxu0 0
  %2830 = vmatpush1.bf16.msra.mxu0 %v2806
  %2831 = vmatprep.subr.bf16.mxu0 0
  %2832 = vmatpush1.bf16.msra.mxu0 0
  %2833 = vmatprep.subr.bf16.mxu0 0
  %2834 = vmatpush1.bf16.msra.mxu0 0
  %2835 = vmatprep.subr.bf16.mxu0 0
  %2836 = vmatpush1.bf16.msra.mxu0 0
  %2837 = vmatprep.subr.bf16.mxu0 0
  %2838 = vmatpush1.bf16.msra.mxu0 0
  %2839 = vmatprep.subr.bf16.mxu0 0
  %2840 = vmatpush1.bf16.msra.mxu0 0
  %2841 = vmatprep.subr.bf16.mxu0 0
  %2842 = vmatpush1.bf16.msra.mxu0 0
  %2843 = vmatprep.subr.bf16.mxu0 0
  %2844 = vmatpush1.bf16.msra.mxu0 0
  %2845 = vmatprep.subr.bf16.mxu0 0
  %2846 = vmatpush1.bf16.msra.mxu0 0
  %2847 = vmatprep.mubr.bf16.mxu0 0
  %2848 = vmatmul.mubr.bf16.gmra.mrb[0].mxu0 %v2742
  %v2849 = vpop.f32.mrb[0].mxu0
  %v2850 = vadd.f32 %v2765, %v2849
  %v2851 = vpop.f32.mrb[0].mxu0
  %v2852 = vpop.f32.mrb[0].mxu0
  %v2853 = vadd.f32 %v2765, %v2852
  %v2854 = vpop.f32.mrb[0].mxu0
  %2855 = vmatprep.mubr.bf16.mxu0 0
  %2856 = vmatmul.mubr.bf16.gmra.mrb[0].mxu0 %v2743
  %v2857 = vpop.f32.mrb[0].mxu0
  %v2858 = vadd.f32 %v2765, %v2857
  %v2859 = vpop.f32.mrb[0].mxu0
  %v2860 = vpop.f32.mrb[0].mxu0
  %v2861 = vadd.f32 %v2765, %v2860
  %v2862 = vpop.f32.mrb[0].mxu0
  %2863 = vdwg.mxu0
  %v2864 = vld [vmem:[%s1] sm:$0xff]
  %v2865 = vld [vmem:[%s1 + $0x8] sm:$0xff]
  %v2866 = vld [vmem:[%s1 + $0x10] sm:$0xff]
  %v2867 = vld [vmem:[%s1 + $0x18] sm:$0xff]
  %2872 = vrot.lane.b32.xlu0 %v2850, 32
  %v2873 = vpop.permute.xlu0 %2872
  %2874 = vrot.lane.b32.xlu0 %v2853, 32
  %v2875 = vpop.permute.xlu0 %2874
  %2876 = vrot.lane.b32.xlu0 %v2858, 32
  %v2877 = vpop.permute.xlu0 %2876
  %2878 = vrot.lane.b32.xlu0 %v2861, 32
  %v2879 = vpop.permute.xlu0 %2878
  %2888 = vrot.lane.b32.xlu0 %v2864, 64
  %v2889 = vpop.permute.xlu0 %2888
  %2890 = vrot.lane.b32.xlu0 %v2865, 64
  %v2891 = vpop.permute.xlu0 %2890
  %2892 = vrot.lane.b32.xlu0 %v2866, 64
  %v2893 = vpop.permute.xlu0 %2892
  %2894 = vrot.lane.b32.xlu0 %v2867, 64
  %v2895 = vpop.permute.xlu0 %2894
  %v2900 = vsel %vm446, %v283, %v2873
  %v2901 = vsel %vm446, %v286, %v2875
  %v2902 = vsel %vm446, %v291, %v2877
  %v2903 = vsel %vm446, %v294, %v2879
  %v2904 = vsel %vm1110, %v2900, %v2889
  %v2905 = vsel %vm1110, %v2901, %v2891
  %v2906 = vsel %vm1110, %v2902, %v2893
  %v2907 = vsel %vm1110, %v2903, %v2895
  %v2908 = vsel %vm446, %v2889, 0.0
  %v2909 = vsel %vm446, %v2891, 0.0
  %v2910 = vsel %vm446, %v2893, 0.0
  %v2911 = vsel %vm446, %v2895, 0.0
  %v2912 = vpack.c.bf16 %v2905, %v2904
  %v2913 = vpack.c.bf16 %v2909, %v2908
  %v2914 = vpack.c.bf16 %v2907, %v2906
  %v2915 = vpack.c.bf16 %v2911, %v2910
  %v2916 = vld [vmem:[%s22] sm:$0xff]
  %v2917 = vld [vmem:[%s22 + $0x8] sm:$0xff]
  %v2918 = vld [vmem:[%s22 + $0x10] sm:$0xff]
  %v2919 = vld [vmem:[%s22 + $0x18] sm:$0xff]
  %v2920 = vld [vmem:[%s22 + $0x20] sm:$0xff]
  %v2921 = vld [vmem:[%s22 + $0x28] sm:$0xff]
  %v2922 = vld [vmem:[%s22 + $0x30] sm:$0xff]
  %v2923 = vld [vmem:[%s22 + $0x38] sm:$0xff]
  %v2924 = vld [vmem:[%s22 + $0x40] sm:$0xff]
  %v2925 = vld [vmem:[%s22 + $0x48] sm:$0xff]
  %v2926 = vld [vmem:[%s22 + $0x50] sm:$0xff]
  %v2927 = vld [vmem:[%s22 + $0x58] sm:$0xff]
  %v2928 = vld [vmem:[%s22 + $0x60] sm:$0xff]
  %v2929 = vld [vmem:[%s22 + $0x68] sm:$0xff]
  %v2930 = vld [vmem:[%s22 + $0x70] sm:$0xff]
  %v2931 = vld [vmem:[%s22 + $0x78] sm:$0xff]
  %v2932 = vld [vmem:[%s22 + $0x80] sm:$0xff]
  %v2933 = vld [vmem:[%s22 + $0x88] sm:$0xff]
  %v2934 = vld [vmem:[%s22 + $0x90] sm:$0xff]
  %v2935 = vld [vmem:[%s22 + $0x98] sm:$0xff]
  %v2936 = vld [vmem:[%s22 + $0xa0] sm:$0xff]
  %v2937 = vld [vmem:[%s22 + $0xa8] sm:$0xff]
  %v2938 = vld [vmem:[%s22 + $0xb0] sm:$0xff]
  %v2939 = vld [vmem:[%s22 + $0xb8] sm:$0xff]
  %v2940 = vld [vmem:[%s22 + $0xc0] sm:$0xff]
  %v2941 = vld [vmem:[%s22 + $0xc8] sm:$0xff]
  %v2942 = vld [vmem:[%s22 + $0xd0] sm:$0xff]
  %v2943 = vld [vmem:[%s22 + $0xd8] sm:$0xff]
  %v2944 = vld [vmem:[%s22 + $0xe0] sm:$0xff]
  %v2945 = vld [vmem:[%s22 + $0xe8] sm:$0xff]
  %v2946 = vld [vmem:[%s22 + $0xf0] sm:$0xff]
  %v2947 = vld [vmem:[%s22 + $0xf8] sm:$0xff]
  %v2948 = vld [vmem:[%s23] sm:$0x3]
  %v2950 = vlaneseq
  %v2951 = vshrl.u32 %v2950, 7
  %v2952 = vsub.s32 0, %v2951
  %v2953 = vrot.slane %v2948, %v2952
  %v2954 = vlaneseq
  %v2955 = vshrl.u32 %v2954, 7
  %v2956 = vsub.s32 1, %v2955
  %v2957 = vrot.slane %v2948, %v2956
  %v2992 = vunpack.c.l.b16 %v2916
  %v2993 = vunpack.c.h.b16 %v2916
  %v2994 = vunpack.c.l.b16 %v2917
  %v2995 = vunpack.c.h.b16 %v2917
  %v2996 = vunpack.c.l.b16 %v2918
  %v2997 = vunpack.c.h.b16 %v2918
  %v2998 = vunpack.c.l.b16 %v2919
  %v2999 = vunpack.c.h.b16 %v2919
  %v3000 = vunpack.c.l.b16 %v2920
  %v3001 = vunpack.c.h.b16 %v2920
  %v3002 = vunpack.c.l.b16 %v2921
  %v3003 = vunpack.c.h.b16 %v2921
  %v3004 = vunpack.c.l.b16 %v2922
  %v3005 = vunpack.c.h.b16 %v2922
  %v3006 = vunpack.c.l.b16 %v2923
  %v3007 = vunpack.c.h.b16 %v2923
  %v3008 = vunpack.c.l.b16 %v2924
  %v3009 = vunpack.c.h.b16 %v2924
  %v3010 = vunpack.c.l.b16 %v2925
  %v3011 = vunpack.c.h.b16 %v2925
  %v3012 = vunpack.c.l.b16 %v2926
  %v3013 = vunpack.c.h.b16 %v2926
  %v3014 = vunpack.c.l.b16 %v2927
  %v3015 = vunpack.c.h.b16 %v2927
  %v3016 = vunpack.c.l.b16 %v2928
  %v3017 = vunpack.c.h.b16 %v2928
  %v3018 = vunpack.c.l.b16 %v2929
  %v3019 = vunpack.c.h.b16 %v2929
  %v3020 = vunpack.c.l.b16 %v2930
  %v3021 = vunpack.c.h.b16 %v2930
  %v3022 = vunpack.c.l.b16 %v2931
  %v3023 = vunpack.c.h.b16 %v2931
  %v3024 = vunpack.c.l.b16 %v2932
  %v3025 = vunpack.c.h.b16 %v2932
  %v3026 = vunpack.c.l.b16 %v2933
  %v3027 = vunpack.c.h.b16 %v2933
  %v3028 = vunpack.c.l.b16 %v2934
  %v3029 = vunpack.c.h.b16 %v2934
  %v3030 = vunpack.c.l.b16 %v2935
  %v3031 = vunpack.c.h.b16 %v2935
  %v3032 = vunpack.c.l.b16 %v2936
  %v3033 = vunpack.c.h.b16 %v2936
  %v3034 = vunpack.c.l.b16 %v2937
  %v3035 = vunpack.c.h.b16 %v2937
  %v3036 = vunpack.c.l.b16 %v2938
  %v3037 = vunpack.c.h.b16 %v2938
  %v3038 = vunpack.c.l.b16 %v2939
  %v3039 = vunpack.c.h.b16 %v2939
  %v3040 = vunpack.c.l.b16 %v2940
  %v3041 = vunpack.c.h.b16 %v2940
  %v3042 = vunpack.c.l.b16 %v2941
  %v3043 = vunpack.c.h.b16 %v2941
  %v3044 = vunpack.c.l.b16 %v2942
  %v3045 = vunpack.c.h.b16 %v2942
  %v3046 = vunpack.c.l.b16 %v2943
  %v3047 = vunpack.c.h.b16 %v2943
  %v3048 = vunpack.c.l.b16 %v2944
  %v3049 = vunpack.c.h.b16 %v2944
  %v3050 = vunpack.c.l.b16 %v2945
  %v3051 = vunpack.c.h.b16 %v2945
  %v3052 = vunpack.c.l.b16 %v2946
  %v3053 = vunpack.c.h.b16 %v2946
  %v3054 = vunpack.c.l.b16 %v2947
  %v3055 = vunpack.c.h.b16 %v2947
  %v3056 = vpack.c.b16 %v2994, %v2992
  %v3057 = vpack.c.b16 %v2995, %v2993
  %v3058 = vpack.c.b16 %v2998, %v2996
  %v3059 = vpack.c.b16 %v2999, %v2997
  %v3060 = vpack.c.b16 %v3002, %v3000
  %v3061 = vpack.c.b16 %v3003, %v3001
  %v3062 = vpack.c.b16 %v3006, %v3004
  %v3063 = vpack.c.b16 %v3007, %v3005
  %v3064 = vpack.c.b16 %v3010, %v3008
  %v3065 = vpack.c.b16 %v3011, %v3009
  %v3066 = vpack.c.b16 %v3014, %v3012
  %v3067 = vpack.c.b16 %v3015, %v3013
  %v3068 = vpack.c.b16 %v3018, %v3016
  %v3069 = vpack.c.b16 %v3019, %v3017
  %v3070 = vpack.c.b16 %v3022, %v3020
  %v3071 = vpack.c.b16 %v3023, %v3021
  %v3072 = vpack.c.b16 %v3026, %v3024
  %v3073 = vpack.c.b16 %v3027, %v3025
  %v3074 = vpack.c.b16 %v3030, %v3028
  %v3075 = vpack.c.b16 %v3031, %v3029
  %v3076 = vpack.c.b16 %v3034, %v3032
  %v3077 = vpack.c.b16 %v3035, %v3033
  %v3078 = vpack.c.b16 %v3038, %v3036
  %v3079 = vpack.c.b16 %v3039, %v3037
  %v3080 = vpack.c.b16 %v3042, %v3040
  %v3081 = vpack.c.b16 %v3043, %v3041
  %v3082 = vpack.c.b16 %v3046, %v3044
  %v3083 = vpack.c.b16 %v3047, %v3045
  %v3084 = vpack.c.b16 %v3050, %v3048
  %v3085 = vpack.c.b16 %v3051, %v3049
  %v3086 = vpack.c.b16 %v3054, %v3052
  %v3087 = vpack.c.b16 %v3055, %v3053
  %3120 = vmatprep.subr.bf16.mxu0 %v3057
  %3121 = vmatpush1.bf16.msra.mxu0 %v3056
  %3122 = vmatprep.subr.bf16.mxu0 %v3059
  %3123 = vmatpush1.bf16.msra.mxu0 %v3058
  %3124 = vmatprep.subr.bf16.mxu0 %v3061
  %3125 = vmatpush1.bf16.msra.mxu0 %v3060
  %3126 = vmatprep.subr.bf16.mxu0 %v3063
  %3127 = vmatpush1.bf16.msra.mxu0 %v3062
  %3128 = vmatprep.subr.bf16.mxu0 %v3065
  %3129 = vmatpush1.bf16.msra.mxu0 %v3064
  %3130 = vmatprep.subr.bf16.mxu0 %v3067
  %3131 = vmatpush1.bf16.msra.mxu0 %v3066
  %3132 = vmatprep.subr.bf16.mxu0 %v3069
  %3133 = vmatpush1.bf16.msra.mxu0 %v3068
  %3134 = vmatprep.subr.bf16.mxu0 %v3071
  %3135 = vmatpush1.bf16.msra.mxu0 %v3070
  %3136 = vmatprep.subr.bf16.mxu0 %v3073
  %3137 = vmatpush1.bf16.msra.mxu0 %v3072
  %3138 = vmatprep.subr.bf16.mxu0 %v3075
  %3139 = vmatpush1.bf16.msra.mxu0 %v3074
  %3140 = vmatprep.subr.bf16.mxu0 %v3077
  %3141 = vmatpush1.bf16.msra.mxu0 %v3076
  %3142 = vmatprep.subr.bf16.mxu0 %v3079
  %3143 = vmatpush1.bf16.msra.mxu0 %v3078
  %3144 = vmatprep.subr.bf16.mxu0 %v3081
  %3145 = vmatpush1.bf16.msra.mxu0 %v3080
  %3146 = vmatprep.subr.bf16.mxu0 %v3083
  %3147 = vmatpush1.bf16.msra.mxu0 %v3082
  %3148 = vmatprep.subr.bf16.mxu0 %v3085
  %3149 = vmatpush1.bf16.msra.mxu0 %v3084
  %3150 = vmatprep.subr.bf16.mxu0 %v3087
  %3151 = vmatpush1.bf16.msra.mxu0 %v3086
  %3152 = vmatprep.mubr.bf16.mxu0 %v2913
  %3153 = vmatmul.mubr.bf16.gmra.mrb[0].mxu0 %v2912
  %v3154 = vpop.f32.mrb[0].mxu0
  %v3155 = vadd.f32 %v2953, %v3154
  %v3156 = vpop.f32.mrb[0].mxu0
  %v3157 = vadd.f32 %v2957, %v3156
  %v3158 = vpop.f32.mrb[0].mxu0
  %v3159 = vadd.f32 %v2953, %v3158
  %v3160 = vpop.f32.mrb[0].mxu0
  %v3161 = vadd.f32 %v2957, %v3160
  %3162 = vmatprep.mubr.bf16.mxu0 %v2915
  %3163 = vmatmul.mubr.bf16.gmra.mrb[0].mxu0 %v2914
  %v3164 = vpop.f32.mrb[0].mxu0
  %v3165 = vadd.f32 %v2953, %v3164
  %v3166 = vpop.f32.mrb[0].mxu0
  %v3167 = vadd.f32 %v2957, %v3166
  %v3168 = vpop.f32.mrb[0].mxu0
  %v3169 = vadd.f32 %v2953, %v3168
  %v3170 = vpop.f32.mrb[0].mxu0
  %v3171 = vadd.f32 %v2957, %v3170
  %3172 = vdwg.mxu0
  %v3173 = vmax.f32 %v3155, 0.0
  %v3174 = vmax.f32 %v3157, 0.0
  %v3175 = vmax.f32 %v3159, 0.0
  %v3176 = vmax.f32 %v3161, 0.0
  %v3177 = vmax.f32 %v3165, 0.0
  %v3178 = vmax.f32 %v3167, 0.0
  %v3179 = vmax.f32 %v3169, 0.0
  %v3180 = vmax.f32 %v3171, 0.0
  %v3181 = vpack.c.bf16 %v3175, %v3173
  %v3182 = vpack.c.bf16 %v3176, %v3174
  %v3183 = vpack.c.bf16 %v3179, %v3177
  %v3184 = vpack.c.bf16 %v3180, %v3178
  %v3185 = vld [vmem:[%s24] sm:$0xff]
  %v3186 = vld [vmem:[%s24 + $0x8] sm:$0xff]
  %v3187 = vld [vmem:[%s24 + $0x10] sm:$0xff]
  %v3188 = vld [vmem:[%s24 + $0x18] sm:$0xff]
  %v3189 = vld [vmem:[%s24 + $0x20] sm:$0xff]
  %v3190 = vld [vmem:[%s24 + $0x28] sm:$0xff]
  %v3191 = vld [vmem:[%s24 + $0x30] sm:$0xff]
  %v3192 = vld [vmem:[%s24 + $0x38] sm:$0xff]
  %v3193 = vld [vmem:[%s24 + $0x40] sm:$0xff]
  %v3194 = vld [vmem:[%s24 + $0x48] sm:$0xff]
  %v3195 = vld [vmem:[%s24 + $0x50] sm:$0xff]
  %v3196 = vld [vmem:[%s24 + $0x58] sm:$0xff]
  %v3197 = vld [vmem:[%s24 + $0x60] sm:$0xff]
  %v3198 = vld [vmem:[%s24 + $0x68] sm:$0xff]
  %v3199 = vld [vmem:[%s24 + $0x70] sm:$0xff]
  %v3200 = vld [vmem:[%s24 + $0x78] sm:$0xff]
  %v3201 = vld [vmem:[%s24 + $0x80] sm:$0xff]
  %v3202 = vld [vmem:[%s24 + $0x88] sm:$0xff]
  %v3203 = vld [vmem:[%s24 + $0x90] sm:$0xff]
  %v3204 = vld [vmem:[%s24 + $0x98] sm:$0xff]
  %v3205 = vld [vmem:[%s24 + $0xa0] sm:$0xff]
  %v3206 = vld [vmem:[%s24 + $0xa8] sm:$0xff]
  %v3207 = vld [vmem:[%s24 + $0xb0] sm:$0xff]
  %v3208 = vld [vmem:[%s24 + $0xb8] sm:$0xff]
  %v3209 = vld [vmem:[%s24 + $0xc0] sm:$0xff]
  %v3210 = vld [vmem:[%s24 + $0xc8] sm:$0xff]
  %v3211 = vld [vmem:[%s24 + $0xd0] sm:$0xff]
  %v3212 = vld [vmem:[%s24 + $0xd8] sm:$0xff]
  %v3213 = vld [vmem:[%s24 + $0xe0] sm:$0xff]
  %v3214 = vld [vmem:[%s24 + $0xe8] sm:$0xff]
  %v3215 = vld [vmem:[%s24 + $0xf0] sm:$0xff]
  %v3216 = vld [vmem:[%s24 + $0xf8] sm:$0xff]
  %v3217 = vld [vmem:[%s25] sm:$0x3]
  %v3219 = vlaneseq
  %v3220 = vshrl.u32 %v3219, 7
  %v3221 = vsub.s32 0, %v3220
  %v3222 = vrot.slane %v3217, %v3221
  %v3223 = vlaneseq
  %v3224 = vshrl.u32 %v3223, 7
  %v3225 = vsub.s32 1, %v3224
  %v3226 = vrot.slane %v3217, %v3225
  %v3261 = vunpack.c.l.b16 %v3185
  %v3262 = vunpack.c.h.b16 %v3185
  %v3263 = vunpack.c.l.b16 %v3186
  %v3264 = vunpack.c.h.b16 %v3186
  %v3265 = vunpack.c.l.b16 %v3187
  %v3266 = vunpack.c.h.b16 %v3187
  %v3267 = vunpack.c.l.b16 %v3188
  %v3268 = vunpack.c.h.b16 %v3188
  %v3269 = vunpack.c.l.b16 %v3189
  %v3270 = vunpack.c.h.b16 %v3189
  %v3271 = vunpack.c.l.b16 %v3190
  %v3272 = vunpack.c.h.b16 %v3190
  %v3273 = vunpack.c.l.b16 %v3191
  %v3274 = vunpack.c.h.b16 %v3191
  %v3275 = vunpack.c.l.b16 %v3192
  %v3276 = vunpack.c.h.b16 %v3192
  %v3277 = vunpack.c.l.b16 %v3193
  %v3278 = vunpack.c.h.b16 %v3193
  %v3279 = vunpack.c.l.b16 %v3194
  %v3280 = vunpack.c.h.b16 %v3194
  %v3281 = vunpack.c.l.b16 %v3195
  %v3282 = vunpack.c.h.b16 %v3195
  %v3283 = vunpack.c.l.b16 %v3196
  %v3284 = vunpack.c.h.b16 %v3196
  %v3285 = vunpack.c.l.b16 %v3197
  %v3286 = vunpack.c.h.b16 %v3197
  %v3287 = vunpack.c.l.b16 %v3198
  %v3288 = vunpack.c.h.b16 %v3198
  %v3289 = vunpack.c.l.b16 %v3199
  %v3290 = vunpack.c.h.b16 %v3199
  %v3291 = vunpack.c.l.b16 %v3200
  %v3292 = vunpack.c.h.b16 %v3200
  %v3293 = vunpack.c.l.b16 %v3201
  %v3294 = vunpack.c.h.b16 %v3201
  %v3295 = vunpack.c.l.b16 %v3202
  %v3296 = vunpack.c.h.b16 %v3202
  %v3297 = vunpack.c.l.b16 %v3203
  %v3298 = vunpack.c.h.b16 %v3203
  %v3299 = vunpack.c.l.b16 %v3204
  %v3300 = vunpack.c.h.b16 %v3204
  %v3301 = vunpack.c.l.b16 %v3205
  %v3302 = vunpack.c.h.b16 %v3205
  %v3303 = vunpack.c.l.b16 %v3206
  %v3304 = vunpack.c.h.b16 %v3206
  %v3305 = vunpack.c.l.b16 %v3207
  %v3306 = vunpack.c.h.b16 %v3207
  %v3307 = vunpack.c.l.b16 %v3208
  %v3308 = vunpack.c.h.b16 %v3208
  %v3309 = vunpack.c.l.b16 %v3209
  %v3310 = vunpack.c.h.b16 %v3209
  %v3311 = vunpack.c.l.b16 %v3210
  %v3312 = vunpack.c.h.b16 %v3210
  %v3313 = vunpack.c.l.b16 %v3211
  %v3314 = vunpack.c.h.b16 %v3211
  %v3315 = vunpack.c.l.b16 %v3212
  %v3316 = vunpack.c.h.b16 %v3212
  %v3317 = vunpack.c.l.b16 %v3213
  %v3318 = vunpack.c.h.b16 %v3213
  %v3319 = vunpack.c.l.b16 %v3214
  %v3320 = vunpack.c.h.b16 %v3214
  %v3321 = vunpack.c.l.b16 %v3215
  %v3322 = vunpack.c.h.b16 %v3215
  %v3323 = vunpack.c.l.b16 %v3216
  %v3324 = vunpack.c.h.b16 %v3216
  %v3325 = vpack.c.b16 %v3263, %v3261
  %v3326 = vpack.c.b16 %v3264, %v3262
  %v3327 = vpack.c.b16 %v3267, %v3265
  %v3328 = vpack.c.b16 %v3268, %v3266
  %v3329 = vpack.c.b16 %v3271, %v3269
  %v3330 = vpack.c.b16 %v3272, %v3270
  %v3331 = vpack.c.b16 %v3275, %v3273
  %v3332 = vpack.c.b16 %v3276, %v3274
  %v3333 = vpack.c.b16 %v3279, %v3277
  %v3334 = vpack.c.b16 %v3280, %v3278
  %v3335 = vpack.c.b16 %v3283, %v3281
  %v3336 = vpack.c.b16 %v3284, %v3282
  %v3337 = vpack.c.b16 %v3287, %v3285
  %v3338 = vpack.c.b16 %v3288, %v3286
  %v3339 = vpack.c.b16 %v3291, %v3289
  %v3340 = vpack.c.b16 %v3292, %v3290
  %v3341 = vpack.c.b16 %v3295, %v3293
  %v3342 = vpack.c.b16 %v3296, %v3294
  %v3343 = vpack.c.b16 %v3299, %v3297
  %v3344 = vpack.c.b16 %v3300, %v3298
  %v3345 = vpack.c.b16 %v3303, %v3301
  %v3346 = vpack.c.b16 %v3304, %v3302
  %v3347 = vpack.c.b16 %v3307, %v3305
  %v3348 = vpack.c.b16 %v3308, %v3306
  %v3349 = vpack.c.b16 %v3311, %v3309
  %v3350 = vpack.c.b16 %v3312, %v3310
  %v3351 = vpack.c.b16 %v3315, %v3313
  %v3352 = vpack.c.b16 %v3316, %v3314
  %v3353 = vpack.c.b16 %v3319, %v3317
  %v3354 = vpack.c.b16 %v3320, %v3318
  %v3355 = vpack.c.b16 %v3323, %v3321
  %v3356 = vpack.c.b16 %v3324, %v3322
  %3389 = vmatprep.subr.bf16.mxu0 %v3326
  %3390 = vmatpush1.bf16.msra.mxu0 %v3325
  %3391 = vmatprep.subr.bf16.mxu0 %v3328
  %3392 = vmatpush1.bf16.msra.mxu0 %v3327
  %3393 = vmatprep.subr.bf16.mxu0 %v3330
  %3394 = vmatpush1.bf16.msra.mxu0 %v3329
  %3395 = vmatprep.subr.bf16.mxu0 %v3332
  %3396 = vmatpush1.bf16.msra.mxu0 %v3331
  %3397 = vmatprep.subr.bf16.mxu0 %v3334
  %3398 = vmatpush1.bf16.msra.mxu0 %v3333
  %3399 = vmatprep.subr.bf16.mxu0 %v3336
  %3400 = vmatpush1.bf16.msra.mxu0 %v3335
  %3401 = vmatprep.subr.bf16.mxu0 %v3338
  %3402 = vmatpush1.bf16.msra.mxu0 %v3337
  %3403 = vmatprep.subr.bf16.mxu0 %v3340
  %3404 = vmatpush1.bf16.msra.mxu0 %v3339
  %3405 = vmatprep.subr.bf16.mxu0 %v3342
  %3406 = vmatpush1.bf16.msra.mxu0 %v3341
  %3407 = vmatprep.subr.bf16.mxu0 %v3344
  %3408 = vmatpush1.bf16.msra.mxu0 %v3343
  %3409 = vmatprep.subr.bf16.mxu0 %v3346
  %3410 = vmatpush1.bf16.msra.mxu0 %v3345
  %3411 = vmatprep.subr.bf16.mxu0 %v3348
  %3412 = vmatpush1.bf16.msra.mxu0 %v3347
  %3413 = vmatprep.subr.bf16.mxu0 %v3350
  %3414 = vmatpush1.bf16.msra.mxu0 %v3349
  %3415 = vmatprep.subr.bf16.mxu0 %v3352
  %3416 = vmatpush1.bf16.msra.mxu0 %v3351
  %3417 = vmatprep.subr.bf16.mxu0 %v3354
  %3418 = vmatpush1.bf16.msra.mxu0 %v3353
  %3419 = vmatprep.subr.bf16.mxu0 %v3356
  %3420 = vmatpush1.bf16.msra.mxu0 %v3355
  %3421 = vmatprep.mubr.bf16.mxu0 %v3182
  %3422 = vmatmul.mubr.bf16.gmra.mrb[0].mxu0 %v3181
  %v3423 = vpop.f32.mrb[0].mxu0
  %v3424 = vadd.f32 %v3222, %v3423
  %v3425 = vpop.f32.mrb[0].mxu0
  %v3426 = vadd.f32 %v3226, %v3425
  %v3427 = vpop.f32.mrb[0].mxu0
  %v3428 = vadd.f32 %v3222, %v3427
  %v3429 = vpop.f32.mrb[0].mxu0
  %v3430 = vadd.f32 %v3226, %v3429
  %3431 = vmatprep.mubr.bf16.mxu0 %v3184
  %3432 = vmatmul.mubr.bf16.gmra.mrb[0].mxu0 %v3183
  %v3433 = vpop.f32.mrb[0].mxu0
  %v3434 = vadd.f32 %v3222, %v3433
  %v3435 = vpop.f32.mrb[0].mxu0
  %v3436 = vadd.f32 %v3226, %v3435
  %v3437 = vpop.f32.mrb[0].mxu0
  %v3438 = vadd.f32 %v3222, %v3437
  %v3439 = vpop.f32.mrb[0].mxu0
  %v3440 = vadd.f32 %v3226, %v3439
  %3441 = vdwg.mxu0
  %v3442 = vadd.f32 %v3424, %v2904
  %v3443 = vadd.f32 %v3426, %v2908
  %v3444 = vadd.f32 %v3428, %v2905
  %v3445 = vadd.f32 %v3430, %v2909
  %v3446 = vadd.f32 %v3434, %v2906
  %v3447 = vadd.f32 %v3436, %v2910
  %v3448 = vadd.f32 %v3438, %v2907
  %v3449 = vadd.f32 %v3440, %v2911
  %v3450 = vpack.c.bf16 %v3444, %v3442
  %v3451 = vpack.c.bf16 %v3445, %v3443
  %v3452 = vpack.c.bf16 %v3448, %v3446
  %v3453 = vpack.c.bf16 %v3449, %v3447
  %s3454 = scalar_lea.vmem %s22, 256
  %v3455 = vld [vmem:[%s3454] sm:$0xff]
  %v3456 = vld [vmem:[%s3454 + $0x8] sm:$0xff]
  %v3457 = vld [vmem:[%s3454 + $0x10] sm:$0xff]
  %v3458 = vld [vmem:[%s3454 + $0x18] sm:$0xff]
  %v3459 = vld [vmem:[%s3454 + $0x20] sm:$0xff]
  %v3460 = vld [vmem:[%s3454 + $0x28] sm:$0xff]
  %v3461 = vld [vmem:[%s3454 + $0x30] sm:$0xff]
  %v3462 = vld [vmem:[%s3454 + $0x38] sm:$0xff]
  %v3463 = vld [vmem:[%s3454 + $0x40] sm:$0xff]
  %v3464 = vld [vmem:[%s3454 + $0x48] sm:$0xff]
  %v3465 = vld [vmem:[%s3454 + $0x50] sm:$0xff]
  %v3466 = vld [vmem:[%s3454 + $0x58] sm:$0xff]
  %v3467 = vld [vmem:[%s3454 + $0x60] sm:$0xff]
  %v3468 = vld [vmem:[%s3454 + $0x68] sm:$0xff]
  %v3469 = vld [vmem:[%s3454 + $0x70] sm:$0xff]
  %v3470 = vld [vmem:[%s3454 + $0x78] sm:$0xff]
  %v3471 = vld [vmem:[%s3454 + $0x80] sm:$0xff]
  %v3472 = vld [vmem:[%s3454 + $0x88] sm:$0xff]
  %v3473 = vld [vmem:[%s3454 + $0x90] sm:$0xff]
  %v3474 = vld [vmem:[%s3454 + $0x98] sm:$0xff]
  %v3475 = vld [vmem:[%s3454 + $0xa0] sm:$0xff]
  %v3476 = vld [vmem:[%s3454 + $0xa8] sm:$0xff]
  %v3477 = vld [vmem:[%s3454 + $0xb0] sm:$0xff]
  %v3478 = vld [vmem:[%s3454 + $0xb8] sm:$0xff]
  %v3479 = vld [vmem:[%s3454 + $0xc0] sm:$0xff]
  %v3480 = vld [vmem:[%s3454 + $0xc8] sm:$0xff]
  %v3481 = vld [vmem:[%s3454 + $0xd0] sm:$0xff]
  %v3482 = vld [vmem:[%s3454 + $0xd8] sm:$0xff]
  %v3483 = vld [vmem:[%s3454 + $0xe0] sm:$0xff]
  %v3484 = vld [vmem:[%s3454 + $0xe8] sm:$0xff]
  %v3485 = vld [vmem:[%s3454 + $0xf0] sm:$0xff]
  %v3486 = vld [vmem:[%s3454 + $0xf8] sm:$0xff]
  %s3487 = scalar_lea.vmem %s23, 2
  %v3488 = vld [vmem:[%s3487] sm:$0x3]
  %v3490 = vlaneseq
  %v3491 = vshrl.u32 %v3490, 7
  %v3492 = vsub.s32 0, %v3491
  %v3493 = vrot.slane %v3488, %v3492
  %v3494 = vlaneseq
  %v3495 = vshrl.u32 %v3494, 7
  %v3496 = vsub.s32 1, %v3495
  %v3497 = vrot.slane %v3488, %v3496
  %v3532 = vunpack.c.l.b16 %v3455
  %v3533 = vunpack.c.h.b16 %v3455
  %v3534 = vunpack.c.l.b16 %v3456
  %v3535 = vunpack.c.h.b16 %v3456
  %v3536 = vunpack.c.l.b16 %v3457
  %v3537 = vunpack.c.h.b16 %v3457
  %v3538 = vunpack.c.l.b16 %v3458
  %v3539 = vunpack.c.h.b16 %v3458
  %v3540 = vunpack.c.l.b16 %v3459
  %v3541 = vunpack.c.h.b16 %v3459
  %v3542 = vunpack.c.l.b16 %v3460
  %v3543 = vunpack.c.h.b16 %v3460
  %v3544 = vunpack.c.l.b16 %v3461
  %v3545 = vunpack.c.h.b16 %v3461
  %v3546 = vunpack.c.l.b16 %v3462
  %v3547 = vunpack.c.h.b16 %v3462
  %v3548 = vunpack.c.l.b16 %v3463
  %v3549 = vunpack.c.h.b16 %v3463
  %v3550 = vunpack.c.l.b16 %v3464
  %v3551 = vunpack.c.h.b16 %v3464
  %v3552 = vunpack.c.l.b16 %v3465
  %v3553 = vunpack.c.h.b16 %v3465
  %v3554 = vunpack.c.l.b16 %v3466
  %v3555 = vunpack.c.h.b16 %v3466
  %v3556 = vunpack.c.l.b16 %v3467
  %v3557 = vunpack.c.h.b16 %v3467
  %v3558 = vunpack.c.l.b16 %v3468
  %v3559 = vunpack.c.h.b16 %v3468
  %v3560 = vunpack.c.l.b16 %v3469
  %v3561 = vunpack.c.h.b16 %v3469
  %v3562 = vunpack.c.l.b16 %v3470
  %v3563 = vunpack.c.h.b16 %v3470
  %v3564 = vunpack.c.l.b16 %v3471
  %v3565 = vunpack.c.h.b16 %v3471
  %v3566 = vunpack.c.l.b16 %v3472
  %v3567 = vunpack.c.h.b16 %v3472
  %v3568 = vunpack.c.l.b16 %v3473
  %v3569 = vunpack.c.h.b16 %v3473
  %v3570 = vunpack.c.l.b16 %v3474
  %v3571 = vunpack.c.h.b16 %v3474
  %v3572 = vunpack.c.l.b16 %v3475
  %v3573 = vunpack.c.h.b16 %v3475
  %v3574 = vunpack.c.l.b16 %v3476
  %v3575 = vunpack.c.h.b16 %v3476
  %v3576 = vunpack.c.l.b16 %v3477
  %v3577 = vunpack.c.h.b16 %v3477
  %v3578 = vunpack.c.l.b16 %v3478
  %v3579 = vunpack.c.h.b16 %v3478
  %v3580 = vunpack.c.l.b16 %v3479
  %v3581 = vunpack.c.h.b16 %v3479
  %v3582 = vunpack.c.l.b16 %v3480
  %v3583 = vunpack.c.h.b16 %v3480
  %v3584 = vunpack.c.l.b16 %v3481
  %v3585 = vunpack.c.h.b16 %v3481
  %v3586 = vunpack.c.l.b16 %v3482
  %v3587 = vunpack.c.h.b16 %v3482
  %v3588 = vunpack.c.l.b16 %v3483
  %v3589 = vunpack.c.h.b16 %v3483
  %v3590 = vunpack.c.l.b16 %v3484
  %v3591 = vunpack.c.h.b16 %v3484
  %v3592 = vunpack.c.l.b16 %v3485
  %v3593 = vunpack.c.h.b16 %v3485
  %v3594 = vunpack.c.l.b16 %v3486
  %v3595 = vunpack.c.h.b16 %v3486
  %v3596 = vpack.c.b16 %v3534, %v3532
  %v3597 = vpack.c.b16 %v3535, %v3533
  %v3598 = vpack.c.b16 %v3538, %v3536
  %v3599 = vpack.c.b16 %v3539, %v3537
  %v3600 = vpack.c.b16 %v3542, %v3540
  %v3601 = vpack.c.b16 %v3543, %v3541
  %v3602 = vpack.c.b16 %v3546, %v3544
  %v3603 = vpack.c.b16 %v3547, %v3545
  %v3604 = vpack.c.b16 %v3550, %v3548
  %v3605 = vpack.c.b16 %v3551, %v3549
  %v3606 = vpack.c.b16 %v3554, %v3552
  %v3607 = vpack.c.b16 %v3555, %v3553
  %v3608 = vpack.c.b16 %v3558, %v3556
  %v3609 = vpack.c.b16 %v3559, %v3557
  %v3610 = vpack.c.b16 %v3562, %v3560
  %v3611 = vpack.c.b16 %v3563, %v3561
  %v3612 = vpack.c.b16 %v3566, %v3564
  %v3613 = vpack.c.b16 %v3567, %v3565
  %v3614 = vpack.c.b16 %v3570, %v3568
  %v3615 = vpack.c.b16 %v3571, %v3569
  %v3616 = vpack.c.b16 %v3574, %v3572
  %v3617 = vpack.c.b16 %v3575, %v3573
  %v3618 = vpack.c.b16 %v3578, %v3576
  %v3619 = vpack.c.b16 %v3579, %v3577
  %v3620 = vpack.c.b16 %v3582, %v3580
  %v3621 = vpack.c.b16 %v3583, %v3581
  %v3622 = vpack.c.b16 %v3586, %v3584
  %v3623 = vpack.c.b16 %v3587, %v3585
  %v3624 = vpack.c.b16 %v3590, %v3588
  %v3625 = vpack.c.b16 %v3591, %v3589
  %v3626 = vpack.c.b16 %v3594, %v3592
  %v3627 = vpack.c.b16 %v3595, %v3593
  %3660 = vmatprep.subr.bf16.mxu0 %v3597
  %3661 = vmatpush1.bf16.msra.mxu0 %v3596
  %3662 = vmatprep.subr.bf16.mxu0 %v3599
  %3663 = vmatpush1.bf16.msra.mxu0 %v3598
  %3664 = vmatprep.subr.bf16.mxu0 %v3601
  %3665 = vmatpush1.bf16.msra.mxu0 %v3600
  %3666 = vmatprep.subr.bf16.mxu0 %v3603
  %3667 = vmatpush1.bf16.msra.mxu0 %v3602
  %3668 = vmatprep.subr.bf16.mxu0 %v3605
  %3669 = vmatpush1.bf16.msra.mxu0 %v3604
  %3670 = vmatprep.subr.bf16.mxu0 %v3607
  %3671 = vmatpush1.bf16.msra.mxu0 %v3606
  %3672 = vmatprep.subr.bf16.mxu0 %v3609
  %3673 = vmatpush1.bf16.msra.mxu0 %v3608
  %3674 = vmatprep.subr.bf16.mxu0 %v3611
  %3675 = vmatpush1.bf16.msra.mxu0 %v3610
  %3676 = vmatprep.subr.bf16.mxu0 %v3613
  %3677 = vmatpush1.bf16.msra.mxu0 %v3612
  %3678 = vmatprep.subr.bf16.mxu0 %v3615
  %3679 = vmatpush1.bf16.msra.mxu0 %v3614
  %3680 = vmatprep.subr.bf16.mxu0 %v3617
  %3681 = vmatpush1.bf16.msra.mxu0 %v3616
  %3682 = vmatprep.subr.bf16.mxu0 %v3619
  %3683 = vmatpush1.bf16.msra.mxu0 %v3618
  %3684 = vmatprep.subr.bf16.mxu0 %v3621
  %3685 = vmatpush1.bf16.msra.mxu0 %v3620
  %3686 = vmatprep.subr.bf16.mxu0 %v3623
  %3687 = vmatpush1.bf16.msra.mxu0 %v3622
  %3688 = vmatprep.subr.bf16.mxu0 %v3625
  %3689 = vmatpush1.bf16.msra.mxu0 %v3624
  %3690 = vmatprep.subr.bf16.mxu0 %v3627
  %3691 = vmatpush1.bf16.msra.mxu0 %v3626
  %3692 = vmatprep.mubr.bf16.mxu0 %v3451
  %3693 = vmatmul.mubr.bf16.gmra.mrb[0].mxu0 %v3450
  %v3694 = vpop.f32.mrb[0].mxu0
  %v3695 = vadd.f32 %v3493, %v3694
  %v3696 = vpop.f32.mrb[0].mxu0
  %v3697 = vadd.f32 %v3497, %v3696
  %v3698 = vpop.f32.mrb[0].mxu0
  %v3699 = vadd.f32 %v3493, %v3698
  %v3700 = vpop.f32.mrb[0].mxu0
  %v3701 = vadd.f32 %v3497, %v3700
  %3702 = vmatprep.mubr.bf16.mxu0 %v3453
  %3703 = vmatmul.mubr.bf16.gmra.mrb[0].mxu0 %v3452
  %v3704 = vpop.f32.mrb[0].mxu0
  %v3705 = vadd.f32 %v3493, %v3704
  %v3706 = vpop.f32.mrb[0].mxu0
  %v3707 = vadd.f32 %v3497, %v3706
  %v3708 = vpop.f32.mrb[0].mxu0
  %v3709 = vadd.f32 %v3493, %v3708
  %v3710 = vpop.f32.mrb[0].mxu0
  %v3711 = vadd.f32 %v3497, %v3710
  %3712 = vdwg.mxu0
  %v3713 = vmax.f32 %v3695, 0.0
  %v3714 = vmax.f32 %v3697, 0.0
  %v3715 = vmax.f32 %v3699, 0.0
  %v3716 = vmax.f32 %v3701, 0.0
  %v3717 = vmax.f32 %v3705, 0.0
  %v3718 = vmax.f32 %v3707, 0.0
  %v3719 = vmax.f32 %v3709, 0.0
  %v3720 = vmax.f32 %v3711, 0.0
  %v3721 = vpack.c.bf16 %v3715, %v3713
  %v3722 = vpack.c.bf16 %v3716, %v3714
  %v3723 = vpack.c.bf16 %v3719, %v3717
  %v3724 = vpack.c.bf16 %v3720, %v3718
  %s3725 = scalar_lea.vmem %s24, 256
  %v3726 = vld [vmem:[%s3725] sm:$0xff]
  %v3727 = vld [vmem:[%s3725 + $0x8] sm:$0xff]
  %v3728 = vld [vmem:[%s3725 + $0x10] sm:$0xff]
  %v3729 = vld [vmem:[%s3725 + $0x18] sm:$0xff]
  %v3730 = vld [vmem:[%s3725 + $0x20] sm:$0xff]
  %v3731 = vld [vmem:[%s3725 + $0x28] sm:$0xff]
  %v3732 = vld [vmem:[%s3725 + $0x30] sm:$0xff]
  %v3733 = vld [vmem:[%s3725 + $0x38] sm:$0xff]
  %v3734 = vld [vmem:[%s3725 + $0x40] sm:$0xff]
  %v3735 = vld [vmem:[%s3725 + $0x48] sm:$0xff]
  %v3736 = vld [vmem:[%s3725 + $0x50] sm:$0xff]
  %v3737 = vld [vmem:[%s3725 + $0x58] sm:$0xff]
  %v3738 = vld [vmem:[%s3725 + $0x60] sm:$0xff]
  %v3739 = vld [vmem:[%s3725 + $0x68] sm:$0xff]
  %v3740 = vld [vmem:[%s3725 + $0x70] sm:$0xff]
  %v3741 = vld [vmem:[%s3725 + $0x78] sm:$0xff]
  %v3742 = vld [vmem:[%s3725 + $0x80] sm:$0xff]
  %v3743 = vld [vmem:[%s3725 + $0x88] sm:$0xff]
  %v3744 = vld [vmem:[%s3725 + $0x90] sm:$0xff]
  %v3745 = vld [vmem:[%s3725 + $0x98] sm:$0xff]
  %v3746 = vld [vmem:[%s3725 + $0xa0] sm:$0xff]
  %v3747 = vld [vmem:[%s3725 + $0xa8] sm:$0xff]
  %v3748 = vld [vmem:[%s3725 + $0xb0] sm:$0xff]
  %v3749 = vld [vmem:[%s3725 + $0xb8] sm:$0xff]
  %v3750 = vld [vmem:[%s3725 + $0xc0] sm:$0xff]
  %v3751 = vld [vmem:[%s3725 + $0xc8] sm:$0xff]
  %v3752 = vld [vmem:[%s3725 + $0xd0] sm:$0xff]
  %v3753 = vld [vmem:[%s3725 + $0xd8] sm:$0xff]
  %v3754 = vld [vmem:[%s3725 + $0xe0] sm:$0xff]
  %v3755 = vld [vmem:[%s3725 + $0xe8] sm:$0xff]
  %v3756 = vld [vmem:[%s3725 + $0xf0] sm:$0xff]
  %v3757 = vld [vmem:[%s3725 + $0xf8] sm:$0xff]
  %s3758 = scalar_lea.vmem %s25, 2
  %v3759 = vld [vmem:[%s3758] sm:$0x3]
  %v3761 = vlaneseq
  %v3762 = vshrl.u32 %v3761, 7
  %v3763 = vsub.s32 0, %v3762
  %v3764 = vrot.slane %v3759, %v3763
  %v3765 = vlaneseq
  %v3766 = vshrl.u32 %v3765, 7
  %v3767 = vsub.s32 1, %v3766
  %v3768 = vrot.slane %v3759, %v3767
  %v3803 = vunpack.c.l.b16 %v3726
  %v3804 = vunpack.c.h.b16 %v3726
  %v3805 = vunpack.c.l.b16 %v3727
  %v3806 = vunpack.c.h.b16 %v3727
  %v3807 = vunpack.c.l.b16 %v3728
  %v3808 = vunpack.c.h.b16 %v3728
  %v3809 = vunpack.c.l.b16 %v3729
  %v3810 = vunpack.c.h.b16 %v3729
  %v3811 = vunpack.c.l.b16 %v3730
  %v3812 = vunpack.c.h.b16 %v3730
  %v3813 = vunpack.c.l.b16 %v3731
  %v3814 = vunpack.c.h.b16 %v3731
  %v3815 = vunpack.c.l.b16 %v3732
  %v3816 = vunpack.c.h.b16 %v3732
  %v3817 = vunpack.c.l.b16 %v3733
  %v3818 = vunpack.c.h.b16 %v3733
  %v3819 = vunpack.c.l.b16 %v3734
  %v3820 = vunpack.c.h.b16 %v3734
  %v3821 = vunpack.c.l.b16 %v3735
  %v3822 = vunpack.c.h.b16 %v3735
  %v3823 = vunpack.c.l.b16 %v3736
  %v3824 = vunpack.c.h.b16 %v3736
  %v3825 = vunpack.c.l.b16 %v3737
  %v3826 = vunpack.c.h.b16 %v3737
  %v3827 = vunpack.c.l.b16 %v3738
  %v3828 = vunpack.c.h.b16 %v3738
  %v3829 = vunpack.c.l.b16 %v3739
  %v3830 = vunpack.c.h.b16 %v3739
  %v3831 = vunpack.c.l.b16 %v3740
  %v3832 = vunpack.c.h.b16 %v3740
  %v3833 = vunpack.c.l.b16 %v3741
  %v3834 = vunpack.c.h.b16 %v3741
  %v3835 = vunpack.c.l.b16 %v3742
  %v3836 = vunpack.c.h.b16 %v3742
  %v3837 = vunpack.c.l.b16 %v3743
  %v3838 = vunpack.c.h.b16 %v3743
  %v3839 = vunpack.c.l.b16 %v3744
  %v3840 = vunpack.c.h.b16 %v3744
  %v3841 = vunpack.c.l.b16 %v3745
  %v3842 = vunpack.c.h.b16 %v3745
  %v3843 = vunpack.c.l.b16 %v3746
  %v3844 = vunpack.c.h.b16 %v3746
  %v3845 = vunpack.c.l.b16 %v3747
  %v3846 = vunpack.c.h.b16 %v3747
  %v3847 = vunpack.c.l.b16 %v3748
  %v3848 = vunpack.c.h.b16 %v3748
  %v3849 = vunpack.c.l.b16 %v3749
  %v3850 = vunpack.c.h.b16 %v3749
  %v3851 = vunpack.c.l.b16 %v3750
  %v3852 = vunpack.c.h.b16 %v3750
  %v3853 = vunpack.c.l.b16 %v3751
  %v3854 = vunpack.c.h.b16 %v3751
  %v3855 = vunpack.c.l.b16 %v3752
  %v3856 = vunpack.c.h.b16 %v3752
  %v3857 = vunpack.c.l.b16 %v3753
  %v3858 = vunpack.c.h.b16 %v3753
  %v3859 = vunpack.c.l.b16 %v3754
  %v3860 = vunpack.c.h.b16 %v3754
  %v3861 = vunpack.c.l.b16 %v3755
  %v3862 = vunpack.c.h.b16 %v3755
  %v3863 = vunpack.c.l.b16 %v3756
  %v3864 = vunpack.c.h.b16 %v3756
  %v3865 = vunpack.c.l.b16 %v3757
  %v3866 = vunpack.c.h.b16 %v3757
  %v3867 = vpack.c.b16 %v3805, %v3803
  %v3868 = vpack.c.b16 %v3806, %v3804
  %v3869 = vpack.c.b16 %v3809, %v3807
  %v3870 = vpack.c.b16 %v3810, %v3808
  %v3871 = vpack.c.b16 %v3813, %v3811
  %v3872 = vpack.c.b16 %v3814, %v3812
  %v3873 = vpack.c.b16 %v3817, %v3815
  %v3874 = vpack.c.b16 %v3818, %v3816
  %v3875 = vpack.c.b16 %v3821, %v3819
  %v3876 = vpack.c.b16 %v3822, %v3820
  %v3877 = vpack.c.b16 %v3825, %v3823
  %v3878 = vpack.c.b16 %v3826, %v3824
  %v3879 = vpack.c.b16 %v3829, %v3827
  %v3880 = vpack.c.b16 %v3830, %v3828
  %v3881 = vpack.c.b16 %v3833, %v3831
  %v3882 = vpack.c.b16 %v3834, %v3832
  %v3883 = vpack.c.b16 %v3837, %v3835
  %v3884 = vpack.c.b16 %v3838, %v3836
  %v3885 = vpack.c.b16 %v3841, %v3839
  %v3886 = vpack.c.b16 %v3842, %v3840
  %v3887 = vpack.c.b16 %v3845, %v3843
  %v3888 = vpack.c.b16 %v3846, %v3844
  %v3889 = vpack.c.b16 %v3849, %v3847
  %v3890 = vpack.c.b16 %v3850, %v3848
  %v3891 = vpack.c.b16 %v3853, %v3851
  %v3892 = vpack.c.b16 %v3854, %v3852
  %v3893 = vpack.c.b16 %v3857, %v3855
  %v3894 = vpack.c.b16 %v3858, %v3856
  %v3895 = vpack.c.b16 %v3861, %v3859
  %v3896 = vpack.c.b16 %v3862, %v3860
  %v3897 = vpack.c.b16 %v3865, %v3863
  %v3898 = vpack.c.b16 %v3866, %v3864
  %3931 = vmatprep.subr.bf16.mxu0 %v3868
  %3932 = vmatpush1.bf16.msra.mxu0 %v3867
  %3933 = vmatprep.subr.bf16.mxu0 %v3870
  %3934 = vmatpush1.bf16.msra.mxu0 %v3869
  %3935 = vmatprep.subr.bf16.mxu0 %v3872
  %3936 = vmatpush1.bf16.msra.mxu0 %v3871
  %3937 = vmatprep.subr.bf16.mxu0 %v3874
  %3938 = vmatpush1.bf16.msra.mxu0 %v3873
  %3939 = vmatprep.subr.bf16.mxu0 %v3876
  %3940 = vmatpush1.bf16.msra.mxu0 %v3875
  %3941 = vmatprep.subr.bf16.mxu0 %v3878
  %3942 = vmatpush1.bf16.msra.mxu0 %v3877
  %3943 = vmatprep.subr.bf16.mxu0 %v3880
  %3944 = vmatpush1.bf16.msra.mxu0 %v3879
  %3945 = vmatprep.subr.bf16.mxu0 %v3882
  %3946 = vmatpush1.bf16.msra.mxu0 %v3881
  %3947 = vmatprep.subr.bf16.mxu0 %v3884
  %3948 = vmatpush1.bf16.msra.mxu0 %v3883
  %3949 = vmatprep.subr.bf16.mxu0 %v3886
  %3950 = vmatpush1.bf16.msra.mxu0 %v3885
  %3951 = vmatprep.subr.bf16.mxu0 %v3888
  %3952 = vmatpush1.bf16.msra.mxu0 %v3887
  %3953 = vmatprep.subr.bf16.mxu0 %v3890
  %3954 = vmatpush1.bf16.msra.mxu0 %v3889
  %3955 = vmatprep.subr.bf16.mxu0 %v3892
  %3956 = vmatpush1.bf16.msra.mxu0 %v3891
  %3957 = vmatprep.subr.bf16.mxu0 %v3894
  %3958 = vmatpush1.bf16.msra.mxu0 %v3893
  %3959 = vmatprep.subr.bf16.mxu0 %v3896
  %3960 = vmatpush1.bf16.msra.mxu0 %v3895
  %3961 = vmatprep.subr.bf16.mxu0 %v3898
  %3962 = vmatpush1.bf16.msra.mxu0 %v3897
  %3963 = vmatprep.mubr.bf16.mxu0 %v3722
  %3964 = vmatmul.mubr.bf16.gmra.mrb[0].mxu0 %v3721
  %v3965 = vpop.f32.mrb[0].mxu0
  %v3966 = vadd.f32 %v3764, %v3965
  %v3967 = vpop.f32.mrb[0].mxu0
  %v3968 = vadd.f32 %v3768, %v3967
  %v3969 = vpop.f32.mrb[0].mxu0
  %v3970 = vadd.f32 %v3764, %v3969
  %v3971 = vpop.f32.mrb[0].mxu0
  %v3972 = vadd.f32 %v3768, %v3971
  %3973 = vmatprep.mubr.bf16.mxu0 %v3724
  %3974 = vmatmul.mubr.bf16.gmra.mrb[0].mxu0 %v3723
  %v3975 = vpop.f32.mrb[0].mxu0
  %v3976 = vadd.f32 %v3764, %v3975
  %v3977 = vpop.f32.mrb[0].mxu0
  %v3978 = vadd.f32 %v3768, %v3977
  %v3979 = vpop.f32.mrb[0].mxu0
  %v3980 = vadd.f32 %v3764, %v3979
  %v3981 = vpop.f32.mrb[0].mxu0
  %v3982 = vadd.f32 %v3768, %v3981
  %3983 = vdwg.mxu0
  %v3984 = vadd.f32 %v3966, %v3442
  %v3985 = vadd.f32 %v3968, %v3443
  %v3986 = vadd.f32 %v3970, %v3444
  %v3987 = vadd.f32 %v3972, %v3445
  %v3988 = vadd.f32 %v3976, %v3446
  %v3989 = vadd.f32 %v3978, %v3447
  %v3990 = vadd.f32 %v3980, %v3448
  %v3991 = vadd.f32 %v3982, %v3449
  %v3992 = vpack.c.bf16 %v3986, %v3984
  %v3993 = vpack.c.bf16 %v3987, %v3985
  %v3994 = vpack.c.bf16 %v3990, %v3988
  %v3995 = vpack.c.bf16 %v3991, %v3989
  %s3996 = scalar_lea.vmem %s22, 512
  %v3997 = vld [vmem:[%s3996] sm:$0xff]
  %v3998 = vld [vmem:[%s3996 + $0x8] sm:$0xff]
  %v3999 = vld [vmem:[%s3996 + $0x10] sm:$0xff]
  %v4000 = vld [vmem:[%s3996 + $0x18] sm:$0xff]
  %v4001 = vld [vmem:[%s3996 + $0x20] sm:$0xff]
  %v4002 = vld [vmem:[%s3996 + $0x28] sm:$0xff]
  %v4003 = vld [vmem:[%s3996 + $0x30] sm:$0xff]
  %v4004 = vld [vmem:[%s3996 + $0x38] sm:$0xff]
  %v4005 = vld [vmem:[%s3996 + $0x40] sm:$0xff]
  %v4006 = vld [vmem:[%s3996 + $0x48] sm:$0xff]
  %v4007 = vld [vmem:[%s3996 + $0x50] sm:$0xff]
  %v4008 = vld [vmem:[%s3996 + $0x58] sm:$0xff]
  %v4009 = vld [vmem:[%s3996 + $0x60] sm:$0xff]
  %v4010 = vld [vmem:[%s3996 + $0x68] sm:$0xff]
  %v4011 = vld [vmem:[%s3996 + $0x70] sm:$0xff]
  %v4012 = vld [vmem:[%s3996 + $0x78] sm:$0xff]
  %v4013 = vld [vmem:[%s3996 + $0x80] sm:$0xff]
  %v4014 = vld [vmem:[%s3996 + $0x88] sm:$0xff]
  %v4015 = vld [vmem:[%s3996 + $0x90] sm:$0xff]
  %v4016 = vld [vmem:[%s3996 + $0x98] sm:$0xff]
  %v4017 = vld [vmem:[%s3996 + $0xa0] sm:$0xff]
  %v4018 = vld [vmem:[%s3996 + $0xa8] sm:$0xff]
  %v4019 = vld [vmem:[%s3996 + $0xb0] sm:$0xff]
  %v4020 = vld [vmem:[%s3996 + $0xb8] sm:$0xff]
  %v4021 = vld [vmem:[%s3996 + $0xc0] sm:$0xff]
  %v4022 = vld [vmem:[%s3996 + $0xc8] sm:$0xff]
  %v4023 = vld [vmem:[%s3996 + $0xd0] sm:$0xff]
  %v4024 = vld [vmem:[%s3996 + $0xd8] sm:$0xff]
  %v4025 = vld [vmem:[%s3996 + $0xe0] sm:$0xff]
  %v4026 = vld [vmem:[%s3996 + $0xe8] sm:$0xff]
  %v4027 = vld [vmem:[%s3996 + $0xf0] sm:$0xff]
  %v4028 = vld [vmem:[%s3996 + $0xf8] sm:$0xff]
  %s4029 = scalar_lea.vmem %s23, 4
  %v4030 = vld [vmem:[%s4029] sm:$0x3]
  %v4032 = vlaneseq
  %v4033 = vshrl.u32 %v4032, 7
  %v4034 = vsub.s32 0, %v4033
  %v4035 = vrot.slane %v4030, %v4034
  %v4036 = vlaneseq
  %v4037 = vshrl.u32 %v4036, 7
  %v4038 = vsub.s32 1, %v4037
  %v4039 = vrot.slane %v4030, %v4038
  %v4074 = vunpack.c.l.b16 %v3997
  %v4075 = vunpack.c.h.b16 %v3997
  %v4076 = vunpack.c.l.b16 %v3998
  %v4077 = vunpack.c.h.b16 %v3998
  %v4078 = vunpack.c.l.b16 %v3999
  %v4079 = vunpack.c.h.b16 %v3999
  %v4080 = vunpack.c.l.b16 %v4000
  %v4081 = vunpack.c.h.b16 %v4000
  %v4082 = vunpack.c.l.b16 %v4001
  %v4083 = vunpack.c.h.b16 %v4001
  %v4084 = vunpack.c.l.b16 %v4002
  %v4085 = vunpack.c.h.b16 %v4002
  %v4086 = vunpack.c.l.b16 %v4003
  %v4087 = vunpack.c.h.b16 %v4003
  %v4088 = vunpack.c.l.b16 %v4004
  %v4089 = vunpack.c.h.b16 %v4004
  %v4090 = vunpack.c.l.b16 %v4005
  %v4091 = vunpack.c.h.b16 %v4005
  %v4092 = vunpack.c.l.b16 %v4006
  %v4093 = vunpack.c.h.b16 %v4006
  %v4094 = vunpack.c.l.b16 %v4007
  %v4095 = vunpack.c.h.b16 %v4007
  %v4096 = vunpack.c.l.b16 %v4008
  %v4097 = vunpack.c.h.b16 %v4008
  %v4098 = vunpack.c.l.b16 %v4009
  %v4099 = vunpack.c.h.b16 %v4009
  %v4100 = vunpack.c.l.b16 %v4010
  %v4101 = vunpack.c.h.b16 %v4010
  %v4102 = vunpack.c.l.b16 %v4011
  %v4103 = vunpack.c.h.b16 %v4011
  %v4104 = vunpack.c.l.b16 %v4012
  %v4105 = vunpack.c.h.b16 %v4012
  %v4106 = vunpack.c.l.b16 %v4013
  %v4107 = vunpack.c.h.b16 %v4013
  %v4108 = vunpack.c.l.b16 %v4014
  %v4109 = vunpack.c.h.b16 %v4014
  %v4110 = vunpack.c.l.b16 %v4015
  %v4111 = vunpack.c.h.b16 %v4015
  %v4112 = vunpack.c.l.b16 %v4016
  %v4113 = vunpack.c.h.b16 %v4016
  %v4114 = vunpack.c.l.b16 %v4017
  %v4115 = vunpack.c.h.b16 %v4017
  %v4116 = vunpack.c.l.b16 %v4018
  %v4117 = vunpack.c.h.b16 %v4018
  %v4118 = vunpack.c.l.b16 %v4019
  %v4119 = vunpack.c.h.b16 %v4019
  %v4120 = vunpack.c.l.b16 %v4020
  %v4121 = vunpack.c.h.b16 %v4020
  %v4122 = vunpack.c.l.b16 %v4021
  %v4123 = vunpack.c.h.b16 %v4021
  %v4124 = vunpack.c.l.b16 %v4022
  %v4125 = vunpack.c.h.b16 %v4022
  %v4126 = vunpack.c.l.b16 %v4023
  %v4127 = vunpack.c.h.b16 %v4023
  %v4128 = vunpack.c.l.b16 %v4024
  %v4129 = vunpack.c.h.b16 %v4024
  %v4130 = vunpack.c.l.b16 %v4025
  %v4131 = vunpack.c.h.b16 %v4025
  %v4132 = vunpack.c.l.b16 %v4026
  %v4133 = vunpack.c.h.b16 %v4026
  %v4134 = vunpack.c.l.b16 %v4027
  %v4135 = vunpack.c.h.b16 %v4027
  %v4136 = vunpack.c.l.b16 %v4028
  %v4137 = vunpack.c.h.b16 %v4028
  %v4138 = vpack.c.b16 %v4076, %v4074
  %v4139 = vpack.c.b16 %v4077, %v4075
  %v4140 = vpack.c.b16 %v4080, %v4078
  %v4141 = vpack.c.b16 %v4081, %v4079
  %v4142 = vpack.c.b16 %v4084, %v4082
  %v4143 = vpack.c.b16 %v4085, %v4083
  %v4144 = vpack.c.b16 %v4088, %v4086
  %v4145 = vpack.c.b16 %v4089, %v4087
  %v4146 = vpack.c.b16 %v4092, %v4090
  %v4147 = vpack.c.b16 %v4093, %v4091
  %v4148 = vpack.c.b16 %v4096, %v4094
  %v4149 = vpack.c.b16 %v4097, %v4095
  %v4150 = vpack.c.b16 %v4100, %v4098
  %v4151 = vpack.c.b16 %v4101, %v4099
  %v4152 = vpack.c.b16 %v4104, %v4102
  %v4153 = vpack.c.b16 %v4105, %v4103
  %v4154 = vpack.c.b16 %v4108, %v4106
  %v4155 = vpack.c.b16 %v4109, %v4107
  %v4156 = vpack.c.b16 %v4112, %v4110
  %v4157 = vpack.c.b16 %v4113, %v4111
  %v4158 = vpack.c.b16 %v4116, %v4114
  %v4159 = vpack.c.b16 %v4117, %v4115
  %v4160 = vpack.c.b16 %v4120, %v4118
  %v4161 = vpack.c.b16 %v4121, %v4119
  %v4162 = vpack.c.b16 %v4124, %v4122
  %v4163 = vpack.c.b16 %v4125, %v4123
  %v4164 = vpack.c.b16 %v4128, %v4126
  %v4165 = vpack.c.b16 %v4129, %v4127
  %v4166 = vpack.c.b16 %v4132, %v4130
  %v4167 = vpack.c.b16 %v4133, %v4131
  %v4168 = vpack.c.b16 %v4136, %v4134
  %v4169 = vpack.c.b16 %v4137, %v4135
  %4202 = vmatprep.subr.bf16.mxu0 %v4139
  %4203 = vmatpush1.bf16.msra.mxu0 %v4138
  %4204 = vmatprep.subr.bf16.mxu0 %v4141
  %4205 = vmatpush1.bf16.msra.mxu0 %v4140
  %4206 = vmatprep.subr.bf16.mxu0 %v4143
  %4207 = vmatpush1.bf16.msra.mxu0 %v4142
  %4208 = vmatprep.subr.bf16.mxu0 %v4145
  %4209 = vmatpush1.bf16.msra.mxu0 %v4144
  %4210 = vmatprep.subr.bf16.mxu0 %v4147
  %4211 = vmatpush1.bf16.msra.mxu0 %v4146
  %4212 = vmatprep.subr.bf16.mxu0 %v4149
  %4213 = vmatpush1.bf16.msra.mxu0 %v4148
  %4214 = vmatprep.subr.bf16.mxu0 %v4151
  %4215 = vmatpush1.bf16.msra.mxu0 %v4150
  %4216 = vmatprep.subr.bf16.mxu0 %v4153
  %4217 = vmatpush1.bf16.msra.mxu0 %v4152
  %4218 = vmatprep.subr.bf16.mxu0 %v4155
  %4219 = vmatpush1.bf16.msra.mxu0 %v4154
  %4220 = vmatprep.subr.bf16.mxu0 %v4157
  %4221 = vmatpush1.bf16.msra.mxu0 %v4156
  %4222 = vmatprep.subr.bf16.mxu0 %v4159
  %4223 = vmatpush1.bf16.msra.mxu0 %v4158
  %4224 = vmatprep.subr.bf16.mxu0 %v4161
  %4225 = vmatpush1.bf16.msra.mxu0 %v4160
  %4226 = vmatprep.subr.bf16.mxu0 %v4163
  %4227 = vmatpush1.bf16.msra.mxu0 %v4162
  %4228 = vmatprep.subr.bf16.mxu0 %v4165
  %4229 = vmatpush1.bf16.msra.mxu0 %v4164
  %4230 = vmatprep.subr.bf16.mxu0 %v4167
  %4231 = vmatpush1.bf16.msra.mxu0 %v4166
  %4232 = vmatprep.subr.bf16.mxu0 %v4169
  %4233 = vmatpush1.bf16.msra.mxu0 %v4168
  %4234 = vmatprep.mubr.bf16.mxu0 %v3993
  %4235 = vmatmul.mubr.bf16.gmra.mrb[0].mxu0 %v3992
  %v4236 = vpop.f32.mrb[0].mxu0
  %v4237 = vadd.f32 %v4035, %v4236
  %v4238 = vpop.f32.mrb[0].mxu0
  %v4239 = vadd.f32 %v4039, %v4238
  %v4240 = vpop.f32.mrb[0].mxu0
  %v4241 = vadd.f32 %v4035, %v4240
  %v4242 = vpop.f32.mrb[0].mxu0
  %v4243 = vadd.f32 %v4039, %v4242
  %4244 = vmatprep.mubr.bf16.mxu0 %v3995
  %4245 = vmatmul.mubr.bf16.gmra.mrb[0].mxu0 %v3994
  %v4246 = vpop.f32.mrb[0].mxu0
  %v4247 = vadd.f32 %v4035, %v4246
  %v4248 = vpop.f32.mrb[0].mxu0
  %v4249 = vadd.f32 %v4039, %v4248
  %v4250 = vpop.f32.mrb[0].mxu0
  %v4251 = vadd.f32 %v4035, %v4250
  %v4252 = vpop.f32.mrb[0].mxu0
  %v4253 = vadd.f32 %v4039, %v4252
  %4254 = vdwg.mxu0
  %v4255 = vmax.f32 %v4237, 0.0
  %v4256 = vmax.f32 %v4239, 0.0
  %v4257 = vmax.f32 %v4241, 0.0
  %v4258 = vmax.f32 %v4243, 0.0
  %v4259 = vmax.f32 %v4247, 0.0
  %v4260 = vmax.f32 %v4249, 0.0
  %v4261 = vmax.f32 %v4251, 0.0
  %v4262 = vmax.f32 %v4253, 0.0
  %v4263 = vpack.c.bf16 %v4257, %v4255
  %v4264 = vpack.c.bf16 %v4258, %v4256
  %v4265 = vpack.c.bf16 %v4261, %v4259
  %v4266 = vpack.c.bf16 %v4262, %v4260
  %s4267 = scalar_lea.vmem %s24, 512
  %v4268 = vld [vmem:[%s4267] sm:$0xff]
  %v4269 = vld [vmem:[%s4267 + $0x8] sm:$0xff]
  %v4270 = vld [vmem:[%s4267 + $0x10] sm:$0xff]
  %v4271 = vld [vmem:[%s4267 + $0x18] sm:$0xff]
  %v4272 = vld [vmem:[%s4267 + $0x20] sm:$0xff]
  %v4273 = vld [vmem:[%s4267 + $0x28] sm:$0xff]
  %v4274 = vld [vmem:[%s4267 + $0x30] sm:$0xff]
  %v4275 = vld [vmem:[%s4267 + $0x38] sm:$0xff]
  %v4276 = vld [vmem:[%s4267 + $0x40] sm:$0xff]
  %v4277 = vld [vmem:[%s4267 + $0x48] sm:$0xff]
  %v4278 = vld [vmem:[%s4267 + $0x50] sm:$0xff]
  %v4279 = vld [vmem:[%s4267 + $0x58] sm:$0xff]
  %v4280 = vld [vmem:[%s4267 + $0x60] sm:$0xff]
  %v4281 = vld [vmem:[%s4267 + $0x68] sm:$0xff]
  %v4282 = vld [vmem:[%s4267 + $0x70] sm:$0xff]
  %v4283 = vld [vmem:[%s4267 + $0x78] sm:$0xff]
  %v4284 = vld [vmem:[%s4267 + $0x80] sm:$0xff]
  %v4285 = vld [vmem:[%s4267 + $0x88] sm:$0xff]
  %v4286 = vld [vmem:[%s4267 + $0x90] sm:$0xff]
  %v4287 = vld [vmem:[%s4267 + $0x98] sm:$0xff]
  %v4288 = vld [vmem:[%s4267 + $0xa0] sm:$0xff]
  %v4289 = vld [vmem:[%s4267 + $0xa8] sm:$0xff]
  %v4290 = vld [vmem:[%s4267 + $0xb0] sm:$0xff]
  %v4291 = vld [vmem:[%s4267 + $0xb8] sm:$0xff]
  %v4292 = vld [vmem:[%s4267 + $0xc0] sm:$0xff]
  %v4293 = vld [vmem:[%s4267 + $0xc8] sm:$0xff]
  %v4294 = vld [vmem:[%s4267 + $0xd0] sm:$0xff]
  %v4295 = vld [vmem:[%s4267 + $0xd8] sm:$0xff]
  %v4296 = vld [vmem:[%s4267 + $0xe0] sm:$0xff]
  %v4297 = vld [vmem:[%s4267 + $0xe8] sm:$0xff]
  %v4298 = vld [vmem:[%s4267 + $0xf0] sm:$0xff]
  %v4299 = vld [vmem:[%s4267 + $0xf8] sm:$0xff]
  %s4300 = scalar_lea.vmem %s25, 4
  %v4301 = vld [vmem:[%s4300] sm:$0x3]
  %v4303 = vlaneseq
  %v4304 = vshrl.u32 %v4303, 7
  %v4305 = vsub.s32 0, %v4304
  %v4306 = vrot.slane %v4301, %v4305
  %v4307 = vlaneseq
  %v4308 = vshrl.u32 %v4307, 7
  %v4309 = vsub.s32 1, %v4308
  %v4310 = vrot.slane %v4301, %v4309
  %v4345 = vunpack.c.l.b16 %v4268
  %v4346 = vunpack.c.h.b16 %v4268
  %v4347 = vunpack.c.l.b16 %v4269
  %v4348 = vunpack.c.h.b16 %v4269
  %v4349 = vunpack.c.l.b16 %v4270
  %v4350 = vunpack.c.h.b16 %v4270
  %v4351 = vunpack.c.l.b16 %v4271
  %v4352 = vunpack.c.h.b16 %v4271
  %v4353 = vunpack.c.l.b16 %v4272
  %v4354 = vunpack.c.h.b16 %v4272
  %v4355 = vunpack.c.l.b16 %v4273
  %v4356 = vunpack.c.h.b16 %v4273
  %v4357 = vunpack.c.l.b16 %v4274
  %v4358 = vunpack.c.h.b16 %v4274
  %v4359 = vunpack.c.l.b16 %v4275
  %v4360 = vunpack.c.h.b16 %v4275
  %v4361 = vunpack.c.l.b16 %v4276
  %v4362 = vunpack.c.h.b16 %v4276
  %v4363 = vunpack.c.l.b16 %v4277
  %v4364 = vunpack.c.h.b16 %v4277
  %v4365 = vunpack.c.l.b16 %v4278
  %v4366 = vunpack.c.h.b16 %v4278
  %v4367 = vunpack.c.l.b16 %v4279
  %v4368 = vunpack.c.h.b16 %v4279
  %v4369 = vunpack.c.l.b16 %v4280
  %v4370 = vunpack.c.h.b16 %v4280
  %v4371 = vunpack.c.l.b16 %v4281
  %v4372 = vunpack.c.h.b16 %v4281
  %v4373 = vunpack.c.l.b16 %v4282
  %v4374 = vunpack.c.h.b16 %v4282
  %v4375 = vunpack.c.l.b16 %v4283
  %v4376 = vunpack.c.h.b16 %v4283
  %v4377 = vunpack.c.l.b16 %v4284
  %v4378 = vunpack.c.h.b16 %v4284
  %v4379 = vunpack.c.l.b16 %v4285
  %v4380 = vunpack.c.h.b16 %v4285
  %v4381 = vunpack.c.l.b16 %v4286
  %v4382 = vunpack.c.h.b16 %v4286
  %v4383 = vunpack.c.l.b16 %v4287
  %v4384 = vunpack.c.h.b16 %v4287
  %v4385 = vunpack.c.l.b16 %v4288
  %v4386 = vunpack.c.h.b16 %v4288
  %v4387 = vunpack.c.l.b16 %v4289
  %v4388 = vunpack.c.h.b16 %v4289
  %v4389 = vunpack.c.l.b16 %v4290
  %v4390 = vunpack.c.h.b16 %v4290
  %v4391 = vunpack.c.l.b16 %v4291
  %v4392 = vunpack.c.h.b16 %v4291
  %v4393 = vunpack.c.l.b16 %v4292
  %v4394 = vunpack.c.h.b16 %v4292
  %v4395 = vunpack.c.l.b16 %v4293
  %v4396 = vunpack.c.h.b16 %v4293
  %v4397 = vunpack.c.l.b16 %v4294
  %v4398 = vunpack.c.h.b16 %v4294
  %v4399 = vunpack.c.l.b16 %v4295
  %v4400 = vunpack.c.h.b16 %v4295
  %v4401 = vunpack.c.l.b16 %v4296
  %v4402 = vunpack.c.h.b16 %v4296
  %v4403 = vunpack.c.l.b16 %v4297
  %v4404 = vunpack.c.h.b16 %v4297
  %v4405 = vunpack.c.l.b16 %v4298
  %v4406 = vunpack.c.h.b16 %v4298
  %v4407 = vunpack.c.l.b16 %v4299
  %v4408 = vunpack.c.h.b16 %v4299
  %v4409 = vpack.c.b16 %v4347, %v4345
  %v4410 = vpack.c.b16 %v4348, %v4346
  %v4411 = vpack.c.b16 %v4351, %v4349
  %v4412 = vpack.c.b16 %v4352, %v4350
  %v4413 = vpack.c.b16 %v4355, %v4353
  %v4414 = vpack.c.b16 %v4356, %v4354
  %v4415 = vpack.c.b16 %v4359, %v4357
  %v4416 = vpack.c.b16 %v4360, %v4358
  %v4417 = vpack.c.b16 %v4363, %v4361
  %v4418 = vpack.c.b16 %v4364, %v4362
  %v4419 = vpack.c.b16 %v4367, %v4365
  %v4420 = vpack.c.b16 %v4368, %v4366
  %v4421 = vpack.c.b16 %v4371, %v4369
  %v4422 = vpack.c.b16 %v4372, %v4370
  %v4423 = vpack.c.b16 %v4375, %v4373
  %v4424 = vpack.c.b16 %v4376, %v4374
  %v4425 = vpack.c.b16 %v4379, %v4377
  %v4426 = vpack.c.b16 %v4380, %v4378
  %v4427 = vpack.c.b16 %v4383, %v4381
  %v4428 = vpack.c.b16 %v4384, %v4382
  %v4429 = vpack.c.b16 %v4387, %v4385
  %v4430 = vpack.c.b16 %v4388, %v4386
  %v4431 = vpack.c.b16 %v4391, %v4389
  %v4432 = vpack.c.b16 %v4392, %v4390
  %v4433 = vpack.c.b16 %v4395, %v4393
  %v4434 = vpack.c.b16 %v4396, %v4394
  %v4435 = vpack.c.b16 %v4399, %v4397
  %v4436 = vpack.c.b16 %v4400, %v4398
  %v4437 = vpack.c.b16 %v4403, %v4401
  %v4438 = vpack.c.b16 %v4404, %v4402
  %v4439 = vpack.c.b16 %v4407, %v4405
  %v4440 = vpack.c.b16 %v4408, %v4406
  %4473 = vmatprep.subr.bf16.mxu0 %v4410
  %4474 = vmatpush1.bf16.msra.mxu0 %v4409
  %4475 = vmatprep.subr.bf16.mxu0 %v4412
  %4476 = vmatpush1.bf16.msra.mxu0 %v4411
  %4477 = vmatprep.subr.bf16.mxu0 %v4414
  %4478 = vmatpush1.bf16.msra.mxu0 %v4413
  %4479 = vmatprep.subr.bf16.mxu0 %v4416
  %4480 = vmatpush1.bf16.msra.mxu0 %v4415
  %4481 = vmatprep.subr.bf16.mxu0 %v4418
  %4482 = vmatpush1.bf16.msra.mxu0 %v4417
  %4483 = vmatprep.subr.bf16.mxu0 %v4420
  %4484 = vmatpush1.bf16.msra.mxu0 %v4419
  %4485 = vmatprep.subr.bf16.mxu0 %v4422
  %4486 = vmatpush1.bf16.msra.mxu0 %v4421
  %4487 = vmatprep.subr.bf16.mxu0 %v4424
  %4488 = vmatpush1.bf16.msra.mxu0 %v4423
  %4489 = vmatprep.subr.bf16.mxu0 %v4426
  %4490 = vmatpush1.bf16.msra.mxu0 %v4425
  %4491 = vmatprep.subr.bf16.mxu0 %v4428
  %4492 = vmatpush1.bf16.msra.mxu0 %v4427
  %4493 = vmatprep.subr.bf16.mxu0 %v4430
  %4494 = vmatpush1.bf16.msra.mxu0 %v4429
  %4495 = vmatprep.subr.bf16.mxu0 %v4432
  %4496 = vmatpush1.bf16.msra.mxu0 %v4431
  %4497 = vmatprep.subr.bf16.mxu0 %v4434
  %4498 = vmatpush1.bf16.msra.mxu0 %v4433
  %4499 = vmatprep.subr.bf16.mxu0 %v4436
  %4500 = vmatpush1.bf16.msra.mxu0 %v4435
  %4501 = vmatprep.subr.bf16.mxu0 %v4438
  %4502 = vmatpush1.bf16.msra.mxu0 %v4437
  %4503 = vmatprep.subr.bf16.mxu0 %v4440
  %4504 = vmatpush1.bf16.msra.mxu0 %v4439
  %4505 = vmatprep.mubr.bf16.mxu0 %v4264
  %4506 = vmatmul.mubr.bf16.gmra.mrb[0].mxu0 %v4263
  %v4507 = vpop.f32.mrb[0].mxu0
  %v4508 = vadd.f32 %v4306, %v4507
  %v4509 = vpop.f32.mrb[0].mxu0
  %v4510 = vadd.f32 %v4310, %v4509
  %v4511 = vpop.f32.mrb[0].mxu0
  %v4512 = vadd.f32 %v4306, %v4511
  %v4513 = vpop.f32.mrb[0].mxu0
  %v4514 = vadd.f32 %v4310, %v4513
  %4515 = vmatprep.mubr.bf16.mxu0 %v4266
  %4516 = vmatmul.mubr.bf16.gmra.mrb[0].mxu0 %v4265
  %v4517 = vpop.f32.mrb[0].mxu0
  %v4518 = vadd.f32 %v4306, %v4517
  %v4519 = vpop.f32.mrb[0].mxu0
  %v4520 = vadd.f32 %v4310, %v4519
  %v4521 = vpop.f32.mrb[0].mxu0
  %v4522 = vadd.f32 %v4306, %v4521
  %v4523 = vpop.f32.mrb[0].mxu0
  %v4524 = vadd.f32 %v4310, %v4523
  %4525 = vdwg.mxu0
  %v4526 = vadd.f32 %v4508, %v3984
  %v4527 = vadd.f32 %v4510, %v3985
  %v4528 = vadd.f32 %v4512, %v3986
  %v4529 = vadd.f32 %v4514, %v3987
  %v4530 = vadd.f32 %v4518, %v3988
  %v4531 = vadd.f32 %v4520, %v3989
  %v4532 = vadd.f32 %v4522, %v3990
  %v4533 = vadd.f32 %v4524, %v3991
  %v4534 = vpack.c.bf16 %v4528, %v4526
  %v4535 = vpack.c.bf16 %v4529, %v4527
  %v4536 = vpack.c.bf16 %v4532, %v4530
  %v4537 = vpack.c.bf16 %v4533, %v4531
  %v4538 = vld [vmem:[%s26] sm:$0xf]
  %v4539 = vld [vmem:[%s26 + $0x4] sm:$0xf]
  %v4540 = vld [vmem:[%s26 + $0x8] sm:$0xf]
  %v4541 = vld [vmem:[%s26 + $0xc] sm:$0xf]
  %v4542 = vld [vmem:[%s26 + $0x10] sm:$0xf]
  %v4543 = vld [vmem:[%s26 + $0x14] sm:$0xf]
  %v4544 = vld [vmem:[%s26 + $0x18] sm:$0xf]
  %v4545 = vld [vmem:[%s26 + $0x1c] sm:$0xf]
  %v4546 = vld [vmem:[%s26 + $0x20] sm:$0xf]
  %v4547 = vld [vmem:[%s26 + $0x24] sm:$0xf]
  %v4548 = vld [vmem:[%s26 + $0x28] sm:$0xf]
  %v4549 = vld [vmem:[%s26 + $0x2c] sm:$0xf]
  %v4550 = vld [vmem:[%s26 + $0x30] sm:$0xf]
  %v4551 = vld [vmem:[%s26 + $0x34] sm:$0xf]
  %v4552 = vld [vmem:[%s26 + $0x38] sm:$0xf]
  %v4553 = vld [vmem:[%s26 + $0x3c] sm:$0xf]
  %v4554 = vld [vmem:[%s26 + $0x40] sm:$0xf]
  %v4555 = vld [vmem:[%s26 + $0x44] sm:$0xf]
  %v4556 = vld [vmem:[%s26 + $0x48] sm:$0xf]
  %v4557 = vld [vmem:[%s26 + $0x4c] sm:$0xf]
  %v4558 = vld [vmem:[%s26 + $0x50] sm:$0xf]
  %v4559 = vld [vmem:[%s26 + $0x54] sm:$0xf]
  %v4560 = vld [vmem:[%s26 + $0x58] sm:$0xf]
  %v4561 = vld [vmem:[%s26 + $0x5c] sm:$0xf]
  %v4562 = vld [vmem:[%s26 + $0x60] sm:$0xf]
  %v4563 = vld [vmem:[%s26 + $0x64] sm:$0xf]
  %v4564 = vld [vmem:[%s26 + $0x68] sm:$0xf]
  %v4565 = vld [vmem:[%s26 + $0x6c] sm:$0xf]
  %v4566 = vld [vmem:[%s26 + $0x70] sm:$0xf]
  %v4567 = vld [vmem:[%s26 + $0x74] sm:$0xf]
  %v4568 = vld [vmem:[%s26 + $0x78] sm:$0xf]
  %v4569 = vld [vmem:[%s26 + $0x7c] sm:$0xf]
  %v4570 = vld [vmem:[%s27] sm:$0x1]
  %v4572 = vlaneseq
  %v4573 = vshrl.u32 %v4572, 7
  %v4574 = vsub.s32 0, %v4573
  %v4575 = vrot.slane %v4570, %v4574
  %v4609 = vunpack.c.l.b16 %v4538
  %v4610 = vunpack.c.l.b16 %v4539
  %v4611 = vunpack.c.l.b16 %v4540
  %v4612 = vunpack.c.l.b16 %v4541
  %v4613 = vunpack.c.l.b16 %v4542
  %v4614 = vunpack.c.l.b16 %v4543
  %v4615 = vunpack.c.l.b16 %v4544
  %v4616 = vunpack.c.l.b16 %v4545
  %v4617 = vunpack.c.l.b16 %v4546
  %v4618 = vunpack.c.l.b16 %v4547
  %v4619 = vunpack.c.l.b16 %v4548
  %v4620 = vunpack.c.l.b16 %v4549
  %v4621 = vunpack.c.l.b16 %v4550
  %v4622 = vunpack.c.l.b16 %v4551
  %v4623 = vunpack.c.l.b16 %v4552
  %v4624 = vunpack.c.l.b16 %v4553
  %v4625 = vunpack.c.l.b16 %v4554
  %v4626 = vunpack.c.l.b16 %v4555
  %v4627 = vunpack.c.l.b16 %v4556
  %v4628 = vunpack.c.l.b16 %v4557
  %v4629 = vunpack.c.l.b16 %v4558
  %v4630 = vunpack.c.l.b16 %v4559
  %v4631 = vunpack.c.l.b16 %v4560
  %v4632 = vunpack.c.l.b16 %v4561
  %v4633 = vunpack.c.l.b16 %v4562
  %v4634 = vunpack.c.l.b16 %v4563
  %v4635 = vunpack.c.l.b16 %v4564
  %v4636 = vunpack.c.l.b16 %v4565
  %v4637 = vunpack.c.l.b16 %v4566
  %v4638 = vunpack.c.l.b16 %v4567
  %v4639 = vunpack.c.l.b16 %v4568
  %v4640 = vunpack.c.l.b16 %v4569
  %v4641 = vpack.c.b16 %v4610, %v4609
  %v4642 = vpack.c.b16 %v4612, %v4611
  %v4643 = vpack.c.b16 %v4614, %v4613
  %v4644 = vpack.c.b16 %v4616, %v4615
  %v4645 = vpack.c.b16 %v4618, %v4617
  %v4646 = vpack.c.b16 %v4620, %v4619
  %v4647 = vpack.c.b16 %v4622, %v4621
  %v4648 = vpack.c.b16 %v4624, %v4623
  %v4649 = vpack.c.b16 %v4626, %v4625
  %v4650 = vpack.c.b16 %v4628, %v4627
  %v4651 = vpack.c.b16 %v4630, %v4629
  %v4652 = vpack.c.b16 %v4632, %v4631
  %v4653 = vpack.c.b16 %v4634, %v4633
  %v4654 = vpack.c.b16 %v4636, %v4635
  %v4655 = vpack.c.b16 %v4638, %v4637
  %v4656 = vpack.c.b16 %v4640, %v4639
  %4673 = vmatprep.subr.bf16.mxu0 0
  %4674 = vmatpush1.bf16.msra.mxu0 %v4641
  %4675 = vmatprep.subr.bf16.mxu0 0
  %4676 = vmatpush1.bf16.msra.mxu0 %v4642
  %4677 = vmatprep.subr.bf16.mxu0 0
  %4678 = vmatpush1.bf16.msra.mxu0 %v4643
  %4679 = vmatprep.subr.bf16.mxu0 0
  %4680 = vmatpush1.bf16.msra.mxu0 %v4644
  %4681 = vmatprep.subr.bf16.mxu0 0
  %4682 = vmatpush1.bf16.msra.mxu0 %v4645
  %4683 = vmatprep.subr.bf16.mxu0 0
  %4684 = vmatpush1.bf16.msra.mxu0 %v4646
  %4685 = vmatprep.subr.bf16.mxu0 0
  %4686 = vmatpush1.bf16.msra.mxu0 %v4647
  %4687 = vmatprep.subr.bf16.mxu0 0
  %4688 = vmatpush1.bf16.msra.mxu0 %v4648
  %4689 = vmatprep.subr.bf16.mxu0 0
  %4690 = vmatpush1.bf16.msra.mxu0 %v4649
  %4691 = vmatprep.subr.bf16.mxu0 0
  %4692 = vmatpush1.bf16.msra.mxu0 %v4650
  %4693 = vmatprep.subr.bf16.mxu0 0
  %4694 = vmatpush1.bf16.msra.mxu0 %v4651
  %4695 = vmatprep.subr.bf16.mxu0 0
  %4696 = vmatpush1.bf16.msra.mxu0 %v4652
  %4697 = vmatprep.subr.bf16.mxu0 0
  %4698 = vmatpush1.bf16.msra.mxu0 %v4653
  %4699 = vmatprep.subr.bf16.mxu0 0
  %4700 = vmatpush1.bf16.msra.mxu0 %v4654
  %4701 = vmatprep.subr.bf16.mxu0 0
  %4702 = vmatpush1.bf16.msra.mxu0 %v4655
  %4703 = vmatprep.subr.bf16.mxu0 0
  %4704 = vmatpush1.bf16.msra.mxu0 %v4656
  %4705 = vmatprep.mubr.bf16.mxu0 %v4535
  %4706 = vmatmul.mubr.bf16.gmra.mrb[0].mxu0 %v4534
  %v4707 = vpop.f32.mrb[0].mxu0
  %v4708 = vadd.f32 %v4575, %v4707
  %v4709 = vpop.f32.mrb[0].mxu0
  %v4710 = vpop.f32.mrb[0].mxu0
  %v4711 = vadd.f32 %v4575, %v4710
  %v4712 = vpop.f32.mrb[0].mxu0
  %4713 = vmatprep.mubr.bf16.mxu0 %v4537
  %4714 = vmatmul.mubr.bf16.gmra.mrb[0].mxu0 %v4536
  %v4715 = vpop.f32.mrb[0].mxu0
  %v4716 = vadd.f32 %v4575, %v4715
  %v4717 = vpop.f32.mrb[0].mxu0
  %v4718 = vpop.f32.mrb[0].mxu0
  %v4719 = vadd.f32 %v4575, %v4718
  %v4720 = vpop.f32.mrb[0].mxu0
  %4721 = vdwg.mxu0
  %4722 = vst [vmem:[%s28] sm:$0xff] %v4708
  %4723 = vst [vmem:[%s28 + $0x8] sm:$0xff] %v4711
  %4724 = vst [vmem:[%s28 + $0x10] sm:$0xff] %v4716
  %4725 = vst [vmem:[%s28 + $0x18] sm:$0xff] %v4719
  // Predicated region
  $region114: #{stgsat_forward.1} parent=0 // pred_check
    _
  $region115: #{stgsat_forward.1} parent=0 // pred_check_branch
    %4727 = sbr.rel (0) target = $region117
  $region116: #{stgsat_forward.1} parent=0 // pred_region
    _
  $region117: #{stgsat_forward.1} parent=0 // pred_fallthru
    _
  // Predicated region
  $region118: #{stgsat_forward.1} parent=0 // pred_check
    _
  $region119: #{stgsat_forward.1} parent=0 // pred_check_branch
    %4729 = sbr.rel (0) target = $region121
  $region120: #{stgsat_forward.1} parent=0 // pred_region
    _
  $region121: #{stgsat_forward.1} parent=0 // pred_fallthru
    _

</llo_original>
